<compile_context>
chip_gen: v7x
topology: tpu7x:2x2x1
jax: 0.10.0
libtpu: 0.0.40
codegen_flags: <defaults>
</compile_context>

<pallas_src>
import numpy as np
import jax
import jax.numpy as jnp
from jax.experimental import pallas as pl
from jax.experimental.pallas import tpu as pltpu

POOL_SIZES = (5, 9, 13)   # PP-YOLO-E SPP pool sizes (cascade of 5x5 pools)
STAGE = 5                 # cascade stage kernel (5∘5 = 9, 5∘5∘5 = 13)
PAD = STAGE // 2          # per-stage halo = 2
HALO = 8                  # allocated halo, rounded up so the interior is sublane-aligned

# TODO(synk): general pool_size tuples and kernel_size > 1 (im2col conv) are not
# implemented; PP-YOLO-E instantiates SPP with pool_size=(5,9,13), kernel_size=1.


def spp_kernel(x_ref, w_ref, b_ref, o_ref, pad_ref, rowmax_ref, acc_ref):
    # x_ref:      (1, H, W, C)                 one batch element (NHWC)
    # w_ref:      (1+n_pools, C, Cout)         BN-folded 1x1 conv weight, K-chunked
    # b_ref:      (1, Cout)                    BN-folded bias
    # o_ref:      (1, H*W, Cout)               output tile (lane dim = Cout)
    # pad_ref:    (H+2*HALO, W+2*HALO, C)      -inf ring + pooling workspace
    # rowmax_ref: (H+2*PAD, W, C)              horizontal-pass scratch
    # acc_ref:    (H*W, Cout) f32              conv accumulator
    H, W, C = x_ref.shape[1], x_ref.shape[2], x_ref.shape[3]
    cout = o_ref.shape[-1]
    hw = H * W
    n_pools = w_ref.shape[0] - 1
    neg = jnp.float32(-jnp.inf)

    # -inf ring around the interior. Only a PAD(=2)-wide ring is ever read; we
    # fill 2-row / 8-col strips so every store is a full-width, unmasked vst.
    # Re-filled every step (cheap) so the kernel is safe under megacore grid
    # sharding (no cross-step scratch dependence).
    pad_ref[HALO - PAD:HALO, :, :] = jnp.full((PAD, W + 2 * HALO, C), neg, pad_ref.dtype)
    pad_ref[HALO + H:HALO + H + PAD, :, :] = jnp.full((PAD, W + 2 * HALO, C), neg, pad_ref.dtype)
    pad_ref[HALO:HALO + H, 0:HALO, :] = jnp.full((H, HALO, C), neg, pad_ref.dtype)
    pad_ref[HALO:HALO + H, HALO + W:HALO + W + HALO, :] = jnp.full((H, HALO, C), neg, pad_ref.dtype)

    x = x_ref[0]                                               # (H, W, C)
    pad_ref[HALO:HALO + H, HALO:HALO + W, :] = x

    # Identity branch: bias + x @ W[0]  (bias folded into accumulator init).
    acc_ref[...] = (
        jnp.dot(x.reshape(hw, C), w_ref[0], preferred_element_type=jnp.float32)
        + b_ref[...]
    )

    # SPPF cascade: each stage is a separable 5x5 max over the previous stage.
    for i in range(n_pools):
        # Horizontal pass over rows [HALO-PAD, HALO+H+PAD): 5 shifted Ref loads.
        r0 = HALO - PAD
        c0 = HALO - PAD
        rm = pad_ref[r0:r0 + H + 2 * PAD, c0:c0 + W, :]
        for dx in range(1, STAGE):
            rm = jnp.maximum(rm, pad_ref[r0:r0 + H + 2 * PAD, c0 + dx:c0 + dx + W, :])
        rowmax_ref[...] = rm

        # Vertical pass: shifts on the leading (untiled) axis are free offsets.
        pooled = rowmax_ref[0:H, :, :]
        for dy in range(1, STAGE):
            pooled = jnp.maximum(pooled, rowmax_ref[dy:dy + H, :, :])

        # Accumulate this branch's 1x1-conv contribution on the MXU.
        acc_ref[...] += jnp.dot(pooled.reshape(hw, C), w_ref[i + 1],
                                preferred_element_type=jnp.float32)

        # Feed the cascade: next stage pools this result (border stays -inf).
        if i + 1 < n_pools:
            pad_ref[HALO:HALO + H, HALO:HALO + W, :] = pooled

    # SiLU and single writeback.
    y = acc_ref[...]
    o_ref[0] = (y * jax.nn.sigmoid(y)).astype(o_ref.dtype)


def spp_forward(x_nchw, w_fold, b_fold):
    """x_nchw: (N, C, H, W) f32; w_fold: (Cmid, Cout) BN-folded; b_fold: (1, Cout)."""
    N, C, H, W = x_nchw.shape
    n_branches = 1 + len(POOL_SIZES)
    cmid, cout = w_fold.shape
    assert cmid == C * n_branches
    assert POOL_SIZES == (5, 9, 13), "cascade specialization assumes pool_size=(5,9,13)"

    x = jnp.transpose(x_nchw, (0, 2, 3, 1))                    # NCHW -> NHWC
    w_chunks = w_fold.reshape(n_branches, C, cout)             # per-branch K chunks

    out = pl.pallas_call(
        spp_kernel,
        out_shape=jax.ShapeDtypeStruct((N, H * W, cout), jnp.float32),
        grid_spec=pltpu.PrefetchScalarGridSpec(
            num_scalar_prefetch=0,
            grid=(N,),
            in_specs=[
                pl.BlockSpec((1, H, W, C), lambda n: (n, 0, 0, 0)),
                pl.BlockSpec((n_branches, C, cout), lambda n: (0, 0, 0)),
                pl.BlockSpec((1, cout), lambda n: (0, 0)),
            ],
            out_specs=pl.BlockSpec((1, H * W, cout), lambda n: (n, 0, 0)),
            scratch_shapes=[
                pltpu.VMEM((H + 2 * HALO, W + 2 * HALO, C), jnp.float32),
                pltpu.VMEM((H + 2 * PAD, W, C), jnp.float32),
                pltpu.VMEM((H * W, cout), jnp.float32),
            ],
        ),
        compiler_params=pltpu.CompilerParams(dimension_semantics=("parallel",)),
    )(x, w_chunks, b_fold)

    out = out.reshape(N, H, W, cout)                           # glue only
    return jnp.transpose(out, (0, 3, 1, 2))                    # NHWC -> NCHW


def reference_spp(x_nchw, conv_w, gamma, beta, mean, var, eps=1e-5):
    """Plain-JAX reference mirroring the PyTorch module (NCHW)."""
    outs = [x_nchw]
    for s in POOL_SIZES:
        p = s // 2
        outs.append(
            jax.lax.reduce_window(
                x_nchw, -jnp.inf, jax.lax.max,
                window_dimensions=(1, 1, s, s),
                window_strides=(1, 1, 1, 1),
                padding=[(0, 0), (0, 0), (p, p), (p, p)],
            )
        )
    y = jnp.concatenate(outs, axis=1)                          # (N, Cmid, H, W)
    z = jnp.einsum("nchw,oc->nohw", y, conv_w)                 # 1x1 conv, no bias
    z = (z - mean[None, :, None, None]) / jnp.sqrt(var[None, :, None, None] + eps)
    z = z * gamma[None, :, None, None] + beta[None, :, None, None]
    return z * jax.nn.sigmoid(z)                               # SiLU


if __name__ == "__main__":
    # SPP(in_channels=4, out_channels=8, kernel_size=1, pool_size=(5,9,13), act=SiLU)
    N, C, H, W = 2, 4, 16, 16
    C_OUT = 8
    C_MID = C * (1 + len(POOL_SIZES))                          # 16

    key = jax.random.PRNGKey(0)
    k_x, k_w, k_g, k_b, k_m, k_v = jax.random.split(key, 6)

    x = jax.random.normal(k_x, (N, C, H, W), dtype=jnp.float32)

    # Conv2d(C_MID, C_OUT, 1, bias=False) weight: (C_OUT, C_MID) for the 1x1 case.
    conv_w = jax.random.normal(k_w, (C_OUT, C_MID), dtype=jnp.float32) * 0.1
    # BatchNorm2d(C_OUT) parameters / running stats (deterministic synthetic init).
    gamma = 1.0 + 0.1 * jax.random.normal(k_g, (C_OUT,), dtype=jnp.float32)
    beta = 0.1 * jax.random.normal(k_b, (C_OUT,), dtype=jnp.float32)
    mean = 0.1 * jax.random.normal(k_m, (C_OUT,), dtype=jnp.float32)
    var = jax.nn.softplus(jax.random.normal(k_v, (C_OUT,), dtype=jnp.float32)) + 0.5
    eps = 1e-5

    # Fold BN into the 1x1 conv: y = (Wx - mean)*scale*gamma + beta
    scale = gamma / jnp.sqrt(var + eps)                        # (C_OUT,)
    w_fold = (conv_w * scale[:, None]).T                       # (C_MID, C_OUT)
    b_fold = (beta - mean * scale)[None, :]                    # (1, C_OUT)

    out = jax.block_until_ready(spp_forward(x, w_fold, b_fold))
    ref = jax.block_until_ready(reference_spp(x, conv_w, gamma, beta, mean, var, eps))

    assert out.shape == (N, C_OUT, H, W), out.shape
    np.testing.assert_allclose(np.asarray(out), np.asarray(ref), rtol=1e-4, atol=1e-4)
    print("KERNEL_OK")
</pallas_src>

<mosaic_0001>
module attributes {stable_mosaic.version = 11 : i64} {
  func.func @spp_kernel(%arg0: i32, %arg1: memref<1x16x16x4xf32, #tpu.memory_space<vmem>>, %arg2: memref<4x4x8xf32, #tpu.memory_space<vmem>>, %arg3: memref<1x8xf32, #tpu.memory_space<vmem>>, %arg4: memref<1x256x8xf32, #tpu.memory_space<vmem>>, %arg5: memref<32x32x4xf32, #tpu.memory_space<vmem>>, %arg6: memref<20x16x4xf32, #tpu.memory_space<vmem>>, %arg7: memref<256x8xf32, #tpu.memory_space<vmem>>) attributes {dimension_semantics = [#tpu.dimension_semantics<parallel>], iteration_bounds = array<i64: 2>, scalar_prefetch = 0 : i64, scratch_operands = 3 : i64, tpu.core_type = #tpu.core_type<tc>, window_params = [{transform_indices = @transform_0, window_bounds = array<i64: 1, 16, 16, 4>}, {pipeline_mode = #tpu.pipeline_mode<synchronous>, transform_indices = @transform_1, window_bounds = array<i64: 4, 4, 8>}, {pipeline_mode = #tpu.pipeline_mode<synchronous>, transform_indices = @transform_2, window_bounds = array<i64: 1, 8>}, {transform_indices = @transform_3, window_bounds = array<i64: 1, 256, 8>}]} {
    %cst = arith.constant 0xFF800000 : f32
    %0 = vector.broadcast %cst : f32 to vector<2x32x4xf32>
    %c6 = arith.constant 6 : index
    %c0 = arith.constant 0 : index
    %c0_0 = arith.constant 0 : index
    %1 = vector.load %arg5[%c6, %c0, %c0_0] : memref<32x32x4xf32, #tpu.memory_space<vmem>>, vector<2x32x4xf32>
    tpu.vector_store %arg5[%c6, %c0, %c0_0], %0 {strides = array<i32>} : memref<32x32x4xf32, #tpu.memory_space<vmem>>, vector<2x32x4xf32>,
    %cst_1 = arith.constant 0xFF800000 : f32
    %2 = vector.broadcast %cst_1 : f32 to vector<2x32x4xf32>
    %c24 = arith.constant 24 : index
    %c0_2 = arith.constant 0 : index
    %c0_3 = arith.constant 0 : index
    %3 = vector.load %arg5[%c24, %c0_2, %c0_3] : memref<32x32x4xf32, #tpu.memory_space<vmem>>, vector<2x32x4xf32>
    tpu.vector_store %arg5[%c24, %c0_2, %c0_3], %2 {strides = array<i32>} : memref<32x32x4xf32, #tpu.memory_space<vmem>>, vector<2x32x4xf32>,
    %cst_4 = arith.constant 0xFF800000 : f32
    %4 = vector.broadcast %cst_4 : f32 to vector<16x8x4xf32>
    %c8 = arith.constant 8 : index
    %c0_5 = arith.constant 0 : index
    %c0_6 = arith.constant 0 : index
    %5 = vector.load %arg5[%c8, %c0_5, %c0_6] : memref<32x32x4xf32, #tpu.memory_space<vmem>>, vector<16x8x4xf32>
    tpu.vector_store %arg5[%c8, %c0_5, %c0_6], %4 {strides = array<i32>} : memref<32x32x4xf32, #tpu.memory_space<vmem>>, vector<16x8x4xf32>,
    %cst_7 = arith.constant 0xFF800000 : f32
    %6 = vector.broadcast %cst_7 : f32 to vector<16x8x4xf32>
    %c8_8 = arith.constant 8 : index
    %c24_9 = arith.constant 24 : index
    %c0_10 = arith.constant 0 : index
    %7 = vector.load %arg5[%c8_8, %c24_9, %c0_10] : memref<32x32x4xf32, #tpu.memory_space<vmem>>, vector<16x8x4xf32>
    tpu.vector_store %arg5[%c8_8, %c24_9, %c0_10], %6 {strides = array<i32>} : memref<32x32x4xf32, #tpu.memory_space<vmem>>, vector<16x8x4xf32>,
    %c0_11 = arith.constant 0 : index
    %c0_12 = arith.constant 0 : index
    %c0_13 = arith.constant 0 : index
    %c0_14 = arith.constant 0 : index
    %8 = vector.load %arg1[%c0_11, %c0_12, %c0_13, %c0_14] : memref<1x16x16x4xf32, #tpu.memory_space<vmem>>, vector<1x16x16x4xf32>
    %9 = vector.shape_cast %8 : vector<1x16x16x4xf32> to vector<16x16x4xf32>
    %c8_15 = arith.constant 8 : index
    %c8_16 = arith.constant 8 : index
    %c0_17 = arith.constant 0 : index
    %10 = vector.load %arg5[%c8_15, %c8_16, %c0_17] : memref<32x32x4xf32, #tpu.memory_space<vmem>>, vector<16x16x4xf32>
    tpu.vector_store %arg5[%c8_15, %c8_16, %c0_17], %9 {strides = array<i32>} : memref<32x32x4xf32, #tpu.memory_space<vmem>>, vector<16x16x4xf32>,
    %11 = vector.shape_cast %9 : vector<16x16x4xf32> to vector<256x4xf32>
    %c0_18 = arith.constant 0 : index
    %c0_19 = arith.constant 0 : index
    %c0_20 = arith.constant 0 : index
    %12 = vector.load %arg2[%c0_18, %c0_19, %c0_20] : memref<4x4x8xf32, #tpu.memory_space<vmem>>, vector<1x4x8xf32>
    %13 = vector.shape_cast %12 : vector<1x4x8xf32> to vector<4x8xf32>
    %cst_21 = arith.constant dense<0.000000e+00> : vector<256x8xf32>
    %14 = tpu.matmul %11, %13, %cst_21 {dimension_numbers = #tpu.dot_dimension_numbers<[1], [0], [0], [1], [0, 0, 1, 1], [], []>} : vector<256x4xf32>, vector<4x8xf32>, vector<256x8xf32> -> vector<256x8xf32>
    %c0_22 = arith.constant 0 : index
    %c0_23 = arith.constant 0 : index
    %15 = vector.load %arg3[%c0_22, %c0_23] : memref<1x8xf32, #tpu.memory_space<vmem>>, vector<1x8xf32>
    %16 = vector.broadcast %15 : vector<1x8xf32> to vector<256x8xf32>
    %17 = arith.addf %14, %16 : vector<256x8xf32>
    %c0_24 = arith.constant 0 : index
    %c0_25 = arith.constant 0 : index
    %18 = vector.load %arg7[%c0_24, %c0_25] : memref<256x8xf32, #tpu.memory_space<vmem>>, vector<256x8xf32>
    tpu.vector_store %arg7[%c0_24, %c0_25], %17 {strides = array<i32>} : memref<256x8xf32, #tpu.memory_space<vmem>>, vector<256x8xf32>,
    %c6_26 = arith.constant 6 : index
    %c6_27 = arith.constant 6 : index
    %c0_28 = arith.constant 0 : index
    %19 = vector.load %arg5[%c6_26, %c6_27, %c0_28] : memref<32x32x4xf32, #tpu.memory_space<vmem>>, vector<20x16x4xf32>
    %c6_29 = arith.constant 6 : index
    %c7 = arith.constant 7 : index
    %c0_30 = arith.constant 0 : index
    %20 = vector.load %arg5[%c6_29, %c7, %c0_30] : memref<32x32x4xf32, #tpu.memory_space<vmem>>, vector<20x16x4xf32>
    %21 = arith.maximumf %19, %20 : vector<20x16x4xf32>
    %c6_31 = arith.constant 6 : index
    %c8_32 = arith.constant 8 : index
    %c0_33 = arith.constant 0 : index
    %22 = vector.load %arg5[%c6_31, %c8_32, %c0_33] : memref<32x32x4xf32, #tpu.memory_space<vmem>>, vector<20x16x4xf32>
    %23 = arith.maximumf %21, %22 : vector<20x16x4xf32>
    %c6_34 = arith.constant 6 : index
    %c9 = arith.constant 9 : index
    %c0_35 = arith.constant 0 : index
    %24 = vector.load %arg5[%c6_34, %c9, %c0_35] : memref<32x32x4xf32, #tpu.memory_space<vmem>>, vector<20x16x4xf32>
    %25 = arith.maximumf %23, %24 : vector<20x16x4xf32>
    %c6_36 = arith.constant 6 : index
    %c10 = arith.constant 10 : index
    %c0_37 = arith.constant 0 : index
    %26 = vector.load %arg5[%c6_36, %c10, %c0_37] : memref<32x32x4xf32, #tpu.memory_space<vmem>>, vector<20x16x4xf32>
    %27 = arith.maximumf %25, %26 : vector<20x16x4xf32>
    %c0_38 = arith.constant 0 : index
    %c0_39 = arith.constant 0 : index
    %c0_40 = arith.constant 0 : index
    %28 = vector.load %arg6[%c0_38, %c0_39, %c0_40] : memref<20x16x4xf32, #tpu.memory_space<vmem>>, vector<20x16x4xf32>
    tpu.vector_store %arg6[%c0_38, %c0_39, %c0_40], %27 {strides = array<i32>} : memref<20x16x4xf32, #tpu.memory_space<vmem>>, vector<20x16x4xf32>,
    %c0_41 = arith.constant 0 : index
    %c0_42 = arith.constant 0 : index
    %c0_43 = arith.constant 0 : index
    %29 = vector.load %arg6[%c0_41, %c0_42, %c0_43] : memref<20x16x4xf32, #tpu.memory_space<vmem>>, vector<16x16x4xf32>
    %c1 = arith.constant 1 : index
    %c0_44 = arith.constant 0 : index
    %c0_45 = arith.constant 0 : index
    %30 = vector.load %arg6[%c1, %c0_44, %c0_45] : memref<20x16x4xf32, #tpu.memory_space<vmem>>, vector<16x16x4xf32>
    %31 = arith.maximumf %29, %30 : vector<16x16x4xf32>
    %c2 = arith.constant 2 : index
    %c0_46 = arith.constant 0 : index
    %c0_47 = arith.constant 0 : index
    %32 = vector.load %arg6[%c2, %c0_46, %c0_47] : memref<20x16x4xf32, #tpu.memory_space<vmem>>, vector<16x16x4xf32>
    %33 = arith.maximumf %31, %32 : vector<16x16x4xf32>
    %c3 = arith.constant 3 : index
    %c0_48 = arith.constant 0 : index
    %c0_49 = arith.constant 0 : index
    %34 = vector.load %arg6[%c3, %c0_48, %c0_49] : memref<20x16x4xf32, #tpu.memory_space<vmem>>, vector<16x16x4xf32>
    %35 = arith.maximumf %33, %34 : vector<16x16x4xf32>
    %c4 = arith.constant 4 : index
    %c0_50 = arith.constant 0 : index
    %c0_51 = arith.constant 0 : index
    %36 = vector.load %arg6[%c4, %c0_50, %c0_51] : memref<20x16x4xf32, #tpu.memory_space<vmem>>, vector<16x16x4xf32>
    %37 = arith.maximumf %35, %36 : vector<16x16x4xf32>
    %c0_52 = arith.constant 0 : index
    %c0_53 = arith.constant 0 : index
    %38 = vector.load %arg7[%c0_52, %c0_53] : memref<256x8xf32, #tpu.memory_space<vmem>>, vector<256x8xf32>
    %39 = vector.shape_cast %37 : vector<16x16x4xf32> to vector<256x4xf32>
    %c1_54 = arith.constant 1 : index
    %c0_55 = arith.constant 0 : index
    %c0_56 = arith.constant 0 : index
    %40 = vector.load %arg2[%c1_54, %c0_55, %c0_56] : memref<4x4x8xf32, #tpu.memory_space<vmem>>, vector<1x4x8xf32>
    %41 = vector.shape_cast %40 : vector<1x4x8xf32> to vector<4x8xf32>
    %cst_57 = arith.constant dense<0.000000e+00> : vector<256x8xf32>
    %42 = tpu.matmul %39, %41, %cst_57 {dimension_numbers = #tpu.dot_dimension_numbers<[1], [0], [0], [1], [0, 0, 1, 1], [], []>} : vector<256x4xf32>, vector<4x8xf32>, vector<256x8xf32> -> vector<256x8xf32>
    %43 = arith.addf %38, %42 : vector<256x8xf32>
    %c0_58 = arith.constant 0 : index
    %c0_59 = arith.constant 0 : index
    %44 = vector.load %arg7[%c0_58, %c0_59] : memref<256x8xf32, #tpu.memory_space<vmem>>, vector<256x8xf32>
    tpu.vector_store %arg7[%c0_58, %c0_59], %43 {strides = array<i32>} : memref<256x8xf32, #tpu.memory_space<vmem>>, vector<256x8xf32>,
    %c8_60 = arith.constant 8 : index
    %c8_61 = arith.constant 8 : index
    %c0_62 = arith.constant 0 : index
    %45 = vector.load %arg5[%c8_60, %c8_61, %c0_62] : memref<32x32x4xf32, #tpu.memory_space<vmem>>, vector<16x16x4xf32>
    tpu.vector_store %arg5[%c8_60, %c8_61, %c0_62], %37 {strides = array<i32>} : memref<32x32x4xf32, #tpu.memory_space<vmem>>, vector<16x16x4xf32>,
    %c6_63 = arith.constant 6 : index
    %c6_64 = arith.constant 6 : index
    %c0_65 = arith.constant 0 : index
    %46 = vector.load %arg5[%c6_63, %c6_64, %c0_65] : memref<32x32x4xf32, #tpu.memory_space<vmem>>, vector<20x16x4xf32>
    %c6_66 = arith.constant 6 : index
    %c7_67 = arith.constant 7 : index
    %c0_68 = arith.constant 0 : index
    %47 = vector.load %arg5[%c6_66, %c7_67, %c0_68] : memref<32x32x4xf32, #tpu.memory_space<vmem>>, vector<20x16x4xf32>
    %48 = arith.maximumf %46, %47 : vector<20x16x4xf32>
    %c6_69 = arith.constant 6 : index
    %c8_70 = arith.constant 8 : index
    %c0_71 = arith.constant 0 : index
    %49 = vector.load %arg5[%c6_69, %c8_70, %c0_71] : memref<32x32x4xf32, #tpu.memory_space<vmem>>, vector<20x16x4xf32>
    %50 = arith.maximumf %48, %49 : vector<20x16x4xf32>
    %c6_72 = arith.constant 6 : index
    %c9_73 = arith.constant 9 : index
    %c0_74 = arith.constant 0 : index
    %51 = vector.load %arg5[%c6_72, %c9_73, %c0_74] : memref<32x32x4xf32, #tpu.memory_space<vmem>>, vector<20x16x4xf32>
    %52 = arith.maximumf %50, %51 : vector<20x16x4xf32>
    %c6_75 = arith.constant 6 : index
    %c10_76 = arith.constant 10 : index
    %c0_77 = arith.constant 0 : index
    %53 = vector.load %arg5[%c6_75, %c10_76, %c0_77] : memref<32x32x4xf32, #tpu.memory_space<vmem>>, vector<20x16x4xf32>
    %54 = arith.maximumf %52, %53 : vector<20x16x4xf32>
    %c0_78 = arith.constant 0 : index
    %c0_79 = arith.constant 0 : index
    %c0_80 = arith.constant 0 : index
    %55 = vector.load %arg6[%c0_78, %c0_79, %c0_80] : memref<20x16x4xf32, #tpu.memory_space<vmem>>, vector<20x16x4xf32>
    tpu.vector_store %arg6[%c0_78, %c0_79, %c0_80], %54 {strides = array<i32>} : memref<20x16x4xf32, #tpu.memory_space<vmem>>, vector<20x16x4xf32>,
    %c0_81 = arith.constant 0 : index
    %c0_82 = arith.constant 0 : index
    %c0_83 = arith.constant 0 : index
    %56 = vector.load %arg6[%c0_81, %c0_82, %c0_83] : memref<20x16x4xf32, #tpu.memory_space<vmem>>, vector<16x16x4xf32>
    %c1_84 = arith.constant 1 : index
    %c0_85 = arith.constant 0 : index
    %c0_86 = arith.constant 0 : index
    %57 = vector.load %arg6[%c1_84, %c0_85, %c0_86] : memref<20x16x4xf32, #tpu.memory_space<vmem>>, vector<16x16x4xf32>
    %58 = arith.maximumf %56, %57 : vector<16x16x4xf32>
    %c2_87 = arith.constant 2 : index
    %c0_88 = arith.constant 0 : index
    %c0_89 = arith.constant 0 : index
    %59 = vector.load %arg6[%c2_87, %c0_88, %c0_89] : memref<20x16x4xf32, #tpu.memory_space<vmem>>, vector<16x16x4xf32>
    %60 = arith.maximumf %58, %59 : vector<16x16x4xf32>
    %c3_90 = arith.constant 3 : index
    %c0_91 = arith.constant 0 : index
    %c0_92 = arith.constant 0 : index
    %61 = vector.load %arg6[%c3_90, %c0_91, %c0_92] : memref<20x16x4xf32, #tpu.memory_space<vmem>>, vector<16x16x4xf32>
    %62 = arith.maximumf %60, %61 : vector<16x16x4xf32>
    %c4_93 = arith.constant 4 : index
    %c0_94 = arith.constant 0 : index
    %c0_95 = arith.constant 0 : index
    %63 = vector.load %arg6[%c4_93, %c0_94, %c0_95] : memref<20x16x4xf32, #tpu.memory_space<vmem>>, vector<16x16x4xf32>
    %64 = arith.maximumf %62, %63 : vector<16x16x4xf32>
    %c0_96 = arith.constant 0 : index
    %c0_97 = arith.constant 0 : index
    %65 = vector.load %arg7[%c0_96, %c0_97] : memref<256x8xf32, #tpu.memory_space<vmem>>, vector<256x8xf32>
    %66 = vector.shape_cast %64 : vector<16x16x4xf32> to vector<256x4xf32>
    %c2_98 = arith.constant 2 : index
    %c0_99 = arith.constant 0 : index
    %c0_100 = arith.constant 0 : index
    %67 = vector.load %arg2[%c2_98, %c0_99, %c0_100] : memref<4x4x8xf32, #tpu.memory_space<vmem>>, vector<1x4x8xf32>
    %68 = vector.shape_cast %67 : vector<1x4x8xf32> to vector<4x8xf32>
    %cst_101 = arith.constant dense<0.000000e+00> : vector<256x8xf32>
    %69 = tpu.matmul %66, %68, %cst_101 {dimension_numbers = #tpu.dot_dimension_numbers<[1], [0], [0], [1], [0, 0, 1, 1], [], []>} : vector<256x4xf32>, vector<4x8xf32>, vector<256x8xf32> -> vector<256x8xf32>
    %70 = arith.addf %65, %69 : vector<256x8xf32>
    %c0_102 = arith.constant 0 : index
    %c0_103 = arith.constant 0 : index
    %71 = vector.load %arg7[%c0_102, %c0_103] : memref<256x8xf32, #tpu.memory_space<vmem>>, vector<256x8xf32>
    tpu.vector_store %arg7[%c0_102, %c0_103], %70 {strides = array<i32>} : memref<256x8xf32, #tpu.memory_space<vmem>>, vector<256x8xf32>,
    %c8_104 = arith.constant 8 : index
    %c8_105 = arith.constant 8 : index
    %c0_106 = arith.constant 0 : index
    %72 = vector.load %arg5[%c8_104, %c8_105, %c0_106] : memref<32x32x4xf32, #tpu.memory_space<vmem>>, vector<16x16x4xf32>
    tpu.vector_store %arg5[%c8_104, %c8_105, %c0_106], %64 {strides = array<i32>} : memref<32x32x4xf32, #tpu.memory_space<vmem>>, vector<16x16x4xf32>,
    %c6_107 = arith.constant 6 : index
    %c6_108 = arith.constant 6 : index
    %c0_109 = arith.constant 0 : index
    %73 = vector.load %arg5[%c6_107, %c6_108, %c0_109] : memref<32x32x4xf32, #tpu.memory_space<vmem>>, vector<20x16x4xf32>
    %c6_110 = arith.constant 6 : index
    %c7_111 = arith.constant 7 : index
    %c0_112 = arith.constant 0 : index
    %74 = vector.load %arg5[%c6_110, %c7_111, %c0_112] : memref<32x32x4xf32, #tpu.memory_space<vmem>>, vector<20x16x4xf32>
    %75 = arith.maximumf %73, %74 : vector<20x16x4xf32>
    %c6_113 = arith.constant 6 : index
    %c8_114 = arith.constant 8 : index
    %c0_115 = arith.constant 0 : index
    %76 = vector.load %arg5[%c6_113, %c8_114, %c0_115] : memref<32x32x4xf32, #tpu.memory_space<vmem>>, vector<20x16x4xf32>
    %77 = arith.maximumf %75, %76 : vector<20x16x4xf32>
    %c6_116 = arith.constant 6 : index
    %c9_117 = arith.constant 9 : index
    %c0_118 = arith.constant 0 : index
    %78 = vector.load %arg5[%c6_116, %c9_117, %c0_118] : memref<32x32x4xf32, #tpu.memory_space<vmem>>, vector<20x16x4xf32>
    %79 = arith.maximumf %77, %78 : vector<20x16x4xf32>
    %c6_119 = arith.constant 6 : index
    %c10_120 = arith.constant 10 : index
    %c0_121 = arith.constant 0 : index
    %80 = vector.load %arg5[%c6_119, %c10_120, %c0_121] : memref<32x32x4xf32, #tpu.memory_space<vmem>>, vector<20x16x4xf32>
    %81 = arith.maximumf %79, %80 : vector<20x16x4xf32>
    %c0_122 = arith.constant 0 : index
    %c0_123 = arith.constant 0 : index
    %c0_124 = arith.constant 0 : index
    %82 = vector.load %arg6[%c0_122, %c0_123, %c0_124] : memref<20x16x4xf32, #tpu.memory_space<vmem>>, vector<20x16x4xf32>
    tpu.vector_store %arg6[%c0_122, %c0_123, %c0_124], %81 {strides = array<i32>} : memref<20x16x4xf32, #tpu.memory_space<vmem>>, vector<20x16x4xf32>,
    %c0_125 = arith.constant 0 : index
    %c0_126 = arith.constant 0 : index
    %c0_127 = arith.constant 0 : index
    %83 = vector.load %arg6[%c0_125, %c0_126, %c0_127] : memref<20x16x4xf32, #tpu.memory_space<vmem>>, vector<16x16x4xf32>
    %c1_128 = arith.constant 1 : index
    %c0_129 = arith.constant 0 : index
    %c0_130 = arith.constant 0 : index
    %84 = vector.load %arg6[%c1_128, %c0_129, %c0_130] : memref<20x16x4xf32, #tpu.memory_space<vmem>>, vector<16x16x4xf32>
    %85 = arith.maximumf %83, %84 : vector<16x16x4xf32>
    %c2_131 = arith.constant 2 : index
    %c0_132 = arith.constant 0 : index
    %c0_133 = arith.constant 0 : index
    %86 = vector.load %arg6[%c2_131, %c0_132, %c0_133] : memref<20x16x4xf32, #tpu.memory_space<vmem>>, vector<16x16x4xf32>
    %87 = arith.maximumf %85, %86 : vector<16x16x4xf32>
    %c3_134 = arith.constant 3 : index
    %c0_135 = arith.constant 0 : index
    %c0_136 = arith.constant 0 : index
    %88 = vector.load %arg6[%c3_134, %c0_135, %c0_136] : memref<20x16x4xf32, #tpu.memory_space<vmem>>, vector<16x16x4xf32>
    %89 = arith.maximumf %87, %88 : vector<16x16x4xf32>
    %c4_137 = arith.constant 4 : index
    %c0_138 = arith.constant 0 : index
    %c0_139 = arith.constant 0 : index
    %90 = vector.load %arg6[%c4_137, %c0_138, %c0_139] : memref<20x16x4xf32, #tpu.memory_space<vmem>>, vector<16x16x4xf32>
    %91 = arith.maximumf %89, %90 : vector<16x16x4xf32>
    %c0_140 = arith.constant 0 : index
    %c0_141 = arith.constant 0 : index
    %92 = vector.load %arg7[%c0_140, %c0_141] : memref<256x8xf32, #tpu.memory_space<vmem>>, vector<256x8xf32>
    %93 = vector.shape_cast %91 : vector<16x16x4xf32> to vector<256x4xf32>
    %c3_142 = arith.constant 3 : index
    %c0_143 = arith.constant 0 : index
    %c0_144 = arith.constant 0 : index
    %94 = vector.load %arg2[%c3_142, %c0_143, %c0_144] : memref<4x4x8xf32, #tpu.memory_space<vmem>>, vector<1x4x8xf32>
    %95 = vector.shape_cast %94 : vector<1x4x8xf32> to vector<4x8xf32>
    %cst_145 = arith.constant dense<0.000000e+00> : vector<256x8xf32>
    %96 = tpu.matmul %93, %95, %cst_145 {dimension_numbers = #tpu.dot_dimension_numbers<[1], [0], [0], [1], [0, 0, 1, 1], [], []>} : vector<256x4xf32>, vector<4x8xf32>, vector<256x8xf32> -> vector<256x8xf32>
    %97 = arith.addf %92, %96 : vector<256x8xf32>
    %c0_146 = arith.constant 0 : index
    %c0_147 = arith.constant 0 : index
    %98 = vector.load %arg7[%c0_146, %c0_147] : memref<256x8xf32, #tpu.memory_space<vmem>>, vector<256x8xf32>
    tpu.vector_store %arg7[%c0_146, %c0_147], %97 {strides = array<i32>} : memref<256x8xf32, #tpu.memory_space<vmem>>, vector<256x8xf32>,
    %c0_148 = arith.constant 0 : index
    %c0_149 = arith.constant 0 : index
    %99 = vector.load %arg7[%c0_148, %c0_149] : memref<256x8xf32, #tpu.memory_space<vmem>>, vector<256x8xf32>
    %100 = arith.negf %99 : vector<256x8xf32>
    %101 = math.exp %100 : vector<256x8xf32>
    %cst_150 = arith.constant 1.000000e+00 : f32
    %102 = vector.broadcast %cst_150 : f32 to vector<256x8xf32>
    %103 = arith.addf %102, %101 : vector<256x8xf32>
    %104 = arith.divf %102, %103 : vector<256x8xf32>
    %105 = arith.mulf %99, %104 : vector<256x8xf32>
    %c0_151 = arith.constant 0 : index
    %c0_152 = arith.constant 0 : index
    %c0_153 = arith.constant 0 : index
    %106 = vector.load %arg4[%c0_151, %c0_152, %c0_153] : memref<1x256x8xf32, #tpu.memory_space<vmem>>, vector<1x256x8xf32>
    %107 = vector.shape_cast %106 : vector<1x256x8xf32> to vector<256x8xf32>
    %108 = vector.shape_cast %105 : vector<256x8xf32> to vector<1x256x8xf32>
    tpu.vector_store %arg4[%c0_151, %c0_152, %c0_153], %108 {strides = array<i32>} : memref<1x256x8xf32, #tpu.memory_space<vmem>>, vector<1x256x8xf32>,
    return
  }
  func.func @transform_0(%arg0: i32) -> (i32, i32, i32, i32) {
    %c0_i32 = arith.constant 0 : i32
    %c0_i32_0 = arith.constant 0 : i32
    %c0_i32_1 = arith.constant 0 : i32
    %c0_i32_2 = arith.constant 0 : i32
    return %arg0, %c0_i32, %c0_i32_0, %c0_i32_1 : i32, i32, i32, i32
  }
  func.func @transform_1(%arg0: i32) -> (i32, i32, i32) {
    %c0_i32 = arith.constant 0 : i32
    %c0_i32_0 = arith.constant 0 : i32
    %c0_i32_1 = arith.constant 0 : i32
    %c0_i32_2 = arith.constant 0 : i32
    return %c0_i32, %c0_i32_0, %c0_i32_1 : i32, i32, i32
  }
  func.func @transform_2(%arg0: i32) -> (i32, i32) {
    %c0_i32 = arith.constant 0 : i32
    %c0_i32_0 = arith.constant 0 : i32
    %c0_i32_1 = arith.constant 0 : i32
    return %c0_i32, %c0_i32_0 : i32, i32
  }
  func.func @transform_3(%arg0: i32) -> (i32, i32, i32) {
    %c0_i32 = arith.constant 0 : i32
    %c0_i32_0 = arith.constant 0 : i32
    %c0_i32_1 = arith.constant 0 : i32
    return %arg0, %c0_i32, %c0_i32_0 : i32, i32, i32
  }
}

</mosaic_0001>

<llo_original>
// kernel: tpu_custom_call.1
$region0: #{tpu_custom_call.1}
  #allocation0 [shape = 'u32[]', space=smem, size = 0x4, offset = 0x4, fixed_abs, tag = 'smem constant byte address 0x4 - core index']
  #allocation1 [shape = 'u32[144,128]{1,0:T(1,128)}', space=vmem, size = 0x12000, scoped, tag = 'internal scratch']
  #allocation2 [shape = 'f32[32,32,4]{2,1,0:T(8,128)}', space=vmem, size = 0x80000, scoped, tag = 'scratch operand']
  #allocation3 [shape = 'f32[20,16,4]{2,1,0:T(8,128)}', space=vmem, size = 0x28000, scoped, tag = 'scratch operand']
  #allocation4 [shape = 'f32[256,8]{1,0:T(8,128)}', space=vmem, size = 0x20000, scoped, tag = 'scratch operand']
  %s0 = inlined_call_operand.vmem [shape: f32[2,16,16,4], index: 0, kind: input, shape index: {}]
  %s1 = inlined_call_operand.vmem [shape: f32[4,4,8], index: 1, kind: input, shape index: {}]
  %s2 = inlined_call_operand.vmem [shape: f32[1,8], index: 2, kind: input, shape index: {}]
  %s3 = inlined_call_operand.vmem [shape: f32[2,256,8], index: 3, kind: output, shape index: {}]
  %s4 = sld [smem:[#allocation0]]
  $region45: #{tpu_custom_call.1} parent=0
    _
  %s6 = ssub.s32 1, %s4
  %s7 = scalar_select 0, %s6, %s4
  loop: start=0, step=1, limit=4
  $region2: #{tpu_custom_call.1} parent=0 // loop_pre_header
    _
  $region3: #{tpu_custom_call.1} parent=0 // loop_header
    %s9 = sphi 0, %s13
    %p10 = scmp.ge.s32.totalorder %s9, 4
    %s19 = sphi 0, %s21
    %s22 = sphi 0, %s19
    %s23 = sphi 0, %s22
    %s39 = sphi 0, %s23
    %s43 = sphi 0, %s43
    %s45 = sphi 0, %s43
    %s46 = sphi 0, %s45
    %s60 = sphi 0, %s46
    %s64 = sphi 0, %s64
    %s66 = sphi 0, %s64
    %s67 = sphi 0, %s66
    %s81 = sphi 0, %s67
    %s87 = sphi 0, %s89
    %s90 = sphi 0, %s87
    %s91 = sphi 0, %s90
    %s107 = sphi 0, %s91
  $region4: #{tpu_custom_call.1} parent=0 // loop_header_branch
    %12 = sbr.rel (%p10) target = $region8
  $region5: #{tpu_custom_call.1} parent=0 // loop_body
    %s14 = ssub.s32 %s9, 1
    %s15 = ssub.s32 %s9, 2
    %s16 = sadd.s32 %s9, 1
    %s17 = ssub.s32 %s9, %s16
    %p18 = scmp.eq.s32.totalorder %s17, 0
    %s20 = sadd.s32 %s19, 1
    %s21 = scalar_select %p18, %s19, %s20
    %p24 = pneg %p18
    %p25 = scmp.eq.s32.totalorder %s9, 1
    %p26 = por %p24, %p25
    %p27 = scmp.ne.s32.totalorder %s19, %s22
    %p28 = scmp.eq.s32.totalorder %s9, 0
    %p29 = por %p27, %p28
    %p30 = scmp.ne.s32.totalorder %s19, %s22
    %p31 = scmp.eq.s32.totalorder %s14, 1
    %p32 = por %p30, %p31
    %p33 = scmp.ne.s32.totalorder %s22, %s23
    %p34 = scmp.eq.s32.totalorder %s14, 0
    %p35 = por %p33, %p34
    %p36 = scmp.ne.s32.totalorder %s22, %s23
    %p37 = scmp.eq.s32.totalorder %s15, 1
    %p38 = por %p36, %p37
    %p40 = scmp.ne.s32.totalorder %s23, %s39
    %p41 = scmp.eq.s32.totalorder %s15, 0
    %p42 = por %p40, %p41
    %s44 = sadd.s32 %s43, 1
    %p47 = scmp.eq.s32.totalorder %s9, 1
    %p48 = scmp.ne.s32.totalorder %s43, %s45
    %p49 = scmp.eq.s32.totalorder %s9, 0
    %p50 = por %p48, %p49
    %p51 = scmp.ne.s32.totalorder %s43, %s45
    %p52 = scmp.eq.s32.totalorder %s14, 1
    %p53 = por %p51, %p52
    %p54 = scmp.ne.s32.totalorder %s45, %s46
    %p55 = scmp.eq.s32.totalorder %s14, 0
    %p56 = por %p54, %p55
    %p57 = scmp.ne.s32.totalorder %s45, %s46
    %p58 = scmp.eq.s32.totalorder %s15, 1
    %p59 = por %p57, %p58
    %p61 = scmp.ne.s32.totalorder %s46, %s60
    %p62 = scmp.eq.s32.totalorder %s15, 0
    %p63 = por %p61, %p62
    %s65 = sadd.s32 %s64, 1
    %p68 = scmp.eq.s32.totalorder %s9, 1
    %p69 = scmp.ne.s32.totalorder %s64, %s66
    %p70 = scmp.eq.s32.totalorder %s9, 0
    %p71 = por %p69, %p70
    %p72 = scmp.ne.s32.totalorder %s64, %s66
    %p73 = scmp.eq.s32.totalorder %s14, 1
    %p74 = por %p72, %p73
    %p75 = scmp.ne.s32.totalorder %s66, %s67
    %p76 = scmp.eq.s32.totalorder %s14, 0
    %p77 = por %p75, %p76
    %p78 = scmp.ne.s32.totalorder %s66, %s67
    %p79 = scmp.eq.s32.totalorder %s15, 1
    %p80 = por %p78, %p79
    %p82 = scmp.ne.s32.totalorder %s67, %s81
    %p83 = scmp.eq.s32.totalorder %s15, 0
    %p84 = por %p82, %p83
    %s85 = ssub.s32 %s9, %s16
    %p86 = scmp.eq.s32.totalorder %s85, 0
    %s88 = sadd.s32 %s87, 1
    %s89 = scalar_select %p86, %s87, %s88
    %p92 = pneg %p86
    %p93 = scmp.eq.s32.totalorder %s9, 1
    %p94 = por %p92, %p93
    %p95 = scmp.ne.s32.totalorder %s87, %s90
    %p96 = scmp.eq.s32.totalorder %s9, 0
    %p97 = por %p95, %p96
    %p98 = scmp.ne.s32.totalorder %s87, %s90
    %p99 = scmp.eq.s32.totalorder %s14, 1
    %p100 = por %p98, %p99
    %p101 = scmp.ne.s32.totalorder %s90, %s91
    %p102 = scmp.eq.s32.totalorder %s14, 0
    %p103 = por %p101, %p102
    %p104 = scmp.ne.s32.totalorder %s90, %s91
    %p105 = scmp.eq.s32.totalorder %s15, 1
    %p106 = por %p104, %p105
    %p108 = scmp.ne.s32.totalorder %s91, %s107
    %p109 = scmp.eq.s32.totalorder %s15, 0
    %p110 = por %p108, %p109
    %p111 = scmp.le.s32.totalorder 1, %s9
    %p112 = scmp.lt.s32.totalorder %s9, 3
    %p113 = pnand %p111, %p112
    %p114 = pneg %p113
    // Predicated region
    $region9: #{tpu_custom_call.1} parent=5 // pred_check
      _
    $region10: #{tpu_custom_call.1} parent=5 // pred_check_branch
      %116 = sbr.rel (%p113) target = $region12
    $region11: #{tpu_custom_call.1} parent=5 // pred_region
      %s117 = ssub.s32 %s9, 1
      // Predicated region
      $region13: #{tpu_custom_call.1} parent=11 // pred_check
        %p118 = pneg %p56
      $region14: #{tpu_custom_call.1} parent=11 // pred_check_branch
        %120 = sbr.rel (%p118) target = $region16
      $region15: #{tpu_custom_call.1} parent=11 // pred_region
        _
      $region16: #{tpu_custom_call.1} parent=11 // pred_fallthru
        _
      // Predicated region
      $region17: #{tpu_custom_call.1} parent=11 // pred_check
        %p121 = pneg %p77
      $region18: #{tpu_custom_call.1} parent=11 // pred_check_branch
        %123 = sbr.rel (%p121) target = $region20
      $region19: #{tpu_custom_call.1} parent=11 // pred_region
        _
      $region20: #{tpu_custom_call.1} parent=11 // pred_fallthru
        _
    $region12: #{tpu_custom_call.1} parent=5 // pred_fallthru
      _
    %p124 = scmp.lt.s32.totalorder %s9, 2
    // Predicated region
    $region21: #{tpu_custom_call.1} parent=5 // pred_check
      %p125 = pneg %p124
    $region22: #{tpu_custom_call.1} parent=5 // pred_check_branch
      %127 = sbr.rel (%p125) target = $region24
    $region23: #{tpu_custom_call.1} parent=5 // pred_region
      // Predicated region
      $region25: #{tpu_custom_call.1} parent=23 // pred_check
        %p128 = pneg %p29
      $region26: #{tpu_custom_call.1} parent=23 // pred_check_branch
        %130 = sbr.rel (%p128) target = $region28
      $region27: #{tpu_custom_call.1} parent=23 // pred_region
        %p131 = scmp.lt.s32.totalorder %s9, 1
        %s132 = scalar_select %p131, %s9, 1
        %s133 = smul.addr %s132, 32
        %s134 = smul.addr %s133, 8
        %s135 = scalar_lea.vmem %s0, %s134
      $region28: #{tpu_custom_call.1} parent=23 // pred_fallthru
        _
    $region24: #{tpu_custom_call.1} parent=5 // pred_fallthru
      _
    %p136 = scmp.le.s32.totalorder 1, %s9
    %p137 = scmp.lt.s32.totalorder %s9, 3
    %p138 = pnand %p136, %p137
    %p139 = pneg %p138
    // Predicated region
    $region29: #{tpu_custom_call.1} parent=5 // pred_check
      _
    $region30: #{tpu_custom_call.1} parent=5 // pred_check_branch
      %141 = sbr.rel (%p138) target = $region32
    $region31: #{tpu_custom_call.1} parent=5 // pred_region
      %s142 = ssub.s32 %s9, 1
      %p143 = scmp.lt.s32.totalorder %s14, 1
      %s144 = scalar_select %p143, %s14, 1
      %s145 = smul.addr %s144, 32
      %s146 = smul.addr %s145, 8
      %s147 = scalar_lea.vmem %s0, %s146
      %p148 = pneg %p35
      %p149 = pneg %p32
      %p150 = pneg %p56
      %p151 = pneg %p53
      %p152 = pneg %p77
      %p153 = pneg %p74
      %p154 = pneg %p103
      %p155 = pneg %p100
      %p156 = scmp.lt.s32.totalorder %s14, 1
      %s157 = scalar_select %p156, %s14, 1
      %s158 = smul.addr %s157, 32
      %s159 = smul.addr %s158, 8
      %s160 = scalar_lea.vmem %s3, %s159
      %p161 = scmp.lt.s32.totalorder %s14, 1
      %s162 = scalar_select %p161, %s14, 1
      %s163 = smul.addr %s162, 32
      %s164 = smul.addr %s163, 8
      %s165 = scalar_lea.vmem %s0, %s164
      %p166 = scmp.lt.s32.totalorder %s14, 1
      %s167 = scalar_select %p166, %s14, 1
      %s168 = smul.addr %s167, 32
      %s169 = smul.addr %s168, 8
      %s170 = scalar_lea.vmem %s3, %s169
      %s171 = scalar_lea.vmem [#allocation2], 192
      %vm172 = vcmask 31744
      %173 = vst.msk [vmem:[%s171] sm:$0xff] %vm172, -inf
      %174 = vst.msk [vmem:[%s171 + $0x8] sm:$0xff] %vm172, -inf
      %175 = vst.msk [vmem:[%s171 + $0x10] sm:$0xff] %vm172, -inf
      %176 = vst.msk [vmem:[%s171 + $0x18] sm:$0xff] %vm172, -inf
      %177 = vst.msk [vmem:[%s171 + $0x20] sm:$0xff] %vm172, -inf
      %178 = vst.msk [vmem:[%s171 + $0x28] sm:$0xff] %vm172, -inf
      %179 = vst.msk [vmem:[%s171 + $0x30] sm:$0xff] %vm172, -inf
      %180 = vst.msk [vmem:[%s171 + $0x38] sm:$0xff] %vm172, -inf
      %s181 = scalar_lea.vmem [#allocation2], 768
      %182 = vst.msk [vmem:[%s181] sm:$0xff] %vm172, -inf
      %183 = vst.msk [vmem:[%s181 + $0x8] sm:$0xff] %vm172, -inf
      %184 = vst.msk [vmem:[%s181 + $0x10] sm:$0xff] %vm172, -inf
      %185 = vst.msk [vmem:[%s181 + $0x18] sm:$0xff] %vm172, -inf
      %186 = vst.msk [vmem:[%s181 + $0x20] sm:$0xff] %vm172, -inf
      %187 = vst.msk [vmem:[%s181 + $0x28] sm:$0xff] %vm172, -inf
      %188 = vst.msk [vmem:[%s181 + $0x30] sm:$0xff] %vm172, -inf
      %189 = vst.msk [vmem:[%s181 + $0x38] sm:$0xff] %vm172, -inf
      %s190 = scalar_lea.vmem [#allocation2], 256
      %191 = vst.msk [vmem:[%s190] sm:$0xff] %vm172, -inf
      %192 = vst.msk [vmem:[%s190 + $0x20] sm:$0xff] %vm172, -inf
      %193 = vst.msk [vmem:[%s190 + $0x40] sm:$0xff] %vm172, -inf
      %194 = vst.msk [vmem:[%s190 + $0x60] sm:$0xff] %vm172, -inf
      %195 = vst.msk [vmem:[%s190 + $0x80] sm:$0xff] %vm172, -inf
      %196 = vst.msk [vmem:[%s190 + $0xa0] sm:$0xff] %vm172, -inf
      %197 = vst.msk [vmem:[%s190 + $0xc0] sm:$0xff] %vm172, -inf
      %198 = vst.msk [vmem:[%s190 + $0xe0] sm:$0xff] %vm172, -inf
      %199 = vst.msk [vmem:[%s190 + $0x100] sm:$0xff] %vm172, -inf
      %200 = vst.msk [vmem:[%s190 + $0x120] sm:$0xff] %vm172, -inf
      %201 = vst.msk [vmem:[%s190 + $0x140] sm:$0xff] %vm172, -inf
      %202 = vst.msk [vmem:[%s190 + $0x160] sm:$0xff] %vm172, -inf
      %203 = vst.msk [vmem:[%s190 + $0x180] sm:$0xff] %vm172, -inf
      %204 = vst.msk [vmem:[%s190 + $0x1a0] sm:$0xff] %vm172, -inf
      %205 = vst.msk [vmem:[%s190 + $0x1c0] sm:$0xff] %vm172, -inf
      %206 = vst.msk [vmem:[%s190 + $0x1e0] sm:$0xff] %vm172, -inf
      %207 = vst.msk [vmem:[%s190 + $0x18] sm:$0xff] %vm172, -inf
      %208 = vst.msk [vmem:[%s190 + $0x38] sm:$0xff] %vm172, -inf
      %209 = vst.msk [vmem:[%s190 + $0x58] sm:$0xff] %vm172, -inf
      %210 = vst.msk [vmem:[%s190 + $0x78] sm:$0xff] %vm172, -inf
      %211 = vst.msk [vmem:[%s190 + $0x98] sm:$0xff] %vm172, -inf
      %212 = vst.msk [vmem:[%s190 + $0xb8] sm:$0xff] %vm172, -inf
      %213 = vst.msk [vmem:[%s190 + $0xd8] sm:$0xff] %vm172, -inf
      %214 = vst.msk [vmem:[%s190 + $0xf8] sm:$0xff] %vm172, -inf
      %215 = vst.msk [vmem:[%s190 + $0x118] sm:$0xff] %vm172, -inf
      %216 = vst.msk [vmem:[%s190 + $0x138] sm:$0xff] %vm172, -inf
      %217 = vst.msk [vmem:[%s190 + $0x158] sm:$0xff] %vm172, -inf
      %218 = vst.msk [vmem:[%s190 + $0x178] sm:$0xff] %vm172, -inf
      %219 = vst.msk [vmem:[%s190 + $0x198] sm:$0xff] %vm172, -inf
      %220 = vst.msk [vmem:[%s190 + $0x1b8] sm:$0xff] %vm172, -inf
      %221 = vst.msk [vmem:[%s190 + $0x1d8] sm:$0xff] %vm172, -inf
      %222 = vst.msk [vmem:[%s190 + $0x1f8] sm:$0xff] %vm172, -inf
      %v223 = vld [vmem:[%s165] sm:$0xff]
      %v224 = vld [vmem:[%s165 + $0x8] sm:$0xff]
      %v225 = vld [vmem:[%s165 + $0x10] sm:$0xff]
      %v226 = vld [vmem:[%s165 + $0x18] sm:$0xff]
      %v227 = vld [vmem:[%s165 + $0x20] sm:$0xff]
      %v228 = vld [vmem:[%s165 + $0x28] sm:$0xff]
      %v229 = vld [vmem:[%s165 + $0x30] sm:$0xff]
      %v230 = vld [vmem:[%s165 + $0x38] sm:$0xff]
      %v231 = vld [vmem:[%s165 + $0x40] sm:$0xff]
      %v232 = vld [vmem:[%s165 + $0x48] sm:$0xff]
      %v233 = vld [vmem:[%s165 + $0x50] sm:$0xff]
      %v234 = vld [vmem:[%s165 + $0x58] sm:$0xff]
      %v235 = vld [vmem:[%s165 + $0x60] sm:$0xff]
      %v236 = vld [vmem:[%s165 + $0x68] sm:$0xff]
      %v237 = vld [vmem:[%s165 + $0x70] sm:$0xff]
      %v238 = vld [vmem:[%s165 + $0x78] sm:$0xff]
      %v239 = vld [vmem:[%s165 + $0x80] sm:$0xff]
      %v240 = vld [vmem:[%s165 + $0x88] sm:$0xff]
      %v241 = vld [vmem:[%s165 + $0x90] sm:$0xff]
      %v242 = vld [vmem:[%s165 + $0x98] sm:$0xff]
      %v243 = vld [vmem:[%s165 + $0xa0] sm:$0xff]
      %v244 = vld [vmem:[%s165 + $0xa8] sm:$0xff]
      %v245 = vld [vmem:[%s165 + $0xb0] sm:$0xff]
      %v246 = vld [vmem:[%s165 + $0xb8] sm:$0xff]
      %v247 = vld [vmem:[%s165 + $0xc0] sm:$0xff]
      %v248 = vld [vmem:[%s165 + $0xc8] sm:$0xff]
      %v249 = vld [vmem:[%s165 + $0xd0] sm:$0xff]
      %v250 = vld [vmem:[%s165 + $0xd8] sm:$0xff]
      %v251 = vld [vmem:[%s165 + $0xe0] sm:$0xff]
      %v252 = vld [vmem:[%s165 + $0xe8] sm:$0xff]
      %v253 = vld [vmem:[%s165 + $0xf0] sm:$0xff]
      %v254 = vld [vmem:[%s165 + $0xf8] sm:$0xff]
      %255 = vst.msk [vmem:[%s190 + $0x8] sm:$0xff] %vm172, %v223
      %256 = vst.msk [vmem:[%s190 + $0x10] sm:$0xff] %vm172, %v224
      %257 = vst.msk [vmem:[%s190 + $0x28] sm:$0xff] %vm172, %v225
      %258 = vst.msk [vmem:[%s190 + $0x30] sm:$0xff] %vm172, %v226
      %259 = vst.msk [vmem:[%s190 + $0x48] sm:$0xff] %vm172, %v227
      %260 = vst.msk [vmem:[%s190 + $0x50] sm:$0xff] %vm172, %v228
      %261 = vst.msk [vmem:[%s190 + $0x68] sm:$0xff] %vm172, %v229
      %262 = vst.msk [vmem:[%s190 + $0x70] sm:$0xff] %vm172, %v230
      %263 = vst.msk [vmem:[%s190 + $0x88] sm:$0xff] %vm172, %v231
      %264 = vst.msk [vmem:[%s190 + $0x90] sm:$0xff] %vm172, %v232
      %265 = vst.msk [vmem:[%s190 + $0xa8] sm:$0xff] %vm172, %v233
      %266 = vst.msk [vmem:[%s190 + $0xb0] sm:$0xff] %vm172, %v234
      %267 = vst.msk [vmem:[%s190 + $0xc8] sm:$0xff] %vm172, %v235
      %268 = vst.msk [vmem:[%s190 + $0xd0] sm:$0xff] %vm172, %v236
      %269 = vst.msk [vmem:[%s190 + $0xe8] sm:$0xff] %vm172, %v237
      %270 = vst.msk [vmem:[%s190 + $0xf0] sm:$0xff] %vm172, %v238
      %271 = vst.msk [vmem:[%s190 + $0x108] sm:$0xff] %vm172, %v239
      %272 = vst.msk [vmem:[%s190 + $0x110] sm:$0xff] %vm172, %v240
      %273 = vst.msk [vmem:[%s190 + $0x128] sm:$0xff] %vm172, %v241
      %274 = vst.msk [vmem:[%s190 + $0x130] sm:$0xff] %vm172, %v242
      %275 = vst.msk [vmem:[%s190 + $0x148] sm:$0xff] %vm172, %v243
      %276 = vst.msk [vmem:[%s190 + $0x150] sm:$0xff] %vm172, %v244
      %277 = vst.msk [vmem:[%s190 + $0x168] sm:$0xff] %vm172, %v245
      %278 = vst.msk [vmem:[%s190 + $0x170] sm:$0xff] %vm172, %v246
      %279 = vst.msk [vmem:[%s190 + $0x188] sm:$0xff] %vm172, %v247
      %280 = vst.msk [vmem:[%s190 + $0x190] sm:$0xff] %vm172, %v248
      %281 = vst.msk [vmem:[%s190 + $0x1a8] sm:$0xff] %vm172, %v249
      %282 = vst.msk [vmem:[%s190 + $0x1b0] sm:$0xff] %vm172, %v250
      %283 = vst.msk [vmem:[%s190 + $0x1c8] sm:$0xff] %vm172, %v251
      %284 = vst.msk [vmem:[%s190 + $0x1d0] sm:$0xff] %vm172, %v252
      %285 = vst.msk [vmem:[%s190 + $0x1e8] sm:$0xff] %vm172, %v253
      %286 = vst.msk [vmem:[%s190 + $0x1f0] sm:$0xff] %vm172, %v254
      %v287 = vld [vmem:[%s1] sm:$0xf]
      %v288 = vld [vmem:[%s2] sm:$0x1]
      %v290 = vlaneseq
      %v291 = vshrl.u32 %v290, 7
      %v292 = vsub.s32 0, %v291
      %v293 = vrot.slane %v288, %v292
      %v296 = vsel %vm172, %v223, 0
      %v299 = vsel %vm172, %v224, 0
      %v302 = vsel %vm172, %v225, 0
      %v305 = vsel %vm172, %v226, 0
      %v308 = vsel %vm172, %v227, 0
      %v311 = vsel %vm172, %v228, 0
      %v314 = vsel %vm172, %v229, 0
      %v317 = vsel %vm172, %v230, 0
      %v320 = vsel %vm172, %v231, 0
      %v323 = vsel %vm172, %v232, 0
      %v326 = vsel %vm172, %v233, 0
      %v329 = vsel %vm172, %v234, 0
      %v332 = vsel %vm172, %v235, 0
      %v335 = vsel %vm172, %v236, 0
      %v338 = vsel %vm172, %v237, 0
      %v341 = vsel %vm172, %v238, 0
      %v344 = vsel %vm172, %v239, 0
      %v347 = vsel %vm172, %v240, 0
      %v350 = vsel %vm172, %v241, 0
      %v353 = vsel %vm172, %v242, 0
      %v356 = vsel %vm172, %v243, 0
      %v359 = vsel %vm172, %v244, 0
      %v362 = vsel %vm172, %v245, 0
      %v365 = vsel %vm172, %v246, 0
      %v368 = vsel %vm172, %v247, 0
      %v371 = vsel %vm172, %v248, 0
      %v374 = vsel %vm172, %v249, 0
      %v377 = vsel %vm172, %v250, 0
      %v380 = vsel %vm172, %v251, 0
      %v383 = vsel %vm172, %v252, 0
      %v386 = vsel %vm172, %v253, 0
      %v389 = vsel %vm172, %v254, 0
      %vm391 = vcmask 1043456
      %v393 = vsel %vm391, %v287, 0
      %395 = vmatprep.subr.mxu0 0.0
      %396 = vmatpush1.msra.mxu0 %v393
      %397 = vmatprep.subr.mxu0 0.0
      %398 = vmatpush1.msra.mxu0 0.0
      %399 = vmatprep.subr.mxu0 0.0
      %400 = vmatpush1.msra.mxu0 0.0
      %401 = vmatprep.subr.mxu0 0.0
      %402 = vmatpush1.msra.mxu0 0.0
      %403 = vmatprep.subr.mxu0 0.0
      %404 = vmatpush1.msra.mxu0 0.0
      %405 = vmatprep.subr.mxu0 0.0
      %406 = vmatpush1.msra.mxu0 0.0
      %407 = vmatprep.subr.mxu0 0.0
      %408 = vmatpush1.msra.mxu0 0.0
      %409 = vmatprep.subr.mxu0 0.0
      %410 = vmatpush1.msra.mxu0 0.0
      %411 = vmatprep.subr.mxu0 0.0
      %412 = vmatpush1.msra.mxu0 0.0
      %413 = vmatprep.subr.mxu0 0.0
      %414 = vmatpush1.msra.mxu0 0.0
      %415 = vmatprep.subr.mxu0 0.0
      %416 = vmatpush1.msra.mxu0 0.0
      %417 = vmatprep.subr.mxu0 0.0
      %418 = vmatpush1.msra.mxu0 0.0
      %419 = vmatprep.subr.mxu0 0.0
      %420 = vmatpush1.msra.mxu0 0.0
      %421 = vmatprep.subr.mxu0 0.0
      %422 = vmatpush1.msra.mxu0 0.0
      %423 = vmatprep.subr.mxu0 0.0
      %424 = vmatpush1.msra.mxu0 0.0
      %425 = vmatprep.subr.mxu0 0.0
      %426 = vmatpush1.msra.mxu0 0.0
      %427 = vmatprep.subr.mxu0 0.0
      %428 = vmatpush1.msra.mxu0 0.0
      %429 = vmatprep.subr.mxu0 0.0
      %430 = vmatpush1.msra.mxu0 0.0
      %431 = vmatprep.subr.mxu0 0.0
      %432 = vmatpush1.msra.mxu0 0.0
      %433 = vmatprep.subr.mxu0 0.0
      %434 = vmatpush1.msra.mxu0 0.0
      %435 = vmatprep.subr.mxu0 0.0
      %436 = vmatpush1.msra.mxu0 0.0
      %437 = vmatprep.subr.mxu0 0.0
      %438 = vmatpush1.msra.mxu0 0.0
      %439 = vmatprep.subr.mxu0 0.0
      %440 = vmatpush1.msra.mxu0 0.0
      %441 = vmatprep.subr.mxu0 0.0
      %442 = vmatpush1.msra.mxu0 0.0
      %443 = vmatprep.subr.mxu0 0.0
      %444 = vmatpush1.msra.mxu0 0.0
      %445 = vmatprep.subr.mxu0 0.0
      %446 = vmatpush1.msra.mxu0 0.0
      %447 = vmatprep.subr.mxu0 0.0
      %448 = vmatpush1.msra.mxu0 0.0
      %449 = vmatprep.subr.mxu0 0.0
      %450 = vmatpush1.msra.mxu0 0.0
      %451 = vmatprep.subr.mxu0 0.0
      %452 = vmatpush1.msra.mxu0 0.0
      %453 = vmatprep.subr.mxu0 0.0
      %454 = vmatpush1.msra.mxu0 0.0
      %455 = vmatprep.subr.mxu0 0.0
      %456 = vmatpush1.msra.mxu0 0.0
      %457 = vmatprep.subr.mxu0 0.0
      %458 = vmatpush1.msra.mxu0 0.0
      %459 = vmatprep.mubr.f32.mxu0 0.0
      %460 = vmatmul.mubr.f32.gmra.mrb[0].mxu0 %v296
      %v461 = vpop.f32.mrb[0].mxu0
      %v462 = vadd.f32 %v293, %v461
      %v463 = vpop.f32.mrb[0].mxu0
      %464 = vmatprep.mubr.f32.mxu0 0.0
      %465 = vmatmul.mubr.f32.gmra.mrb[0].mxu0 %v299
      %v466 = vpop.f32.mrb[0].mxu0
      %v467 = vadd.f32 %v293, %v466
      %v468 = vpop.f32.mrb[0].mxu0
      %469 = vmatprep.mubr.f32.mxu0 0.0
      %470 = vmatmul.mubr.f32.gmra.mrb[0].mxu0 %v302
      %v471 = vpop.f32.mrb[0].mxu0
      %v472 = vadd.f32 %v293, %v471
      %v473 = vpop.f32.mrb[0].mxu0
      %474 = vmatprep.mubr.f32.mxu0 0.0
      %475 = vmatmul.mubr.f32.gmra.mrb[0].mxu0 %v305
      %v476 = vpop.f32.mrb[0].mxu0
      %v477 = vadd.f32 %v293, %v476
      %v478 = vpop.f32.mrb[0].mxu0
      %479 = vmatprep.mubr.f32.mxu0 0.0
      %480 = vmatmul.mubr.f32.gmra.mrb[0].mxu0 %v308
      %v481 = vpop.f32.mrb[0].mxu0
      %v482 = vadd.f32 %v293, %v481
      %v483 = vpop.f32.mrb[0].mxu0
      %484 = vmatprep.mubr.f32.mxu0 0.0
      %485 = vmatmul.mubr.f32.gmra.mrb[0].mxu0 %v311
      %v486 = vpop.f32.mrb[0].mxu0
      %v487 = vadd.f32 %v293, %v486
      %v488 = vpop.f32.mrb[0].mxu0
      %489 = vmatprep.mubr.f32.mxu0 0.0
      %490 = vmatmul.mubr.f32.gmra.mrb[0].mxu0 %v314
      %v491 = vpop.f32.mrb[0].mxu0
      %v492 = vadd.f32 %v293, %v491
      %v493 = vpop.f32.mrb[0].mxu0
      %494 = vmatprep.mubr.f32.mxu0 0.0
      %495 = vmatmul.mubr.f32.gmra.mrb[0].mxu0 %v317
      %v496 = vpop.f32.mrb[0].mxu0
      %v497 = vadd.f32 %v293, %v496
      %v498 = vpop.f32.mrb[0].mxu0
      %499 = vmatprep.mubr.f32.mxu0 0.0
      %500 = vmatmul.mubr.f32.gmra.mrb[0].mxu0 %v320
      %v501 = vpop.f32.mrb[0].mxu0
      %v502 = vadd.f32 %v293, %v501
      %v503 = vpop.f32.mrb[0].mxu0
      %504 = vmatprep.mubr.f32.mxu0 0.0
      %505 = vmatmul.mubr.f32.gmra.mrb[0].mxu0 %v323
      %v506 = vpop.f32.mrb[0].mxu0
      %v507 = vadd.f32 %v293, %v506
      %v508 = vpop.f32.mrb[0].mxu0
      %509 = vmatprep.mubr.f32.mxu0 0.0
      %510 = vmatmul.mubr.f32.gmra.mrb[0].mxu0 %v326
      %v511 = vpop.f32.mrb[0].mxu0
      %v512 = vadd.f32 %v293, %v511
      %v513 = vpop.f32.mrb[0].mxu0
      %514 = vmatprep.mubr.f32.mxu0 0.0
      %515 = vmatmul.mubr.f32.gmra.mrb[0].mxu0 %v329
      %v516 = vpop.f32.mrb[0].mxu0
      %v517 = vadd.f32 %v293, %v516
      %v518 = vpop.f32.mrb[0].mxu0
      %519 = vmatprep.mubr.f32.mxu0 0.0
      %520 = vmatmul.mubr.f32.gmra.mrb[0].mxu0 %v332
      %v521 = vpop.f32.mrb[0].mxu0
      %v522 = vadd.f32 %v293, %v521
      %v523 = vpop.f32.mrb[0].mxu0
      %524 = vmatprep.mubr.f32.mxu0 0.0
      %525 = vmatmul.mubr.f32.gmra.mrb[0].mxu0 %v335
      %v526 = vpop.f32.mrb[0].mxu0
      %v527 = vadd.f32 %v293, %v526
      %v528 = vpop.f32.mrb[0].mxu0
      %529 = vmatprep.mubr.f32.mxu0 0.0
      %530 = vmatmul.mubr.f32.gmra.mrb[0].mxu0 %v338
      %v531 = vpop.f32.mrb[0].mxu0
      %v532 = vadd.f32 %v293, %v531
      %v533 = vpop.f32.mrb[0].mxu0
      %534 = vmatprep.mubr.f32.mxu0 0.0
      %535 = vmatmul.mubr.f32.gmra.mrb[0].mxu0 %v341
      %v536 = vpop.f32.mrb[0].mxu0
      %v537 = vadd.f32 %v293, %v536
      %v538 = vpop.f32.mrb[0].mxu0
      %539 = vmatprep.mubr.f32.mxu0 0.0
      %540 = vmatmul.mubr.f32.gmra.mrb[0].mxu0 %v344
      %v541 = vpop.f32.mrb[0].mxu0
      %v542 = vadd.f32 %v293, %v541
      %v543 = vpop.f32.mrb[0].mxu0
      %544 = vmatprep.mubr.f32.mxu0 0.0
      %545 = vmatmul.mubr.f32.gmra.mrb[0].mxu0 %v347
      %v546 = vpop.f32.mrb[0].mxu0
      %v547 = vadd.f32 %v293, %v546
      %v548 = vpop.f32.mrb[0].mxu0
      %549 = vmatprep.mubr.f32.mxu0 0.0
      %550 = vmatmul.mubr.f32.gmra.mrb[0].mxu0 %v350
      %v551 = vpop.f32.mrb[0].mxu0
      %v552 = vadd.f32 %v293, %v551
      %v553 = vpop.f32.mrb[0].mxu0
      %554 = vmatprep.mubr.f32.mxu0 0.0
      %555 = vmatmul.mubr.f32.gmra.mrb[0].mxu0 %v353
      %v556 = vpop.f32.mrb[0].mxu0
      %v557 = vadd.f32 %v293, %v556
      %v558 = vpop.f32.mrb[0].mxu0
      %559 = vmatprep.mubr.f32.mxu0 0.0
      %560 = vmatmul.mubr.f32.gmra.mrb[0].mxu0 %v356
      %v561 = vpop.f32.mrb[0].mxu0
      %v562 = vadd.f32 %v293, %v561
      %v563 = vpop.f32.mrb[0].mxu0
      %564 = vmatprep.mubr.f32.mxu0 0.0
      %565 = vmatmul.mubr.f32.gmra.mrb[0].mxu0 %v359
      %v566 = vpop.f32.mrb[0].mxu0
      %v567 = vadd.f32 %v293, %v566
      %v568 = vpop.f32.mrb[0].mxu0
      %569 = vmatprep.mubr.f32.mxu0 0.0
      %570 = vmatmul.mubr.f32.gmra.mrb[0].mxu0 %v362
      %v571 = vpop.f32.mrb[0].mxu0
      %v572 = vadd.f32 %v293, %v571
      %v573 = vpop.f32.mrb[0].mxu0
      %574 = vmatprep.mubr.f32.mxu0 0.0
      %575 = vmatmul.mubr.f32.gmra.mrb[0].mxu0 %v365
      %v576 = vpop.f32.mrb[0].mxu0
      %v577 = vadd.f32 %v293, %v576
      %v578 = vpop.f32.mrb[0].mxu0
      %579 = vmatprep.mubr.f32.mxu0 0.0
      %580 = vmatmul.mubr.f32.gmra.mrb[0].mxu0 %v368
      %v581 = vpop.f32.mrb[0].mxu0
      %v582 = vadd.f32 %v293, %v581
      %v583 = vpop.f32.mrb[0].mxu0
      %584 = vmatprep.mubr.f32.mxu0 0.0
      %585 = vmatmul.mubr.f32.gmra.mrb[0].mxu0 %v371
      %v586 = vpop.f32.mrb[0].mxu0
      %v587 = vadd.f32 %v293, %v586
      %v588 = vpop.f32.mrb[0].mxu0
      %589 = vmatprep.mubr.f32.mxu0 0.0
      %590 = vmatmul.mubr.f32.gmra.mrb[0].mxu0 %v374
      %v591 = vpop.f32.mrb[0].mxu0
      %v592 = vadd.f32 %v293, %v591
      %v593 = vpop.f32.mrb[0].mxu0
      %594 = vmatprep.mubr.f32.mxu0 0.0
      %595 = vmatmul.mubr.f32.gmra.mrb[0].mxu0 %v377
      %v596 = vpop.f32.mrb[0].mxu0
      %v597 = vadd.f32 %v293, %v596
      %v598 = vpop.f32.mrb[0].mxu0
      %599 = vmatprep.mubr.f32.mxu0 0.0
      %600 = vmatmul.mubr.f32.gmra.mrb[0].mxu0 %v380
      %v601 = vpop.f32.mrb[0].mxu0
      %v602 = vadd.f32 %v293, %v601
      %v603 = vpop.f32.mrb[0].mxu0
      %604 = vmatprep.mubr.f32.mxu0 0.0
      %605 = vmatmul.mubr.f32.gmra.mrb[0].mxu0 %v383
      %v606 = vpop.f32.mrb[0].mxu0
      %v607 = vadd.f32 %v293, %v606
      %v608 = vpop.f32.mrb[0].mxu0
      %609 = vmatprep.mubr.f32.mxu0 0.0
      %610 = vmatmul.mubr.f32.gmra.mrb[0].mxu0 %v386
      %v611 = vpop.f32.mrb[0].mxu0
      %v612 = vadd.f32 %v293, %v611
      %v613 = vpop.f32.mrb[0].mxu0
      %614 = vmatprep.mubr.f32.mxu0 0.0
      %615 = vmatmul.mubr.f32.gmra.mrb[0].mxu0 %v389
      %v616 = vpop.f32.mrb[0].mxu0
      %v617 = vadd.f32 %v293, %v616
      %v618 = vpop.f32.mrb[0].mxu0
      %619 = vdwg.mxu0
      %vm620 = vcmask 64512
      %621 = vst.msk [vmem:[#allocation4] sm:$0xff] %vm620, %v462
      %622 = vst.msk [vmem:[#allocation4 + $0x8] sm:$0xff] %vm620, %v467
      %623 = vst.msk [vmem:[#allocation4 + $0x10] sm:$0xff] %vm620, %v472
      %624 = vst.msk [vmem:[#allocation4 + $0x18] sm:$0xff] %vm620, %v477
      %625 = vst.msk [vmem:[#allocation4 + $0x20] sm:$0xff] %vm620, %v482
      %626 = vst.msk [vmem:[#allocation4 + $0x28] sm:$0xff] %vm620, %v487
      %627 = vst.msk [vmem:[#allocation4 + $0x30] sm:$0xff] %vm620, %v492
      %628 = vst.msk [vmem:[#allocation4 + $0x38] sm:$0xff] %vm620, %v497
      %629 = vst.msk [vmem:[#allocation4 + $0x40] sm:$0xff] %vm620, %v502
      %630 = vst.msk [vmem:[#allocation4 + $0x48] sm:$0xff] %vm620, %v507
      %631 = vst.msk [vmem:[#allocation4 + $0x50] sm:$0xff] %vm620, %v512
      %632 = vst.msk [vmem:[#allocation4 + $0x58] sm:$0xff] %vm620, %v517
      %633 = vst.msk [vmem:[#allocation4 + $0x60] sm:$0xff] %vm620, %v522
      %634 = vst.msk [vmem:[#allocation4 + $0x68] sm:$0xff] %vm620, %v527
      %635 = vst.msk [vmem:[#allocation4 + $0x70] sm:$0xff] %vm620, %v532
      %636 = vst.msk [vmem:[#allocation4 + $0x78] sm:$0xff] %vm620, %v537
      %637 = vst.msk [vmem:[#allocation4 + $0x80] sm:$0xff] %vm620, %v542
      %638 = vst.msk [vmem:[#allocation4 + $0x88] sm:$0xff] %vm620, %v547
      %639 = vst.msk [vmem:[#allocation4 + $0x90] sm:$0xff] %vm620, %v552
      %640 = vst.msk [vmem:[#allocation4 + $0x98] sm:$0xff] %vm620, %v557
      %641 = vst.msk [vmem:[#allocation4 + $0xa0] sm:$0xff] %vm620, %v562
      %642 = vst.msk [vmem:[#allocation4 + $0xa8] sm:$0xff] %vm620, %v567
      %643 = vst.msk [vmem:[#allocation4 + $0xb0] sm:$0xff] %vm620, %v572
      %644 = vst.msk [vmem:[#allocation4 + $0xb8] sm:$0xff] %vm620, %v577
      %645 = vst.msk [vmem:[#allocation4 + $0xc0] sm:$0xff] %vm620, %v582
      %646 = vst.msk [vmem:[#allocation4 + $0xc8] sm:$0xff] %vm620, %v587
      %647 = vst.msk [vmem:[#allocation4 + $0xd0] sm:$0xff] %vm620, %v592
      %648 = vst.msk [vmem:[#allocation4 + $0xd8] sm:$0xff] %vm620, %v597
      %649 = vst.msk [vmem:[#allocation4 + $0xe0] sm:$0xff] %vm620, %v602
      %650 = vst.msk [vmem:[#allocation4 + $0xe8] sm:$0xff] %vm620, %v607
      %651 = vst.msk [vmem:[#allocation4 + $0xf0] sm:$0xff] %vm620, %v612
      %652 = vst.msk [vmem:[#allocation4 + $0xf8] sm:$0xff] %vm620, %v617
      %v653 = vld [vmem:[%s171 + $0x6] sm:$0xff]
      %v654 = vld [vmem:[%s171 + $0xe] sm:$0xff]
      %v655 = vld [vmem:[%s171 + $0x26] sm:$0xff]
      %v656 = vld [vmem:[%s171 + $0x2e] sm:$0xff]
      %v657 = vld [vmem:[%s171 + $0x46] sm:$0xff]
      %v658 = vld [vmem:[%s171 + $0x4e] sm:$0xff]
      %v659 = vld [vmem:[%s171 + $0x66] sm:$0xff]
      %v660 = vld [vmem:[%s171 + $0x6e] sm:$0xff]
      %v661 = vld [vmem:[%s171 + $0x86] sm:$0xff]
      %v662 = vld [vmem:[%s171 + $0x8e] sm:$0xff]
      %v663 = vld [vmem:[%s171 + $0xa6] sm:$0xff]
      %v664 = vld [vmem:[%s171 + $0xae] sm:$0xff]
      %v665 = vld [vmem:[%s171 + $0xc6] sm:$0xff]
      %v666 = vld [vmem:[%s171 + $0xce] sm:$0xff]
      %v667 = vld [vmem:[%s171 + $0xe6] sm:$0xff]
      %v668 = vld [vmem:[%s171 + $0xee] sm:$0xff]
      %v669 = vld [vmem:[%s171 + $0x106] sm:$0xff]
      %v670 = vld [vmem:[%s171 + $0x10e] sm:$0xff]
      %v671 = vld [vmem:[%s171 + $0x126] sm:$0xff]
      %v672 = vld [vmem:[%s171 + $0x12e] sm:$0xff]
      %v673 = vld [vmem:[%s171 + $0x146] sm:$0xff]
      %v674 = vld [vmem:[%s171 + $0x14e] sm:$0xff]
      %v675 = vld [vmem:[%s171 + $0x166] sm:$0xff]
      %v676 = vld [vmem:[%s171 + $0x16e] sm:$0xff]
      %v677 = vld [vmem:[%s171 + $0x186] sm:$0xff]
      %v678 = vld [vmem:[%s171 + $0x18e] sm:$0xff]
      %v679 = vld [vmem:[%s171 + $0x1a6] sm:$0xff]
      %v680 = vld [vmem:[%s171 + $0x1ae] sm:$0xff]
      %v681 = vld [vmem:[%s171 + $0x1c6] sm:$0xff]
      %v682 = vld [vmem:[%s171 + $0x1ce] sm:$0xff]
      %v683 = vld [vmem:[%s171 + $0x1e6] sm:$0xff]
      %v684 = vld [vmem:[%s171 + $0x1ee] sm:$0xff]
      %v685 = vld [vmem:[%s171 + $0x206] sm:$0xff]
      %v686 = vld [vmem:[%s171 + $0x20e] sm:$0xff]
      %v687 = vld [vmem:[%s171 + $0x226] sm:$0xff]
      %v688 = vld [vmem:[%s171 + $0x22e] sm:$0xff]
      %v689 = vld [vmem:[%s171 + $0x246] sm:$0xff]
      %v690 = vld [vmem:[%s171 + $0x24e] sm:$0xff]
      %v691 = vld [vmem:[%s171 + $0x266] sm:$0xff]
      %v692 = vld [vmem:[%s171 + $0x26e] sm:$0xff]
      %v693 = vld [vmem:[%s171 + $0x7] sm:$0xff]
      %v694 = vld [vmem:[%s171 + $0xf] sm:$0xff]
      %v695 = vld [vmem:[%s171 + $0x27] sm:$0xff]
      %v696 = vld [vmem:[%s171 + $0x2f] sm:$0xff]
      %v697 = vld [vmem:[%s171 + $0x47] sm:$0xff]
      %v698 = vld [vmem:[%s171 + $0x4f] sm:$0xff]
      %v699 = vld [vmem:[%s171 + $0x67] sm:$0xff]
      %v700 = vld [vmem:[%s171 + $0x6f] sm:$0xff]
      %v701 = vld [vmem:[%s171 + $0x87] sm:$0xff]
      %v702 = vld [vmem:[%s171 + $0x8f] sm:$0xff]
      %v703 = vld [vmem:[%s171 + $0xa7] sm:$0xff]
      %v704 = vld [vmem:[%s171 + $0xaf] sm:$0xff]
      %v705 = vld [vmem:[%s171 + $0xc7] sm:$0xff]
      %v706 = vld [vmem:[%s171 + $0xcf] sm:$0xff]
      %v707 = vld [vmem:[%s171 + $0xe7] sm:$0xff]
      %v708 = vld [vmem:[%s171 + $0xef] sm:$0xff]
      %v709 = vld [vmem:[%s171 + $0x107] sm:$0xff]
      %v710 = vld [vmem:[%s171 + $0x10f] sm:$0xff]
      %v711 = vld [vmem:[%s171 + $0x127] sm:$0xff]
      %v712 = vld [vmem:[%s171 + $0x12f] sm:$0xff]
      %v713 = vld [vmem:[%s171 + $0x147] sm:$0xff]
      %v714 = vld [vmem:[%s171 + $0x14f] sm:$0xff]
      %v715 = vld [vmem:[%s171 + $0x167] sm:$0xff]
      %v716 = vld [vmem:[%s171 + $0x16f] sm:$0xff]
      %v717 = vld [vmem:[%s171 + $0x187] sm:$0xff]
      %v718 = vld [vmem:[%s171 + $0x18f] sm:$0xff]
      %v719 = vld [vmem:[%s171 + $0x1a7] sm:$0xff]
      %v720 = vld [vmem:[%s171 + $0x1af] sm:$0xff]
      %v721 = vld [vmem:[%s171 + $0x1c7] sm:$0xff]
      %v722 = vld [vmem:[%s171 + $0x1cf] sm:$0xff]
      %v723 = vld [vmem:[%s171 + $0x1e7] sm:$0xff]
      %v724 = vld [vmem:[%s171 + $0x1ef] sm:$0xff]
      %v725 = vld [vmem:[%s171 + $0x207] sm:$0xff]
      %v726 = vld [vmem:[%s171 + $0x20f] sm:$0xff]
      %v727 = vld [vmem:[%s171 + $0x227] sm:$0xff]
      %v728 = vld [vmem:[%s171 + $0x22f] sm:$0xff]
      %v729 = vld [vmem:[%s171 + $0x247] sm:$0xff]
      %v730 = vld [vmem:[%s171 + $0x24f] sm:$0xff]
      %v731 = vld [vmem:[%s171 + $0x267] sm:$0xff]
      %v732 = vld [vmem:[%s171 + $0x26f] sm:$0xff]
      %v733 = vmax.f32 %v653, %v693
      %v734 = vmax.f32 %v654, %v694
      %v735 = vmax.f32 %v655, %v695
      %v736 = vmax.f32 %v656, %v696
      %v737 = vmax.f32 %v657, %v697
      %v738 = vmax.f32 %v658, %v698
      %v739 = vmax.f32 %v659, %v699
      %v740 = vmax.f32 %v660, %v700
      %v741 = vmax.f32 %v661, %v701
      %v742 = vmax.f32 %v662, %v702
      %v743 = vmax.f32 %v663, %v703
      %v744 = vmax.f32 %v664, %v704
      %v745 = vmax.f32 %v665, %v705
      %v746 = vmax.f32 %v666, %v706
      %v747 = vmax.f32 %v667, %v707
      %v748 = vmax.f32 %v668, %v708
      %v749 = vmax.f32 %v669, %v709
      %v750 = vmax.f32 %v670, %v710
      %v751 = vmax.f32 %v671, %v711
      %v752 = vmax.f32 %v672, %v712
      %v753 = vmax.f32 %v673, %v713
      %v754 = vmax.f32 %v674, %v714
      %v755 = vmax.f32 %v675, %v715
      %v756 = vmax.f32 %v676, %v716
      %v757 = vmax.f32 %v677, %v717
      %v758 = vmax.f32 %v678, %v718
      %v759 = vmax.f32 %v679, %v719
      %v760 = vmax.f32 %v680, %v720
      %v761 = vmax.f32 %v681, %v721
      %v762 = vmax.f32 %v682, %v722
      %v763 = vmax.f32 %v683, %v723
      %v764 = vmax.f32 %v684, %v724
      %v765 = vmax.f32 %v685, %v725
      %v766 = vmax.f32 %v686, %v726
      %v767 = vmax.f32 %v687, %v727
      %v768 = vmax.f32 %v688, %v728
      %v769 = vmax.f32 %v689, %v729
      %v770 = vmax.f32 %v690, %v730
      %v771 = vmax.f32 %v691, %v731
      %v772 = vmax.f32 %v692, %v732
      %v773 = vld [vmem:[%s171 + $0x8] sm:$0xff]
      %v774 = vld [vmem:[%s171 + $0x10] sm:$0xff]
      %v775 = vld [vmem:[%s171 + $0x28] sm:$0xff]
      %v776 = vld [vmem:[%s171 + $0x30] sm:$0xff]
      %v777 = vld [vmem:[%s171 + $0x48] sm:$0xff]
      %v778 = vld [vmem:[%s171 + $0x50] sm:$0xff]
      %v779 = vld [vmem:[%s171 + $0x68] sm:$0xff]
      %v780 = vld [vmem:[%s171 + $0x70] sm:$0xff]
      %v781 = vld [vmem:[%s171 + $0x88] sm:$0xff]
      %v782 = vld [vmem:[%s171 + $0x90] sm:$0xff]
      %v783 = vld [vmem:[%s171 + $0xa8] sm:$0xff]
      %v784 = vld [vmem:[%s171 + $0xb0] sm:$0xff]
      %v785 = vld [vmem:[%s171 + $0xc8] sm:$0xff]
      %v786 = vld [vmem:[%s171 + $0xd0] sm:$0xff]
      %v787 = vld [vmem:[%s171 + $0xe8] sm:$0xff]
      %v788 = vld [vmem:[%s171 + $0xf0] sm:$0xff]
      %v789 = vld [vmem:[%s171 + $0x108] sm:$0xff]
      %v790 = vld [vmem:[%s171 + $0x110] sm:$0xff]
      %v791 = vld [vmem:[%s171 + $0x128] sm:$0xff]
      %v792 = vld [vmem:[%s171 + $0x130] sm:$0xff]
      %v793 = vld [vmem:[%s171 + $0x148] sm:$0xff]
      %v794 = vld [vmem:[%s171 + $0x150] sm:$0xff]
      %v795 = vld [vmem:[%s171 + $0x168] sm:$0xff]
      %v796 = vld [vmem:[%s171 + $0x170] sm:$0xff]
      %v797 = vld [vmem:[%s171 + $0x188] sm:$0xff]
      %v798 = vld [vmem:[%s171 + $0x190] sm:$0xff]
      %v799 = vld [vmem:[%s171 + $0x1a8] sm:$0xff]
      %v800 = vld [vmem:[%s171 + $0x1b0] sm:$0xff]
      %v801 = vld [vmem:[%s171 + $0x1c8] sm:$0xff]
      %v802 = vld [vmem:[%s171 + $0x1d0] sm:$0xff]
      %v803 = vld [vmem:[%s171 + $0x1e8] sm:$0xff]
      %v804 = vld [vmem:[%s171 + $0x1f0] sm:$0xff]
      %v805 = vld [vmem:[%s171 + $0x208] sm:$0xff]
      %v806 = vld [vmem:[%s171 + $0x210] sm:$0xff]
      %v807 = vld [vmem:[%s171 + $0x228] sm:$0xff]
      %v808 = vld [vmem:[%s171 + $0x230] sm:$0xff]
      %v809 = vld [vmem:[%s171 + $0x248] sm:$0xff]
      %v810 = vld [vmem:[%s171 + $0x250] sm:$0xff]
      %v811 = vld [vmem:[%s171 + $0x268] sm:$0xff]
      %v812 = vld [vmem:[%s171 + $0x270] sm:$0xff]
      %v813 = vmax.f32 %v733, %v773
      %v814 = vmax.f32 %v734, %v774
      %v815 = vmax.f32 %v735, %v775
      %v816 = vmax.f32 %v736, %v776
      %v817 = vmax.f32 %v737, %v777
      %v818 = vmax.f32 %v738, %v778
      %v819 = vmax.f32 %v739, %v779
      %v820 = vmax.f32 %v740, %v780
      %v821 = vmax.f32 %v741, %v781
      %v822 = vmax.f32 %v742, %v782
      %v823 = vmax.f32 %v743, %v783
      %v824 = vmax.f32 %v744, %v784
      %v825 = vmax.f32 %v745, %v785
      %v826 = vmax.f32 %v746, %v786
      %v827 = vmax.f32 %v747, %v787
      %v828 = vmax.f32 %v748, %v788
      %v829 = vmax.f32 %v749, %v789
      %v830 = vmax.f32 %v750, %v790
      %v831 = vmax.f32 %v751, %v791
      %v832 = vmax.f32 %v752, %v792
      %v833 = vmax.f32 %v753, %v793
      %v834 = vmax.f32 %v754, %v794
      %v835 = vmax.f32 %v755, %v795
      %v836 = vmax.f32 %v756, %v796
      %v837 = vmax.f32 %v757, %v797
      %v838 = vmax.f32 %v758, %v798
      %v839 = vmax.f32 %v759, %v799
      %v840 = vmax.f32 %v760, %v800
      %v841 = vmax.f32 %v761, %v801
      %v842 = vmax.f32 %v762, %v802
      %v843 = vmax.f32 %v763, %v803
      %v844 = vmax.f32 %v764, %v804
      %v845 = vmax.f32 %v765, %v805
      %v846 = vmax.f32 %v766, %v806
      %v847 = vmax.f32 %v767, %v807
      %v848 = vmax.f32 %v768, %v808
      %v849 = vmax.f32 %v769, %v809
      %v850 = vmax.f32 %v770, %v810
      %v851 = vmax.f32 %v771, %v811
      %v852 = vmax.f32 %v772, %v812
      %v853 = vld [vmem:[%s171 + $0x9] sm:$0xff]
      %v854 = vld [vmem:[%s171 + $0x11] sm:$0xff]
      %v855 = vld [vmem:[%s171 + $0x29] sm:$0xff]
      %v856 = vld [vmem:[%s171 + $0x31] sm:$0xff]
      %v857 = vld [vmem:[%s171 + $0x49] sm:$0xff]
      %v858 = vld [vmem:[%s171 + $0x51] sm:$0xff]
      %v859 = vld [vmem:[%s171 + $0x69] sm:$0xff]
      %v860 = vld [vmem:[%s171 + $0x71] sm:$0xff]
      %v861 = vld [vmem:[%s171 + $0x89] sm:$0xff]
      %v862 = vld [vmem:[%s171 + $0x91] sm:$0xff]
      %v863 = vld [vmem:[%s171 + $0xa9] sm:$0xff]
      %v864 = vld [vmem:[%s171 + $0xb1] sm:$0xff]
      %v865 = vld [vmem:[%s171 + $0xc9] sm:$0xff]
      %v866 = vld [vmem:[%s171 + $0xd1] sm:$0xff]
      %v867 = vld [vmem:[%s171 + $0xe9] sm:$0xff]
      %v868 = vld [vmem:[%s171 + $0xf1] sm:$0xff]
      %v869 = vld [vmem:[%s171 + $0x109] sm:$0xff]
      %v870 = vld [vmem:[%s171 + $0x111] sm:$0xff]
      %v871 = vld [vmem:[%s171 + $0x129] sm:$0xff]
      %v872 = vld [vmem:[%s171 + $0x131] sm:$0xff]
      %v873 = vld [vmem:[%s171 + $0x149] sm:$0xff]
      %v874 = vld [vmem:[%s171 + $0x151] sm:$0xff]
      %v875 = vld [vmem:[%s171 + $0x169] sm:$0xff]
      %v876 = vld [vmem:[%s171 + $0x171] sm:$0xff]
      %v877 = vld [vmem:[%s171 + $0x189] sm:$0xff]
      %v878 = vld [vmem:[%s171 + $0x191] sm:$0xff]
      %v879 = vld [vmem:[%s171 + $0x1a9] sm:$0xff]
      %v880 = vld [vmem:[%s171 + $0x1b1] sm:$0xff]
      %v881 = vld [vmem:[%s171 + $0x1c9] sm:$0xff]
      %v882 = vld [vmem:[%s171 + $0x1d1] sm:$0xff]
      %v883 = vld [vmem:[%s171 + $0x1e9] sm:$0xff]
      %v884 = vld [vmem:[%s171 + $0x1f1] sm:$0xff]
      %v885 = vld [vmem:[%s171 + $0x209] sm:$0xff]
      %v886 = vld [vmem:[%s171 + $0x211] sm:$0xff]
      %v887 = vld [vmem:[%s171 + $0x229] sm:$0xff]
      %v888 = vld [vmem:[%s171 + $0x231] sm:$0xff]
      %v889 = vld [vmem:[%s171 + $0x249] sm:$0xff]
      %v890 = vld [vmem:[%s171 + $0x251] sm:$0xff]
      %v891 = vld [vmem:[%s171 + $0x269] sm:$0xff]
      %v892 = vld [vmem:[%s171 + $0x271] sm:$0xff]
      %v893 = vmax.f32 %v813, %v853
      %v894 = vmax.f32 %v814, %v854
      %v895 = vmax.f32 %v815, %v855
      %v896 = vmax.f32 %v816, %v856
      %v897 = vmax.f32 %v817, %v857
      %v898 = vmax.f32 %v818, %v858
      %v899 = vmax.f32 %v819, %v859
      %v900 = vmax.f32 %v820, %v860
      %v901 = vmax.f32 %v821, %v861
      %v902 = vmax.f32 %v822, %v862
      %v903 = vmax.f32 %v823, %v863
      %v904 = vmax.f32 %v824, %v864
      %v905 = vmax.f32 %v825, %v865
      %v906 = vmax.f32 %v826, %v866
      %v907 = vmax.f32 %v827, %v867
      %v908 = vmax.f32 %v828, %v868
      %v909 = vmax.f32 %v829, %v869
      %v910 = vmax.f32 %v830, %v870
      %v911 = vmax.f32 %v831, %v871
      %v912 = vmax.f32 %v832, %v872
      %v913 = vmax.f32 %v833, %v873
      %v914 = vmax.f32 %v834, %v874
      %v915 = vmax.f32 %v835, %v875
      %v916 = vmax.f32 %v836, %v876
      %v917 = vmax.f32 %v837, %v877
      %v918 = vmax.f32 %v838, %v878
      %v919 = vmax.f32 %v839, %v879
      %v920 = vmax.f32 %v840, %v880
      %v921 = vmax.f32 %v841, %v881
      %v922 = vmax.f32 %v842, %v882
      %v923 = vmax.f32 %v843, %v883
      %v924 = vmax.f32 %v844, %v884
      %v925 = vmax.f32 %v845, %v885
      %v926 = vmax.f32 %v846, %v886
      %v927 = vmax.f32 %v847, %v887
      %v928 = vmax.f32 %v848, %v888
      %v929 = vmax.f32 %v849, %v889
      %v930 = vmax.f32 %v850, %v890
      %v931 = vmax.f32 %v851, %v891
      %v932 = vmax.f32 %v852, %v892
      %v933 = vld [vmem:[%s171 + $0xa] sm:$0xff]
      %v934 = vld [vmem:[%s171 + $0x12] sm:$0xff]
      %v935 = vld [vmem:[%s171 + $0x2a] sm:$0xff]
      %v936 = vld [vmem:[%s171 + $0x32] sm:$0xff]
      %v937 = vld [vmem:[%s171 + $0x4a] sm:$0xff]
      %v938 = vld [vmem:[%s171 + $0x52] sm:$0xff]
      %v939 = vld [vmem:[%s171 + $0x6a] sm:$0xff]
      %v940 = vld [vmem:[%s171 + $0x72] sm:$0xff]
      %v941 = vld [vmem:[%s171 + $0x8a] sm:$0xff]
      %v942 = vld [vmem:[%s171 + $0x92] sm:$0xff]
      %v943 = vld [vmem:[%s171 + $0xaa] sm:$0xff]
      %v944 = vld [vmem:[%s171 + $0xb2] sm:$0xff]
      %v945 = vld [vmem:[%s171 + $0xca] sm:$0xff]
      %v946 = vld [vmem:[%s171 + $0xd2] sm:$0xff]
      %v947 = vld [vmem:[%s171 + $0xea] sm:$0xff]
      %v948 = vld [vmem:[%s171 + $0xf2] sm:$0xff]
      %v949 = vld [vmem:[%s171 + $0x10a] sm:$0xff]
      %v950 = vld [vmem:[%s171 + $0x112] sm:$0xff]
      %v951 = vld [vmem:[%s171 + $0x12a] sm:$0xff]
      %v952 = vld [vmem:[%s171 + $0x132] sm:$0xff]
      %v953 = vld [vmem:[%s171 + $0x14a] sm:$0xff]
      %v954 = vld [vmem:[%s171 + $0x152] sm:$0xff]
      %v955 = vld [vmem:[%s171 + $0x16a] sm:$0xff]
      %v956 = vld [vmem:[%s171 + $0x172] sm:$0xff]
      %v957 = vld [vmem:[%s171 + $0x18a] sm:$0xff]
      %v958 = vld [vmem:[%s171 + $0x192] sm:$0xff]
      %v959 = vld [vmem:[%s171 + $0x1aa] sm:$0xff]
      %v960 = vld [vmem:[%s171 + $0x1b2] sm:$0xff]
      %v961 = vld [vmem:[%s171 + $0x1ca] sm:$0xff]
      %v962 = vld [vmem:[%s171 + $0x1d2] sm:$0xff]
      %v963 = vld [vmem:[%s171 + $0x1ea] sm:$0xff]
      %v964 = vld [vmem:[%s171 + $0x1f2] sm:$0xff]
      %v965 = vld [vmem:[%s171 + $0x20a] sm:$0xff]
      %v966 = vld [vmem:[%s171 + $0x212] sm:$0xff]
      %v967 = vld [vmem:[%s171 + $0x22a] sm:$0xff]
      %v968 = vld [vmem:[%s171 + $0x232] sm:$0xff]
      %v969 = vld [vmem:[%s171 + $0x24a] sm:$0xff]
      %v970 = vld [vmem:[%s171 + $0x252] sm:$0xff]
      %v971 = vld [vmem:[%s171 + $0x26a] sm:$0xff]
      %v972 = vld [vmem:[%s171 + $0x272] sm:$0xff]
      %v973 = vmax.f32 %v893, %v933
      %v974 = vmax.f32 %v894, %v934
      %v975 = vmax.f32 %v895, %v935
      %v976 = vmax.f32 %v896, %v936
      %v977 = vmax.f32 %v897, %v937
      %v978 = vmax.f32 %v898, %v938
      %v979 = vmax.f32 %v899, %v939
      %v980 = vmax.f32 %v900, %v940
      %v981 = vmax.f32 %v901, %v941
      %v982 = vmax.f32 %v902, %v942
      %v983 = vmax.f32 %v903, %v943
      %v984 = vmax.f32 %v904, %v944
      %v985 = vmax.f32 %v905, %v945
      %v986 = vmax.f32 %v906, %v946
      %v987 = vmax.f32 %v907, %v947
      %v988 = vmax.f32 %v908, %v948
      %v989 = vmax.f32 %v909, %v949
      %v990 = vmax.f32 %v910, %v950
      %v991 = vmax.f32 %v911, %v951
      %v992 = vmax.f32 %v912, %v952
      %v993 = vmax.f32 %v913, %v953
      %v994 = vmax.f32 %v914, %v954
      %v995 = vmax.f32 %v915, %v955
      %v996 = vmax.f32 %v916, %v956
      %v997 = vmax.f32 %v917, %v957
      %v998 = vmax.f32 %v918, %v958
      %v999 = vmax.f32 %v919, %v959
      %v1000 = vmax.f32 %v920, %v960
      %v1001 = vmax.f32 %v921, %v961
      %v1002 = vmax.f32 %v922, %v962
      %v1003 = vmax.f32 %v923, %v963
      %v1004 = vmax.f32 %v924, %v964
      %v1005 = vmax.f32 %v925, %v965
      %v1006 = vmax.f32 %v926, %v966
      %v1007 = vmax.f32 %v927, %v967
      %v1008 = vmax.f32 %v928, %v968
      %v1009 = vmax.f32 %v929, %v969
      %v1010 = vmax.f32 %v930, %v970
      %v1011 = vmax.f32 %v931, %v971
      %v1012 = vmax.f32 %v932, %v972
      %1013 = vst.msk [vmem:[#allocation3] sm:$0xff] %vm172, %v973
      %1014 = vst.msk [vmem:[#allocation3 + $0x8] sm:$0xff] %vm172, %v974
      %1015 = vst.msk [vmem:[#allocation3 + $0x10] sm:$0xff] %vm172, %v975
      %1016 = vst.msk [vmem:[#allocation3 + $0x18] sm:$0xff] %vm172, %v976
      %1017 = vst.msk [vmem:[#allocation3 + $0x20] sm:$0xff] %vm172, %v977
      %1018 = vst.msk [vmem:[#allocation3 + $0x28] sm:$0xff] %vm172, %v978
      %1019 = vst.msk [vmem:[#allocation3 + $0x30] sm:$0xff] %vm172, %v979
      %1020 = vst.msk [vmem:[#allocation3 + $0x38] sm:$0xff] %vm172, %v980
      %1021 = vst.msk [vmem:[#allocation3 + $0x40] sm:$0xff] %vm172, %v981
      %1022 = vst.msk [vmem:[#allocation3 + $0x48] sm:$0xff] %vm172, %v982
      %1023 = vst.msk [vmem:[#allocation3 + $0x50] sm:$0xff] %vm172, %v983
      %1024 = vst.msk [vmem:[#allocation3 + $0x58] sm:$0xff] %vm172, %v984
      %1025 = vst.msk [vmem:[#allocation3 + $0x60] sm:$0xff] %vm172, %v985
      %1026 = vst.msk [vmem:[#allocation3 + $0x68] sm:$0xff] %vm172, %v986
      %1027 = vst.msk [vmem:[#allocation3 + $0x70] sm:$0xff] %vm172, %v987
      %1028 = vst.msk [vmem:[#allocation3 + $0x78] sm:$0xff] %vm172, %v988
      %1029 = vst.msk [vmem:[#allocation3 + $0x80] sm:$0xff] %vm172, %v989
      %1030 = vst.msk [vmem:[#allocation3 + $0x88] sm:$0xff] %vm172, %v990
      %1031 = vst.msk [vmem:[#allocation3 + $0x90] sm:$0xff] %vm172, %v991
      %1032 = vst.msk [vmem:[#allocation3 + $0x98] sm:$0xff] %vm172, %v992
      %1033 = vst.msk [vmem:[#allocation3 + $0xa0] sm:$0xff] %vm172, %v993
      %1034 = vst.msk [vmem:[#allocation3 + $0xa8] sm:$0xff] %vm172, %v994
      %1035 = vst.msk [vmem:[#allocation3 + $0xb0] sm:$0xff] %vm172, %v995
      %1036 = vst.msk [vmem:[#allocation3 + $0xb8] sm:$0xff] %vm172, %v996
      %1037 = vst.msk [vmem:[#allocation3 + $0xc0] sm:$0xff] %vm172, %v997
      %1038 = vst.msk [vmem:[#allocation3 + $0xc8] sm:$0xff] %vm172, %v998
      %1039 = vst.msk [vmem:[#allocation3 + $0xd0] sm:$0xff] %vm172, %v999
      %1040 = vst.msk [vmem:[#allocation3 + $0xd8] sm:$0xff] %vm172, %v1000
      %1041 = vst.msk [vmem:[#allocation3 + $0xe0] sm:$0xff] %vm172, %v1001
      %1042 = vst.msk [vmem:[#allocation3 + $0xe8] sm:$0xff] %vm172, %v1002
      %1043 = vst.msk [vmem:[#allocation3 + $0xf0] sm:$0xff] %vm172, %v1003
      %1044 = vst.msk [vmem:[#allocation3 + $0xf8] sm:$0xff] %vm172, %v1004
      %1045 = vst.msk [vmem:[#allocation3 + $0x100] sm:$0xff] %vm172, %v1005
      %1046 = vst.msk [vmem:[#allocation3 + $0x108] sm:$0xff] %vm172, %v1006
      %1047 = vst.msk [vmem:[#allocation3 + $0x110] sm:$0xff] %vm172, %v1007
      %1048 = vst.msk [vmem:[#allocation3 + $0x118] sm:$0xff] %vm172, %v1008
      %1049 = vst.msk [vmem:[#allocation3 + $0x120] sm:$0xff] %vm172, %v1009
      %1050 = vst.msk [vmem:[#allocation3 + $0x128] sm:$0xff] %vm172, %v1010
      %1051 = vst.msk [vmem:[#allocation3 + $0x130] sm:$0xff] %vm172, %v1011
      %1052 = vst.msk [vmem:[#allocation3 + $0x138] sm:$0xff] %vm172, %v1012
      %v1053 = vld [vmem:[#allocation3] sm:$0xff]
      %v1054 = vld [vmem:[#allocation3 + $0x8] sm:$0xff]
      %v1055 = vld [vmem:[#allocation3 + $0x10] sm:$0xff]
      %v1056 = vld [vmem:[#allocation3 + $0x18] sm:$0xff]
      %v1057 = vld [vmem:[#allocation3 + $0x20] sm:$0xff]
      %v1058 = vld [vmem:[#allocation3 + $0x28] sm:$0xff]
      %v1059 = vld [vmem:[#allocation3 + $0x30] sm:$0xff]
      %v1060 = vld [vmem:[#allocation3 + $0x38] sm:$0xff]
      %v1061 = vld [vmem:[#allocation3 + $0x40] sm:$0xff]
      %v1062 = vld [vmem:[#allocation3 + $0x48] sm:$0xff]
      %v1063 = vld [vmem:[#allocation3 + $0x50] sm:$0xff]
      %v1064 = vld [vmem:[#allocation3 + $0x58] sm:$0xff]
      %v1065 = vld [vmem:[#allocation3 + $0x60] sm:$0xff]
      %v1066 = vld [vmem:[#allocation3 + $0x68] sm:$0xff]
      %v1067 = vld [vmem:[#allocation3 + $0x70] sm:$0xff]
      %v1068 = vld [vmem:[#allocation3 + $0x78] sm:$0xff]
      %v1069 = vld [vmem:[#allocation3 + $0x80] sm:$0xff]
      %v1070 = vld [vmem:[#allocation3 + $0x88] sm:$0xff]
      %v1071 = vld [vmem:[#allocation3 + $0x90] sm:$0xff]
      %v1072 = vld [vmem:[#allocation3 + $0x98] sm:$0xff]
      %v1073 = vld [vmem:[#allocation3 + $0xa0] sm:$0xff]
      %v1074 = vld [vmem:[#allocation3 + $0xa8] sm:$0xff]
      %v1075 = vld [vmem:[#allocation3 + $0xb0] sm:$0xff]
      %v1076 = vld [vmem:[#allocation3 + $0xb8] sm:$0xff]
      %v1077 = vld [vmem:[#allocation3 + $0xc0] sm:$0xff]
      %v1078 = vld [vmem:[#allocation3 + $0xc8] sm:$0xff]
      %v1079 = vld [vmem:[#allocation3 + $0xd0] sm:$0xff]
      %v1080 = vld [vmem:[#allocation3 + $0xd8] sm:$0xff]
      %v1081 = vld [vmem:[#allocation3 + $0xe0] sm:$0xff]
      %v1082 = vld [vmem:[#allocation3 + $0xe8] sm:$0xff]
      %v1083 = vld [vmem:[#allocation3 + $0xf0] sm:$0xff]
      %v1084 = vld [vmem:[#allocation3 + $0xf8] sm:$0xff]
      %s1085 = scalar_lea.vmem [#allocation3], 16
      %v1086 = vld [vmem:[%s1085] sm:$0xff]
      %v1087 = vld [vmem:[%s1085 + $0x8] sm:$0xff]
      %v1088 = vld [vmem:[%s1085 + $0x10] sm:$0xff]
      %v1089 = vld [vmem:[%s1085 + $0x18] sm:$0xff]
      %v1090 = vld [vmem:[%s1085 + $0x20] sm:$0xff]
      %v1091 = vld [vmem:[%s1085 + $0x28] sm:$0xff]
      %v1092 = vld [vmem:[%s1085 + $0x30] sm:$0xff]
      %v1093 = vld [vmem:[%s1085 + $0x38] sm:$0xff]
      %v1094 = vld [vmem:[%s1085 + $0x40] sm:$0xff]
      %v1095 = vld [vmem:[%s1085 + $0x48] sm:$0xff]
      %v1096 = vld [vmem:[%s1085 + $0x50] sm:$0xff]
      %v1097 = vld [vmem:[%s1085 + $0x58] sm:$0xff]
      %v1098 = vld [vmem:[%s1085 + $0x60] sm:$0xff]
      %v1099 = vld [vmem:[%s1085 + $0x68] sm:$0xff]
      %v1100 = vld [vmem:[%s1085 + $0x70] sm:$0xff]
      %v1101 = vld [vmem:[%s1085 + $0x78] sm:$0xff]
      %v1102 = vld [vmem:[%s1085 + $0x80] sm:$0xff]
      %v1103 = vld [vmem:[%s1085 + $0x88] sm:$0xff]
      %v1104 = vld [vmem:[%s1085 + $0x90] sm:$0xff]
      %v1105 = vld [vmem:[%s1085 + $0x98] sm:$0xff]
      %v1106 = vld [vmem:[%s1085 + $0xa0] sm:$0xff]
      %v1107 = vld [vmem:[%s1085 + $0xa8] sm:$0xff]
      %v1108 = vld [vmem:[%s1085 + $0xb0] sm:$0xff]
      %v1109 = vld [vmem:[%s1085 + $0xb8] sm:$0xff]
      %v1110 = vld [vmem:[%s1085 + $0xc0] sm:$0xff]
      %v1111 = vld [vmem:[%s1085 + $0xc8] sm:$0xff]
      %v1112 = vld [vmem:[%s1085 + $0xd0] sm:$0xff]
      %v1113 = vld [vmem:[%s1085 + $0xd8] sm:$0xff]
      %v1114 = vld [vmem:[%s1085 + $0xe0] sm:$0xff]
      %v1115 = vld [vmem:[%s1085 + $0xe8] sm:$0xff]
      %v1116 = vld [vmem:[%s1085 + $0xf0] sm:$0xff]
      %v1117 = vld [vmem:[%s1085 + $0xf8] sm:$0xff]
      %v1118 = vmax.f32 %v1053, %v1086
      %v1119 = vmax.f32 %v1054, %v1087
      %v1120 = vmax.f32 %v1055, %v1088
      %v1121 = vmax.f32 %v1056, %v1089
      %v1122 = vmax.f32 %v1057, %v1090
      %v1123 = vmax.f32 %v1058, %v1091
      %v1124 = vmax.f32 %v1059, %v1092
      %v1125 = vmax.f32 %v1060, %v1093
      %v1126 = vmax.f32 %v1061, %v1094
      %v1127 = vmax.f32 %v1062, %v1095
      %v1128 = vmax.f32 %v1063, %v1096
      %v1129 = vmax.f32 %v1064, %v1097
      %v1130 = vmax.f32 %v1065, %v1098
      %v1131 = vmax.f32 %v1066, %v1099
      %v1132 = vmax.f32 %v1067, %v1100
      %v1133 = vmax.f32 %v1068, %v1101
      %v1134 = vmax.f32 %v1069, %v1102
      %v1135 = vmax.f32 %v1070, %v1103
      %v1136 = vmax.f32 %v1071, %v1104
      %v1137 = vmax.f32 %v1072, %v1105
      %v1138 = vmax.f32 %v1073, %v1106
      %v1139 = vmax.f32 %v1074, %v1107
      %v1140 = vmax.f32 %v1075, %v1108
      %v1141 = vmax.f32 %v1076, %v1109
      %v1142 = vmax.f32 %v1077, %v1110
      %v1143 = vmax.f32 %v1078, %v1111
      %v1144 = vmax.f32 %v1079, %v1112
      %v1145 = vmax.f32 %v1080, %v1113
      %v1146 = vmax.f32 %v1081, %v1114
      %v1147 = vmax.f32 %v1082, %v1115
      %v1148 = vmax.f32 %v1083, %v1116
      %v1149 = vmax.f32 %v1084, %v1117
      %s1150 = scalar_lea.vmem [#allocation3], 32
      %v1151 = vld [vmem:[%s1150] sm:$0xff]
      %v1152 = vld [vmem:[%s1150 + $0x8] sm:$0xff]
      %v1153 = vld [vmem:[%s1150 + $0x10] sm:$0xff]
      %v1154 = vld [vmem:[%s1150 + $0x18] sm:$0xff]
      %v1155 = vld [vmem:[%s1150 + $0x20] sm:$0xff]
      %v1156 = vld [vmem:[%s1150 + $0x28] sm:$0xff]
      %v1157 = vld [vmem:[%s1150 + $0x30] sm:$0xff]
      %v1158 = vld [vmem:[%s1150 + $0x38] sm:$0xff]
      %v1159 = vld [vmem:[%s1150 + $0x40] sm:$0xff]
      %v1160 = vld [vmem:[%s1150 + $0x48] sm:$0xff]
      %v1161 = vld [vmem:[%s1150 + $0x50] sm:$0xff]
      %v1162 = vld [vmem:[%s1150 + $0x58] sm:$0xff]
      %v1163 = vld [vmem:[%s1150 + $0x60] sm:$0xff]
      %v1164 = vld [vmem:[%s1150 + $0x68] sm:$0xff]
      %v1165 = vld [vmem:[%s1150 + $0x70] sm:$0xff]
      %v1166 = vld [vmem:[%s1150 + $0x78] sm:$0xff]
      %v1167 = vld [vmem:[%s1150 + $0x80] sm:$0xff]
      %v1168 = vld [vmem:[%s1150 + $0x88] sm:$0xff]
      %v1169 = vld [vmem:[%s1150 + $0x90] sm:$0xff]
      %v1170 = vld [vmem:[%s1150 + $0x98] sm:$0xff]
      %v1171 = vld [vmem:[%s1150 + $0xa0] sm:$0xff]
      %v1172 = vld [vmem:[%s1150 + $0xa8] sm:$0xff]
      %v1173 = vld [vmem:[%s1150 + $0xb0] sm:$0xff]
      %v1174 = vld [vmem:[%s1150 + $0xb8] sm:$0xff]
      %v1175 = vld [vmem:[%s1150 + $0xc0] sm:$0xff]
      %v1176 = vld [vmem:[%s1150 + $0xc8] sm:$0xff]
      %v1177 = vld [vmem:[%s1150 + $0xd0] sm:$0xff]
      %v1178 = vld [vmem:[%s1150 + $0xd8] sm:$0xff]
      %v1179 = vld [vmem:[%s1150 + $0xe0] sm:$0xff]
      %v1180 = vld [vmem:[%s1150 + $0xe8] sm:$0xff]
      %v1181 = vld [vmem:[%s1150 + $0xf0] sm:$0xff]
      %v1182 = vld [vmem:[%s1150 + $0xf8] sm:$0xff]
      %v1183 = vmax.f32 %v1118, %v1151
      %v1184 = vmax.f32 %v1119, %v1152
      %v1185 = vmax.f32 %v1120, %v1153
      %v1186 = vmax.f32 %v1121, %v1154
      %v1187 = vmax.f32 %v1122, %v1155
      %v1188 = vmax.f32 %v1123, %v1156
      %v1189 = vmax.f32 %v1124, %v1157
      %v1190 = vmax.f32 %v1125, %v1158
      %v1191 = vmax.f32 %v1126, %v1159
      %v1192 = vmax.f32 %v1127, %v1160
      %v1193 = vmax.f32 %v1128, %v1161
      %v1194 = vmax.f32 %v1129, %v1162
      %v1195 = vmax.f32 %v1130, %v1163
      %v1196 = vmax.f32 %v1131, %v1164
      %v1197 = vmax.f32 %v1132, %v1165
      %v1198 = vmax.f32 %v1133, %v1166
      %v1199 = vmax.f32 %v1134, %v1167
      %v1200 = vmax.f32 %v1135, %v1168
      %v1201 = vmax.f32 %v1136, %v1169
      %v1202 = vmax.f32 %v1137, %v1170
      %v1203 = vmax.f32 %v1138, %v1171
      %v1204 = vmax.f32 %v1139, %v1172
      %v1205 = vmax.f32 %v1140, %v1173
      %v1206 = vmax.f32 %v1141, %v1174
      %v1207 = vmax.f32 %v1142, %v1175
      %v1208 = vmax.f32 %v1143, %v1176
      %v1209 = vmax.f32 %v1144, %v1177
      %v1210 = vmax.f32 %v1145, %v1178
      %v1211 = vmax.f32 %v1146, %v1179
      %v1212 = vmax.f32 %v1147, %v1180
      %v1213 = vmax.f32 %v1148, %v1181
      %v1214 = vmax.f32 %v1149, %v1182
      %s1215 = scalar_lea.vmem [#allocation3], 48
      %v1216 = vld [vmem:[%s1215] sm:$0xff]
      %v1217 = vld [vmem:[%s1215 + $0x8] sm:$0xff]
      %v1218 = vld [vmem:[%s1215 + $0x10] sm:$0xff]
      %v1219 = vld [vmem:[%s1215 + $0x18] sm:$0xff]
      %v1220 = vld [vmem:[%s1215 + $0x20] sm:$0xff]
      %v1221 = vld [vmem:[%s1215 + $0x28] sm:$0xff]
      %v1222 = vld [vmem:[%s1215 + $0x30] sm:$0xff]
      %v1223 = vld [vmem:[%s1215 + $0x38] sm:$0xff]
      %v1224 = vld [vmem:[%s1215 + $0x40] sm:$0xff]
      %v1225 = vld [vmem:[%s1215 + $0x48] sm:$0xff]
      %v1226 = vld [vmem:[%s1215 + $0x50] sm:$0xff]
      %v1227 = vld [vmem:[%s1215 + $0x58] sm:$0xff]
      %v1228 = vld [vmem:[%s1215 + $0x60] sm:$0xff]
      %v1229 = vld [vmem:[%s1215 + $0x68] sm:$0xff]
      %v1230 = vld [vmem:[%s1215 + $0x70] sm:$0xff]
      %v1231 = vld [vmem:[%s1215 + $0x78] sm:$0xff]
      %v1232 = vld [vmem:[%s1215 + $0x80] sm:$0xff]
      %v1233 = vld [vmem:[%s1215 + $0x88] sm:$0xff]
      %v1234 = vld [vmem:[%s1215 + $0x90] sm:$0xff]
      %v1235 = vld [vmem:[%s1215 + $0x98] sm:$0xff]
      %v1236 = vld [vmem:[%s1215 + $0xa0] sm:$0xff]
      %v1237 = vld [vmem:[%s1215 + $0xa8] sm:$0xff]
      %v1238 = vld [vmem:[%s1215 + $0xb0] sm:$0xff]
      %v1239 = vld [vmem:[%s1215 + $0xb8] sm:$0xff]
      %v1240 = vld [vmem:[%s1215 + $0xc0] sm:$0xff]
      %v1241 = vld [vmem:[%s1215 + $0xc8] sm:$0xff]
      %v1242 = vld [vmem:[%s1215 + $0xd0] sm:$0xff]
      %v1243 = vld [vmem:[%s1215 + $0xd8] sm:$0xff]
      %v1244 = vld [vmem:[%s1215 + $0xe0] sm:$0xff]
      %v1245 = vld [vmem:[%s1215 + $0xe8] sm:$0xff]
      %v1246 = vld [vmem:[%s1215 + $0xf0] sm:$0xff]
      %v1247 = vld [vmem:[%s1215 + $0xf8] sm:$0xff]
      %v1248 = vmax.f32 %v1183, %v1216
      %v1249 = vmax.f32 %v1184, %v1217
      %v1250 = vmax.f32 %v1185, %v1218
      %v1251 = vmax.f32 %v1186, %v1219
      %v1252 = vmax.f32 %v1187, %v1220
      %v1253 = vmax.f32 %v1188, %v1221
      %v1254 = vmax.f32 %v1189, %v1222
      %v1255 = vmax.f32 %v1190, %v1223
      %v1256 = vmax.f32 %v1191, %v1224
      %v1257 = vmax.f32 %v1192, %v1225
      %v1258 = vmax.f32 %v1193, %v1226
      %v1259 = vmax.f32 %v1194, %v1227
      %v1260 = vmax.f32 %v1195, %v1228
      %v1261 = vmax.f32 %v1196, %v1229
      %v1262 = vmax.f32 %v1197, %v1230
      %v1263 = vmax.f32 %v1198, %v1231
      %v1264 = vmax.f32 %v1199, %v1232
      %v1265 = vmax.f32 %v1200, %v1233
      %v1266 = vmax.f32 %v1201, %v1234
      %v1267 = vmax.f32 %v1202, %v1235
      %v1268 = vmax.f32 %v1203, %v1236
      %v1269 = vmax.f32 %v1204, %v1237
      %v1270 = vmax.f32 %v1205, %v1238
      %v1271 = vmax.f32 %v1206, %v1239
      %v1272 = vmax.f32 %v1207, %v1240
      %v1273 = vmax.f32 %v1208, %v1241
      %v1274 = vmax.f32 %v1209, %v1242
      %v1275 = vmax.f32 %v1210, %v1243
      %v1276 = vmax.f32 %v1211, %v1244
      %v1277 = vmax.f32 %v1212, %v1245
      %v1278 = vmax.f32 %v1213, %v1246
      %v1279 = vmax.f32 %v1214, %v1247
      %s1280 = scalar_lea.vmem [#allocation3], 64
      %v1281 = vld [vmem:[%s1280] sm:$0xff]
      %v1282 = vld [vmem:[%s1280 + $0x8] sm:$0xff]
      %v1283 = vld [vmem:[%s1280 + $0x10] sm:$0xff]
      %v1284 = vld [vmem:[%s1280 + $0x18] sm:$0xff]
      %v1285 = vld [vmem:[%s1280 + $0x20] sm:$0xff]
      %v1286 = vld [vmem:[%s1280 + $0x28] sm:$0xff]
      %v1287 = vld [vmem:[%s1280 + $0x30] sm:$0xff]
      %v1288 = vld [vmem:[%s1280 + $0x38] sm:$0xff]
      %v1289 = vld [vmem:[%s1280 + $0x40] sm:$0xff]
      %v1290 = vld [vmem:[%s1280 + $0x48] sm:$0xff]
      %v1291 = vld [vmem:[%s1280 + $0x50] sm:$0xff]
      %v1292 = vld [vmem:[%s1280 + $0x58] sm:$0xff]
      %v1293 = vld [vmem:[%s1280 + $0x60] sm:$0xff]
      %v1294 = vld [vmem:[%s1280 + $0x68] sm:$0xff]
      %v1295 = vld [vmem:[%s1280 + $0x70] sm:$0xff]
      %v1296 = vld [vmem:[%s1280 + $0x78] sm:$0xff]
      %v1297 = vld [vmem:[%s1280 + $0x80] sm:$0xff]
      %v1298 = vld [vmem:[%s1280 + $0x88] sm:$0xff]
      %v1299 = vld [vmem:[%s1280 + $0x90] sm:$0xff]
      %v1300 = vld [vmem:[%s1280 + $0x98] sm:$0xff]
      %v1301 = vld [vmem:[%s1280 + $0xa0] sm:$0xff]
      %v1302 = vld [vmem:[%s1280 + $0xa8] sm:$0xff]
      %v1303 = vld [vmem:[%s1280 + $0xb0] sm:$0xff]
      %v1304 = vld [vmem:[%s1280 + $0xb8] sm:$0xff]
      %v1305 = vld [vmem:[%s1280 + $0xc0] sm:$0xff]
      %v1306 = vld [vmem:[%s1280 + $0xc8] sm:$0xff]
      %v1307 = vld [vmem:[%s1280 + $0xd0] sm:$0xff]
      %v1308 = vld [vmem:[%s1280 + $0xd8] sm:$0xff]
      %v1309 = vld [vmem:[%s1280 + $0xe0] sm:$0xff]
      %v1310 = vld [vmem:[%s1280 + $0xe8] sm:$0xff]
      %v1311 = vld [vmem:[%s1280 + $0xf0] sm:$0xff]
      %v1312 = vld [vmem:[%s1280 + $0xf8] sm:$0xff]
      %v1313 = vmax.f32 %v1248, %v1281
      %v1314 = vmax.f32 %v1249, %v1282
      %v1315 = vmax.f32 %v1250, %v1283
      %v1316 = vmax.f32 %v1251, %v1284
      %v1317 = vmax.f32 %v1252, %v1285
      %v1318 = vmax.f32 %v1253, %v1286
      %v1319 = vmax.f32 %v1254, %v1287
      %v1320 = vmax.f32 %v1255, %v1288
      %v1321 = vmax.f32 %v1256, %v1289
      %v1322 = vmax.f32 %v1257, %v1290
      %v1323 = vmax.f32 %v1258, %v1291
      %v1324 = vmax.f32 %v1259, %v1292
      %v1325 = vmax.f32 %v1260, %v1293
      %v1326 = vmax.f32 %v1261, %v1294
      %v1327 = vmax.f32 %v1262, %v1295
      %v1328 = vmax.f32 %v1263, %v1296
      %v1329 = vmax.f32 %v1264, %v1297
      %v1330 = vmax.f32 %v1265, %v1298
      %v1331 = vmax.f32 %v1266, %v1299
      %v1332 = vmax.f32 %v1267, %v1300
      %v1333 = vmax.f32 %v1268, %v1301
      %v1334 = vmax.f32 %v1269, %v1302
      %v1335 = vmax.f32 %v1270, %v1303
      %v1336 = vmax.f32 %v1271, %v1304
      %v1337 = vmax.f32 %v1272, %v1305
      %v1338 = vmax.f32 %v1273, %v1306
      %v1339 = vmax.f32 %v1274, %v1307
      %v1340 = vmax.f32 %v1275, %v1308
      %v1341 = vmax.f32 %v1276, %v1309
      %v1342 = vmax.f32 %v1277, %v1310
      %v1343 = vmax.f32 %v1278, %v1311
      %v1344 = vmax.f32 %v1279, %v1312
      %v1345 = vld [vmem:[#allocation4] sm:$0xff]
      %v1346 = vld [vmem:[#allocation4 + $0x8] sm:$0xff]
      %v1347 = vld [vmem:[#allocation4 + $0x10] sm:$0xff]
      %v1348 = vld [vmem:[#allocation4 + $0x18] sm:$0xff]
      %v1349 = vld [vmem:[#allocation4 + $0x20] sm:$0xff]
      %v1350 = vld [vmem:[#allocation4 + $0x28] sm:$0xff]
      %v1351 = vld [vmem:[#allocation4 + $0x30] sm:$0xff]
      %v1352 = vld [vmem:[#allocation4 + $0x38] sm:$0xff]
      %v1353 = vld [vmem:[#allocation4 + $0x40] sm:$0xff]
      %v1354 = vld [vmem:[#allocation4 + $0x48] sm:$0xff]
      %v1355 = vld [vmem:[#allocation4 + $0x50] sm:$0xff]
      %v1356 = vld [vmem:[#allocation4 + $0x58] sm:$0xff]
      %v1357 = vld [vmem:[#allocation4 + $0x60] sm:$0xff]
      %v1358 = vld [vmem:[#allocation4 + $0x68] sm:$0xff]
      %v1359 = vld [vmem:[#allocation4 + $0x70] sm:$0xff]
      %v1360 = vld [vmem:[#allocation4 + $0x78] sm:$0xff]
      %v1361 = vld [vmem:[#allocation4 + $0x80] sm:$0xff]
      %v1362 = vld [vmem:[#allocation4 + $0x88] sm:$0xff]
      %v1363 = vld [vmem:[#allocation4 + $0x90] sm:$0xff]
      %v1364 = vld [vmem:[#allocation4 + $0x98] sm:$0xff]
      %v1365 = vld [vmem:[#allocation4 + $0xa0] sm:$0xff]
      %v1366 = vld [vmem:[#allocation4 + $0xa8] sm:$0xff]
      %v1367 = vld [vmem:[#allocation4 + $0xb0] sm:$0xff]
      %v1368 = vld [vmem:[#allocation4 + $0xb8] sm:$0xff]
      %v1369 = vld [vmem:[#allocation4 + $0xc0] sm:$0xff]
      %v1370 = vld [vmem:[#allocation4 + $0xc8] sm:$0xff]
      %v1371 = vld [vmem:[#allocation4 + $0xd0] sm:$0xff]
      %v1372 = vld [vmem:[#allocation4 + $0xd8] sm:$0xff]
      %v1373 = vld [vmem:[#allocation4 + $0xe0] sm:$0xff]
      %v1374 = vld [vmem:[#allocation4 + $0xe8] sm:$0xff]
      %v1375 = vld [vmem:[#allocation4 + $0xf0] sm:$0xff]
      %v1376 = vld [vmem:[#allocation4 + $0xf8] sm:$0xff]
      %s1377 = scalar_lea.vmem %s1, 4
      %v1378 = vld [vmem:[%s1377] sm:$0xf]
      %v1380 = vsel %vm172, %v1313, 0
      %v1383 = vsel %vm172, %v1314, 0
      %v1386 = vsel %vm172, %v1315, 0
      %v1389 = vsel %vm172, %v1316, 0
      %v1392 = vsel %vm172, %v1317, 0
      %v1395 = vsel %vm172, %v1318, 0
      %v1398 = vsel %vm172, %v1319, 0
      %v1401 = vsel %vm172, %v1320, 0
      %v1404 = vsel %vm172, %v1321, 0
      %v1407 = vsel %vm172, %v1322, 0
      %v1410 = vsel %vm172, %v1323, 0
      %v1413 = vsel %vm172, %v1324, 0
      %v1416 = vsel %vm172, %v1325, 0
      %v1419 = vsel %vm172, %v1326, 0
      %v1422 = vsel %vm172, %v1327, 0
      %v1425 = vsel %vm172, %v1328, 0
      %v1428 = vsel %vm172, %v1329, 0
      %v1431 = vsel %vm172, %v1330, 0
      %v1434 = vsel %vm172, %v1331, 0
      %v1437 = vsel %vm172, %v1332, 0
      %v1440 = vsel %vm172, %v1333, 0
      %v1443 = vsel %vm172, %v1334, 0
      %v1446 = vsel %vm172, %v1335, 0
      %v1449 = vsel %vm172, %v1336, 0
      %v1452 = vsel %vm172, %v1337, 0
      %v1455 = vsel %vm172, %v1338, 0
      %v1458 = vsel %vm172, %v1339, 0
      %v1461 = vsel %vm172, %v1340, 0
      %v1464 = vsel %vm172, %v1341, 0
      %v1467 = vsel %vm172, %v1342, 0
      %v1470 = vsel %vm172, %v1343, 0
      %v1473 = vsel %vm172, %v1344, 0
      %v1476 = vsel %vm391, %v1378, 0
      %1478 = vmatprep.subr.mxu0 0.0
      %1479 = vmatpush1.msra.mxu0 %v1476
      %1480 = vmatprep.subr.mxu0 0.0
      %1481 = vmatpush1.msra.mxu0 0.0
      %1482 = vmatprep.subr.mxu0 0.0
      %1483 = vmatpush1.msra.mxu0 0.0
      %1484 = vmatprep.subr.mxu0 0.0
      %1485 = vmatpush1.msra.mxu0 0.0
      %1486 = vmatprep.subr.mxu0 0.0
      %1487 = vmatpush1.msra.mxu0 0.0
      %1488 = vmatprep.subr.mxu0 0.0
      %1489 = vmatpush1.msra.mxu0 0.0
      %1490 = vmatprep.subr.mxu0 0.0
      %1491 = vmatpush1.msra.mxu0 0.0
      %1492 = vmatprep.subr.mxu0 0.0
      %1493 = vmatpush1.msra.mxu0 0.0
      %1494 = vmatprep.subr.mxu0 0.0
      %1495 = vmatpush1.msra.mxu0 0.0
      %1496 = vmatprep.subr.mxu0 0.0
      %1497 = vmatpush1.msra.mxu0 0.0
      %1498 = vmatprep.subr.mxu0 0.0
      %1499 = vmatpush1.msra.mxu0 0.0
      %1500 = vmatprep.subr.mxu0 0.0
      %1501 = vmatpush1.msra.mxu0 0.0
      %1502 = vmatprep.subr.mxu0 0.0
      %1503 = vmatpush1.msra.mxu0 0.0
      %1504 = vmatprep.subr.mxu0 0.0
      %1505 = vmatpush1.msra.mxu0 0.0
      %1506 = vmatprep.subr.mxu0 0.0
      %1507 = vmatpush1.msra.mxu0 0.0
      %1508 = vmatprep.subr.mxu0 0.0
      %1509 = vmatpush1.msra.mxu0 0.0
      %1510 = vmatprep.subr.mxu0 0.0
      %1511 = vmatpush1.msra.mxu0 0.0
      %1512 = vmatprep.subr.mxu0 0.0
      %1513 = vmatpush1.msra.mxu0 0.0
      %1514 = vmatprep.subr.mxu0 0.0
      %1515 = vmatpush1.msra.mxu0 0.0
      %1516 = vmatprep.subr.mxu0 0.0
      %1517 = vmatpush1.msra.mxu0 0.0
      %1518 = vmatprep.subr.mxu0 0.0
      %1519 = vmatpush1.msra.mxu0 0.0
      %1520 = vmatprep.subr.mxu0 0.0
      %1521 = vmatpush1.msra.mxu0 0.0
      %1522 = vmatprep.subr.mxu0 0.0
      %1523 = vmatpush1.msra.mxu0 0.0
      %1524 = vmatprep.subr.mxu0 0.0
      %1525 = vmatpush1.msra.mxu0 0.0
      %1526 = vmatprep.subr.mxu0 0.0
      %1527 = vmatpush1.msra.mxu0 0.0
      %1528 = vmatprep.subr.mxu0 0.0
      %1529 = vmatpush1.msra.mxu0 0.0
      %1530 = vmatprep.subr.mxu0 0.0
      %1531 = vmatpush1.msra.mxu0 0.0
      %1532 = vmatprep.subr.mxu0 0.0
      %1533 = vmatpush1.msra.mxu0 0.0
      %1534 = vmatprep.subr.mxu0 0.0
      %1535 = vmatpush1.msra.mxu0 0.0
      %1536 = vmatprep.subr.mxu0 0.0
      %1537 = vmatpush1.msra.mxu0 0.0
      %1538 = vmatprep.subr.mxu0 0.0
      %1539 = vmatpush1.msra.mxu0 0.0
      %1540 = vmatprep.subr.mxu0 0.0
      %1541 = vmatpush1.msra.mxu0 0.0
      %1542 = vmatprep.mubr.f32.mxu0 0.0
      %1543 = vmatmul.mubr.f32.gmra.mrb[0].mxu0 %v1380
      %v1544 = vpop.f32.mrb[0].mxu0
      %v1545 = vadd.f32 0.0, %v1544
      %v1546 = vpop.f32.mrb[0].mxu0
      %1547 = vmatprep.mubr.f32.mxu0 0.0
      %1548 = vmatmul.mubr.f32.gmra.mrb[0].mxu0 %v1383
      %v1549 = vpop.f32.mrb[0].mxu0
      %v1550 = vadd.f32 0.0, %v1549
      %v1551 = vpop.f32.mrb[0].mxu0
      %1552 = vmatprep.mubr.f32.mxu0 0.0
      %1553 = vmatmul.mubr.f32.gmra.mrb[0].mxu0 %v1386
      %v1554 = vpop.f32.mrb[0].mxu0
      %v1555 = vadd.f32 0.0, %v1554
      %v1556 = vpop.f32.mrb[0].mxu0
      %1557 = vmatprep.mubr.f32.mxu0 0.0
      %1558 = vmatmul.mubr.f32.gmra.mrb[0].mxu0 %v1389
      %v1559 = vpop.f32.mrb[0].mxu0
      %v1560 = vadd.f32 0.0, %v1559
      %v1561 = vpop.f32.mrb[0].mxu0
      %1562 = vmatprep.mubr.f32.mxu0 0.0
      %1563 = vmatmul.mubr.f32.gmra.mrb[0].mxu0 %v1392
      %v1564 = vpop.f32.mrb[0].mxu0
      %v1565 = vadd.f32 0.0, %v1564
      %v1566 = vpop.f32.mrb[0].mxu0
      %1567 = vmatprep.mubr.f32.mxu0 0.0
      %1568 = vmatmul.mubr.f32.gmra.mrb[0].mxu0 %v1395
      %v1569 = vpop.f32.mrb[0].mxu0
      %v1570 = vadd.f32 0.0, %v1569
      %v1571 = vpop.f32.mrb[0].mxu0
      %1572 = vmatprep.mubr.f32.mxu0 0.0
      %1573 = vmatmul.mubr.f32.gmra.mrb[0].mxu0 %v1398
      %v1574 = vpop.f32.mrb[0].mxu0
      %v1575 = vadd.f32 0.0, %v1574
      %v1576 = vpop.f32.mrb[0].mxu0
      %1577 = vmatprep.mubr.f32.mxu0 0.0
      %1578 = vmatmul.mubr.f32.gmra.mrb[0].mxu0 %v1401
      %v1579 = vpop.f32.mrb[0].mxu0
      %v1580 = vadd.f32 0.0, %v1579
      %v1581 = vpop.f32.mrb[0].mxu0
      %1582 = vmatprep.mubr.f32.mxu0 0.0
      %1583 = vmatmul.mubr.f32.gmra.mrb[0].mxu0 %v1404
      %v1584 = vpop.f32.mrb[0].mxu0
      %v1585 = vadd.f32 0.0, %v1584
      %v1586 = vpop.f32.mrb[0].mxu0
      %1587 = vmatprep.mubr.f32.mxu0 0.0
      %1588 = vmatmul.mubr.f32.gmra.mrb[0].mxu0 %v1407
      %v1589 = vpop.f32.mrb[0].mxu0
      %v1590 = vadd.f32 0.0, %v1589
      %v1591 = vpop.f32.mrb[0].mxu0
      %1592 = vmatprep.mubr.f32.mxu0 0.0
      %1593 = vmatmul.mubr.f32.gmra.mrb[0].mxu0 %v1410
      %v1594 = vpop.f32.mrb[0].mxu0
      %v1595 = vadd.f32 0.0, %v1594
      %v1596 = vpop.f32.mrb[0].mxu0
      %1597 = vmatprep.mubr.f32.mxu0 0.0
      %1598 = vmatmul.mubr.f32.gmra.mrb[0].mxu0 %v1413
      %v1599 = vpop.f32.mrb[0].mxu0
      %v1600 = vadd.f32 0.0, %v1599
      %v1601 = vpop.f32.mrb[0].mxu0
      %1602 = vmatprep.mubr.f32.mxu0 0.0
      %1603 = vmatmul.mubr.f32.gmra.mrb[0].mxu0 %v1416
      %v1604 = vpop.f32.mrb[0].mxu0
      %v1605 = vadd.f32 0.0, %v1604
      %v1606 = vpop.f32.mrb[0].mxu0
      %1607 = vmatprep.mubr.f32.mxu0 0.0
      %1608 = vmatmul.mubr.f32.gmra.mrb[0].mxu0 %v1419
      %v1609 = vpop.f32.mrb[0].mxu0
      %v1610 = vadd.f32 0.0, %v1609
      %v1611 = vpop.f32.mrb[0].mxu0
      %1612 = vmatprep.mubr.f32.mxu0 0.0
      %1613 = vmatmul.mubr.f32.gmra.mrb[0].mxu0 %v1422
      %v1614 = vpop.f32.mrb[0].mxu0
      %v1615 = vadd.f32 0.0, %v1614
      %v1616 = vpop.f32.mrb[0].mxu0
      %1617 = vmatprep.mubr.f32.mxu0 0.0
      %1618 = vmatmul.mubr.f32.gmra.mrb[0].mxu0 %v1425
      %v1619 = vpop.f32.mrb[0].mxu0
      %v1620 = vadd.f32 0.0, %v1619
      %v1621 = vpop.f32.mrb[0].mxu0
      %1622 = vmatprep.mubr.f32.mxu0 0.0
      %1623 = vmatmul.mubr.f32.gmra.mrb[0].mxu0 %v1428
      %v1624 = vpop.f32.mrb[0].mxu0
      %v1625 = vadd.f32 0.0, %v1624
      %v1626 = vpop.f32.mrb[0].mxu0
      %1627 = vmatprep.mubr.f32.mxu0 0.0
      %1628 = vmatmul.mubr.f32.gmra.mrb[0].mxu0 %v1431
      %v1629 = vpop.f32.mrb[0].mxu0
      %v1630 = vadd.f32 0.0, %v1629
      %v1631 = vpop.f32.mrb[0].mxu0
      %1632 = vmatprep.mubr.f32.mxu0 0.0
      %1633 = vmatmul.mubr.f32.gmra.mrb[0].mxu0 %v1434
      %v1634 = vpop.f32.mrb[0].mxu0
      %v1635 = vadd.f32 0.0, %v1634
      %v1636 = vpop.f32.mrb[0].mxu0
      %1637 = vmatprep.mubr.f32.mxu0 0.0
      %1638 = vmatmul.mubr.f32.gmra.mrb[0].mxu0 %v1437
      %v1639 = vpop.f32.mrb[0].mxu0
      %v1640 = vadd.f32 0.0, %v1639
      %v1641 = vpop.f32.mrb[0].mxu0
      %1642 = vmatprep.mubr.f32.mxu0 0.0
      %1643 = vmatmul.mubr.f32.gmra.mrb[0].mxu0 %v1440
      %v1644 = vpop.f32.mrb[0].mxu0
      %v1645 = vadd.f32 0.0, %v1644
      %v1646 = vpop.f32.mrb[0].mxu0
      %1647 = vmatprep.mubr.f32.mxu0 0.0
      %1648 = vmatmul.mubr.f32.gmra.mrb[0].mxu0 %v1443
      %v1649 = vpop.f32.mrb[0].mxu0
      %v1650 = vadd.f32 0.0, %v1649
      %v1651 = vpop.f32.mrb[0].mxu0
      %1652 = vmatprep.mubr.f32.mxu0 0.0
      %1653 = vmatmul.mubr.f32.gmra.mrb[0].mxu0 %v1446
      %v1654 = vpop.f32.mrb[0].mxu0
      %v1655 = vadd.f32 0.0, %v1654
      %v1656 = vpop.f32.mrb[0].mxu0
      %1657 = vmatprep.mubr.f32.mxu0 0.0
      %1658 = vmatmul.mubr.f32.gmra.mrb[0].mxu0 %v1449
      %v1659 = vpop.f32.mrb[0].mxu0
      %v1660 = vadd.f32 0.0, %v1659
      %v1661 = vpop.f32.mrb[0].mxu0
      %1662 = vmatprep.mubr.f32.mxu0 0.0
      %1663 = vmatmul.mubr.f32.gmra.mrb[0].mxu0 %v1452
      %v1664 = vpop.f32.mrb[0].mxu0
      %v1665 = vadd.f32 0.0, %v1664
      %v1666 = vpop.f32.mrb[0].mxu0
      %1667 = vmatprep.mubr.f32.mxu0 0.0
      %1668 = vmatmul.mubr.f32.gmra.mrb[0].mxu0 %v1455
      %v1669 = vpop.f32.mrb[0].mxu0
      %v1670 = vadd.f32 0.0, %v1669
      %v1671 = vpop.f32.mrb[0].mxu0
      %1672 = vmatprep.mubr.f32.mxu0 0.0
      %1673 = vmatmul.mubr.f32.gmra.mrb[0].mxu0 %v1458
      %v1674 = vpop.f32.mrb[0].mxu0
      %v1675 = vadd.f32 0.0, %v1674
      %v1676 = vpop.f32.mrb[0].mxu0
      %1677 = vmatprep.mubr.f32.mxu0 0.0
      %1678 = vmatmul.mubr.f32.gmra.mrb[0].mxu0 %v1461
      %v1679 = vpop.f32.mrb[0].mxu0
      %v1680 = vadd.f32 0.0, %v1679
      %v1681 = vpop.f32.mrb[0].mxu0
      %1682 = vmatprep.mubr.f32.mxu0 0.0
      %1683 = vmatmul.mubr.f32.gmra.mrb[0].mxu0 %v1464
      %v1684 = vpop.f32.mrb[0].mxu0
      %v1685 = vadd.f32 0.0, %v1684
      %v1686 = vpop.f32.mrb[0].mxu0
      %1687 = vmatprep.mubr.f32.mxu0 0.0
      %1688 = vmatmul.mubr.f32.gmra.mrb[0].mxu0 %v1467
      %v1689 = vpop.f32.mrb[0].mxu0
      %v1690 = vadd.f32 0.0, %v1689
      %v1691 = vpop.f32.mrb[0].mxu0
      %1692 = vmatprep.mubr.f32.mxu0 0.0
      %1693 = vmatmul.mubr.f32.gmra.mrb[0].mxu0 %v1470
      %v1694 = vpop.f32.mrb[0].mxu0
      %v1695 = vadd.f32 0.0, %v1694
      %v1696 = vpop.f32.mrb[0].mxu0
      %1697 = vmatprep.mubr.f32.mxu0 0.0
      %1698 = vmatmul.mubr.f32.gmra.mrb[0].mxu0 %v1473
      %v1699 = vpop.f32.mrb[0].mxu0
      %v1700 = vadd.f32 0.0, %v1699
      %v1701 = vpop.f32.mrb[0].mxu0
      %1702 = vdwg.mxu0
      %v1703 = vadd.f32 %v1345, %v1545
      %v1704 = vadd.f32 %v1346, %v1550
      %v1705 = vadd.f32 %v1347, %v1555
      %v1706 = vadd.f32 %v1348, %v1560
      %v1707 = vadd.f32 %v1349, %v1565
      %v1708 = vadd.f32 %v1350, %v1570
      %v1709 = vadd.f32 %v1351, %v1575
      %v1710 = vadd.f32 %v1352, %v1580
      %v1711 = vadd.f32 %v1353, %v1585
      %v1712 = vadd.f32 %v1354, %v1590
      %v1713 = vadd.f32 %v1355, %v1595
      %v1714 = vadd.f32 %v1356, %v1600
      %v1715 = vadd.f32 %v1357, %v1605
      %v1716 = vadd.f32 %v1358, %v1610
      %v1717 = vadd.f32 %v1359, %v1615
      %v1718 = vadd.f32 %v1360, %v1620
      %v1719 = vadd.f32 %v1361, %v1625
      %v1720 = vadd.f32 %v1362, %v1630
      %v1721 = vadd.f32 %v1363, %v1635
      %v1722 = vadd.f32 %v1364, %v1640
      %v1723 = vadd.f32 %v1365, %v1645
      %v1724 = vadd.f32 %v1366, %v1650
      %v1725 = vadd.f32 %v1367, %v1655
      %v1726 = vadd.f32 %v1368, %v1660
      %v1727 = vadd.f32 %v1369, %v1665
      %v1728 = vadd.f32 %v1370, %v1670
      %v1729 = vadd.f32 %v1371, %v1675
      %v1730 = vadd.f32 %v1372, %v1680
      %v1731 = vadd.f32 %v1373, %v1685
      %v1732 = vadd.f32 %v1374, %v1690
      %v1733 = vadd.f32 %v1375, %v1695
      %v1734 = vadd.f32 %v1376, %v1700
      %1735 = vst.msk [vmem:[#allocation4] sm:$0xff] %vm620, %v1703
      %1736 = vst.msk [vmem:[#allocation4 + $0x8] sm:$0xff] %vm620, %v1704
      %1737 = vst.msk [vmem:[#allocation4 + $0x10] sm:$0xff] %vm620, %v1705
      %1738 = vst.msk [vmem:[#allocation4 + $0x18] sm:$0xff] %vm620, %v1706
      %1739 = vst.msk [vmem:[#allocation4 + $0x20] sm:$0xff] %vm620, %v1707
      %1740 = vst.msk [vmem:[#allocation4 + $0x28] sm:$0xff] %vm620, %v1708
      %1741 = vst.msk [vmem:[#allocation4 + $0x30] sm:$0xff] %vm620, %v1709
      %1742 = vst.msk [vmem:[#allocation4 + $0x38] sm:$0xff] %vm620, %v1710
      %1743 = vst.msk [vmem:[#allocation4 + $0x40] sm:$0xff] %vm620, %v1711
      %1744 = vst.msk [vmem:[#allocation4 + $0x48] sm:$0xff] %vm620, %v1712
      %1745 = vst.msk [vmem:[#allocation4 + $0x50] sm:$0xff] %vm620, %v1713
      %1746 = vst.msk [vmem:[#allocation4 + $0x58] sm:$0xff] %vm620, %v1714
      %1747 = vst.msk [vmem:[#allocation4 + $0x60] sm:$0xff] %vm620, %v1715
      %1748 = vst.msk [vmem:[#allocation4 + $0x68] sm:$0xff] %vm620, %v1716
      %1749 = vst.msk [vmem:[#allocation4 + $0x70] sm:$0xff] %vm620, %v1717
      %1750 = vst.msk [vmem:[#allocation4 + $0x78] sm:$0xff] %vm620, %v1718
      %1751 = vst.msk [vmem:[#allocation4 + $0x80] sm:$0xff] %vm620, %v1719
      %1752 = vst.msk [vmem:[#allocation4 + $0x88] sm:$0xff] %vm620, %v1720
      %1753 = vst.msk [vmem:[#allocation4 + $0x90] sm:$0xff] %vm620, %v1721
      %1754 = vst.msk [vmem:[#allocation4 + $0x98] sm:$0xff] %vm620, %v1722
      %1755 = vst.msk [vmem:[#allocation4 + $0xa0] sm:$0xff] %vm620, %v1723
      %1756 = vst.msk [vmem:[#allocation4 + $0xa8] sm:$0xff] %vm620, %v1724
      %1757 = vst.msk [vmem:[#allocation4 + $0xb0] sm:$0xff] %vm620, %v1725
      %1758 = vst.msk [vmem:[#allocation4 + $0xb8] sm:$0xff] %vm620, %v1726
      %1759 = vst.msk [vmem:[#allocation4 + $0xc0] sm:$0xff] %vm620, %v1727
      %1760 = vst.msk [vmem:[#allocation4 + $0xc8] sm:$0xff] %vm620, %v1728
      %1761 = vst.msk [vmem:[#allocation4 + $0xd0] sm:$0xff] %vm620, %v1729
      %1762 = vst.msk [vmem:[#allocation4 + $0xd8] sm:$0xff] %vm620, %v1730
      %1763 = vst.msk [vmem:[#allocation4 + $0xe0] sm:$0xff] %vm620, %v1731
      %1764 = vst.msk [vmem:[#allocation4 + $0xe8] sm:$0xff] %vm620, %v1732
      %1765 = vst.msk [vmem:[#allocation4 + $0xf0] sm:$0xff] %vm620, %v1733
      %1766 = vst.msk [vmem:[#allocation4 + $0xf8] sm:$0xff] %vm620, %v1734
      %1767 = vst.msk [vmem:[%s190 + $0x8] sm:$0xff] %vm172, %v1313
      %1768 = vst.msk [vmem:[%s190 + $0x10] sm:$0xff] %vm172, %v1314
      %1769 = vst.msk [vmem:[%s190 + $0x28] sm:$0xff] %vm172, %v1315
      %1770 = vst.msk [vmem:[%s190 + $0x30] sm:$0xff] %vm172, %v1316
      %1771 = vst.msk [vmem:[%s190 + $0x48] sm:$0xff] %vm172, %v1317
      %1772 = vst.msk [vmem:[%s190 + $0x50] sm:$0xff] %vm172, %v1318
      %1773 = vst.msk [vmem:[%s190 + $0x68] sm:$0xff] %vm172, %v1319
      %1774 = vst.msk [vmem:[%s190 + $0x70] sm:$0xff] %vm172, %v1320
      %1775 = vst.msk [vmem:[%s190 + $0x88] sm:$0xff] %vm172, %v1321
      %1776 = vst.msk [vmem:[%s190 + $0x90] sm:$0xff] %vm172, %v1322
      %1777 = vst.msk [vmem:[%s190 + $0xa8] sm:$0xff] %vm172, %v1323
      %1778 = vst.msk [vmem:[%s190 + $0xb0] sm:$0xff] %vm172, %v1324
      %1779 = vst.msk [vmem:[%s190 + $0xc8] sm:$0xff] %vm172, %v1325
      %1780 = vst.msk [vmem:[%s190 + $0xd0] sm:$0xff] %vm172, %v1326
      %1781 = vst.msk [vmem:[%s190 + $0xe8] sm:$0xff] %vm172, %v1327
      %1782 = vst.msk [vmem:[%s190 + $0xf0] sm:$0xff] %vm172, %v1328
      %1783 = vst.msk [vmem:[%s190 + $0x108] sm:$0xff] %vm172, %v1329
      %1784 = vst.msk [vmem:[%s190 + $0x110] sm:$0xff] %vm172, %v1330
      %1785 = vst.msk [vmem:[%s190 + $0x128] sm:$0xff] %vm172, %v1331
      %1786 = vst.msk [vmem:[%s190 + $0x130] sm:$0xff] %vm172, %v1332
      %1787 = vst.msk [vmem:[%s190 + $0x148] sm:$0xff] %vm172, %v1333
      %1788 = vst.msk [vmem:[%s190 + $0x150] sm:$0xff] %vm172, %v1334
      %1789 = vst.msk [vmem:[%s190 + $0x168] sm:$0xff] %vm172, %v1335
      %1790 = vst.msk [vmem:[%s190 + $0x170] sm:$0xff] %vm172, %v1336
      %1791 = vst.msk [vmem:[%s190 + $0x188] sm:$0xff] %vm172, %v1337
      %1792 = vst.msk [vmem:[%s190 + $0x190] sm:$0xff] %vm172, %v1338
      %1793 = vst.msk [vmem:[%s190 + $0x1a8] sm:$0xff] %vm172, %v1339
      %1794 = vst.msk [vmem:[%s190 + $0x1b0] sm:$0xff] %vm172, %v1340
      %1795 = vst.msk [vmem:[%s190 + $0x1c8] sm:$0xff] %vm172, %v1341
      %1796 = vst.msk [vmem:[%s190 + $0x1d0] sm:$0xff] %vm172, %v1342
      %1797 = vst.msk [vmem:[%s190 + $0x1e8] sm:$0xff] %vm172, %v1343
      %1798 = vst.msk [vmem:[%s190 + $0x1f0] sm:$0xff] %vm172, %v1344
      %v1799 = vld [vmem:[%s171 + $0x6] sm:$0xff]
      %v1800 = vld [vmem:[%s171 + $0xe] sm:$0xff]
      %v1801 = vld [vmem:[%s171 + $0x26] sm:$0xff]
      %v1802 = vld [vmem:[%s171 + $0x2e] sm:$0xff]
      %v1803 = vld [vmem:[%s171 + $0x46] sm:$0xff]
      %v1804 = vld [vmem:[%s171 + $0x4e] sm:$0xff]
      %v1805 = vld [vmem:[%s171 + $0x66] sm:$0xff]
      %v1806 = vld [vmem:[%s171 + $0x6e] sm:$0xff]
      %v1807 = vld [vmem:[%s171 + $0x86] sm:$0xff]
      %v1808 = vld [vmem:[%s171 + $0x8e] sm:$0xff]
      %v1809 = vld [vmem:[%s171 + $0xa6] sm:$0xff]
      %v1810 = vld [vmem:[%s171 + $0xae] sm:$0xff]
      %v1811 = vld [vmem:[%s171 + $0xc6] sm:$0xff]
      %v1812 = vld [vmem:[%s171 + $0xce] sm:$0xff]
      %v1813 = vld [vmem:[%s171 + $0xe6] sm:$0xff]
      %v1814 = vld [vmem:[%s171 + $0xee] sm:$0xff]
      %v1815 = vld [vmem:[%s171 + $0x106] sm:$0xff]
      %v1816 = vld [vmem:[%s171 + $0x10e] sm:$0xff]
      %v1817 = vld [vmem:[%s171 + $0x126] sm:$0xff]
      %v1818 = vld [vmem:[%s171 + $0x12e] sm:$0xff]
      %v1819 = vld [vmem:[%s171 + $0x146] sm:$0xff]
      %v1820 = vld [vmem:[%s171 + $0x14e] sm:$0xff]
      %v1821 = vld [vmem:[%s171 + $0x166] sm:$0xff]
      %v1822 = vld [vmem:[%s171 + $0x16e] sm:$0xff]
      %v1823 = vld [vmem:[%s171 + $0x186] sm:$0xff]
      %v1824 = vld [vmem:[%s171 + $0x18e] sm:$0xff]
      %v1825 = vld [vmem:[%s171 + $0x1a6] sm:$0xff]
      %v1826 = vld [vmem:[%s171 + $0x1ae] sm:$0xff]
      %v1827 = vld [vmem:[%s171 + $0x1c6] sm:$0xff]
      %v1828 = vld [vmem:[%s171 + $0x1ce] sm:$0xff]
      %v1829 = vld [vmem:[%s171 + $0x1e6] sm:$0xff]
      %v1830 = vld [vmem:[%s171 + $0x1ee] sm:$0xff]
      %v1831 = vld [vmem:[%s171 + $0x206] sm:$0xff]
      %v1832 = vld [vmem:[%s171 + $0x20e] sm:$0xff]
      %v1833 = vld [vmem:[%s171 + $0x226] sm:$0xff]
      %v1834 = vld [vmem:[%s171 + $0x22e] sm:$0xff]
      %v1835 = vld [vmem:[%s171 + $0x246] sm:$0xff]
      %v1836 = vld [vmem:[%s171 + $0x24e] sm:$0xff]
      %v1837 = vld [vmem:[%s171 + $0x266] sm:$0xff]
      %v1838 = vld [vmem:[%s171 + $0x26e] sm:$0xff]
      %v1839 = vld [vmem:[%s171 + $0x7] sm:$0xff]
      %v1840 = vld [vmem:[%s171 + $0xf] sm:$0xff]
      %v1841 = vld [vmem:[%s171 + $0x27] sm:$0xff]
      %v1842 = vld [vmem:[%s171 + $0x2f] sm:$0xff]
      %v1843 = vld [vmem:[%s171 + $0x47] sm:$0xff]
      %v1844 = vld [vmem:[%s171 + $0x4f] sm:$0xff]
      %v1845 = vld [vmem:[%s171 + $0x67] sm:$0xff]
      %v1846 = vld [vmem:[%s171 + $0x6f] sm:$0xff]
      %v1847 = vld [vmem:[%s171 + $0x87] sm:$0xff]
      %v1848 = vld [vmem:[%s171 + $0x8f] sm:$0xff]
      %v1849 = vld [vmem:[%s171 + $0xa7] sm:$0xff]
      %v1850 = vld [vmem:[%s171 + $0xaf] sm:$0xff]
      %v1851 = vld [vmem:[%s171 + $0xc7] sm:$0xff]
      %v1852 = vld [vmem:[%s171 + $0xcf] sm:$0xff]
      %v1853 = vld [vmem:[%s171 + $0xe7] sm:$0xff]
      %v1854 = vld [vmem:[%s171 + $0xef] sm:$0xff]
      %v1855 = vld [vmem:[%s171 + $0x107] sm:$0xff]
      %v1856 = vld [vmem:[%s171 + $0x10f] sm:$0xff]
      %v1857 = vld [vmem:[%s171 + $0x127] sm:$0xff]
      %v1858 = vld [vmem:[%s171 + $0x12f] sm:$0xff]
      %v1859 = vld [vmem:[%s171 + $0x147] sm:$0xff]
      %v1860 = vld [vmem:[%s171 + $0x14f] sm:$0xff]
      %v1861 = vld [vmem:[%s171 + $0x167] sm:$0xff]
      %v1862 = vld [vmem:[%s171 + $0x16f] sm:$0xff]
      %v1863 = vld [vmem:[%s171 + $0x187] sm:$0xff]
      %v1864 = vld [vmem:[%s171 + $0x18f] sm:$0xff]
      %v1865 = vld [vmem:[%s171 + $0x1a7] sm:$0xff]
      %v1866 = vld [vmem:[%s171 + $0x1af] sm:$0xff]
      %v1867 = vld [vmem:[%s171 + $0x1c7] sm:$0xff]
      %v1868 = vld [vmem:[%s171 + $0x1cf] sm:$0xff]
      %v1869 = vld [vmem:[%s171 + $0x1e7] sm:$0xff]
      %v1870 = vld [vmem:[%s171 + $0x1ef] sm:$0xff]
      %v1871 = vld [vmem:[%s171 + $0x207] sm:$0xff]
      %v1872 = vld [vmem:[%s171 + $0x20f] sm:$0xff]
      %v1873 = vld [vmem:[%s171 + $0x227] sm:$0xff]
      %v1874 = vld [vmem:[%s171 + $0x22f] sm:$0xff]
      %v1875 = vld [vmem:[%s171 + $0x247] sm:$0xff]
      %v1876 = vld [vmem:[%s171 + $0x24f] sm:$0xff]
      %v1877 = vld [vmem:[%s171 + $0x267] sm:$0xff]
      %v1878 = vld [vmem:[%s171 + $0x26f] sm:$0xff]
      %v1879 = vmax.f32 %v1799, %v1839
      %v1880 = vmax.f32 %v1800, %v1840
      %v1881 = vmax.f32 %v1801, %v1841
      %v1882 = vmax.f32 %v1802, %v1842
      %v1883 = vmax.f32 %v1803, %v1843
      %v1884 = vmax.f32 %v1804, %v1844
      %v1885 = vmax.f32 %v1805, %v1845
      %v1886 = vmax.f32 %v1806, %v1846
      %v1887 = vmax.f32 %v1807, %v1847
      %v1888 = vmax.f32 %v1808, %v1848
      %v1889 = vmax.f32 %v1809, %v1849
      %v1890 = vmax.f32 %v1810, %v1850
      %v1891 = vmax.f32 %v1811, %v1851
      %v1892 = vmax.f32 %v1812, %v1852
      %v1893 = vmax.f32 %v1813, %v1853
      %v1894 = vmax.f32 %v1814, %v1854
      %v1895 = vmax.f32 %v1815, %v1855
      %v1896 = vmax.f32 %v1816, %v1856
      %v1897 = vmax.f32 %v1817, %v1857
      %v1898 = vmax.f32 %v1818, %v1858
      %v1899 = vmax.f32 %v1819, %v1859
      %v1900 = vmax.f32 %v1820, %v1860
      %v1901 = vmax.f32 %v1821, %v1861
      %v1902 = vmax.f32 %v1822, %v1862
      %v1903 = vmax.f32 %v1823, %v1863
      %v1904 = vmax.f32 %v1824, %v1864
      %v1905 = vmax.f32 %v1825, %v1865
      %v1906 = vmax.f32 %v1826, %v1866
      %v1907 = vmax.f32 %v1827, %v1867
      %v1908 = vmax.f32 %v1828, %v1868
      %v1909 = vmax.f32 %v1829, %v1869
      %v1910 = vmax.f32 %v1830, %v1870
      %v1911 = vmax.f32 %v1831, %v1871
      %v1912 = vmax.f32 %v1832, %v1872
      %v1913 = vmax.f32 %v1833, %v1873
      %v1914 = vmax.f32 %v1834, %v1874
      %v1915 = vmax.f32 %v1835, %v1875
      %v1916 = vmax.f32 %v1836, %v1876
      %v1917 = vmax.f32 %v1837, %v1877
      %v1918 = vmax.f32 %v1838, %v1878
      %v1919 = vld [vmem:[%s171 + $0x8] sm:$0xff]
      %v1920 = vld [vmem:[%s171 + $0x10] sm:$0xff]
      %v1921 = vld [vmem:[%s171 + $0x28] sm:$0xff]
      %v1922 = vld [vmem:[%s171 + $0x30] sm:$0xff]
      %v1923 = vld [vmem:[%s171 + $0x48] sm:$0xff]
      %v1924 = vld [vmem:[%s171 + $0x50] sm:$0xff]
      %v1925 = vld [vmem:[%s171 + $0x68] sm:$0xff]
      %v1926 = vld [vmem:[%s171 + $0x70] sm:$0xff]
      %v1927 = vld [vmem:[%s171 + $0x88] sm:$0xff]
      %v1928 = vld [vmem:[%s171 + $0x90] sm:$0xff]
      %v1929 = vld [vmem:[%s171 + $0xa8] sm:$0xff]
      %v1930 = vld [vmem:[%s171 + $0xb0] sm:$0xff]
      %v1931 = vld [vmem:[%s171 + $0xc8] sm:$0xff]
      %v1932 = vld [vmem:[%s171 + $0xd0] sm:$0xff]
      %v1933 = vld [vmem:[%s171 + $0xe8] sm:$0xff]
      %v1934 = vld [vmem:[%s171 + $0xf0] sm:$0xff]
      %v1935 = vld [vmem:[%s171 + $0x108] sm:$0xff]
      %v1936 = vld [vmem:[%s171 + $0x110] sm:$0xff]
      %v1937 = vld [vmem:[%s171 + $0x128] sm:$0xff]
      %v1938 = vld [vmem:[%s171 + $0x130] sm:$0xff]
      %v1939 = vld [vmem:[%s171 + $0x148] sm:$0xff]
      %v1940 = vld [vmem:[%s171 + $0x150] sm:$0xff]
      %v1941 = vld [vmem:[%s171 + $0x168] sm:$0xff]
      %v1942 = vld [vmem:[%s171 + $0x170] sm:$0xff]
      %v1943 = vld [vmem:[%s171 + $0x188] sm:$0xff]
      %v1944 = vld [vmem:[%s171 + $0x190] sm:$0xff]
      %v1945 = vld [vmem:[%s171 + $0x1a8] sm:$0xff]
      %v1946 = vld [vmem:[%s171 + $0x1b0] sm:$0xff]
      %v1947 = vld [vmem:[%s171 + $0x1c8] sm:$0xff]
      %v1948 = vld [vmem:[%s171 + $0x1d0] sm:$0xff]
      %v1949 = vld [vmem:[%s171 + $0x1e8] sm:$0xff]
      %v1950 = vld [vmem:[%s171 + $0x1f0] sm:$0xff]
      %v1951 = vld [vmem:[%s171 + $0x208] sm:$0xff]
      %v1952 = vld [vmem:[%s171 + $0x210] sm:$0xff]
      %v1953 = vld [vmem:[%s171 + $0x228] sm:$0xff]
      %v1954 = vld [vmem:[%s171 + $0x230] sm:$0xff]
      %v1955 = vld [vmem:[%s171 + $0x248] sm:$0xff]
      %v1956 = vld [vmem:[%s171 + $0x250] sm:$0xff]
      %v1957 = vld [vmem:[%s171 + $0x268] sm:$0xff]
      %v1958 = vld [vmem:[%s171 + $0x270] sm:$0xff]
      %v1959 = vmax.f32 %v1879, %v1919
      %v1960 = vmax.f32 %v1880, %v1920
      %v1961 = vmax.f32 %v1881, %v1921
      %v1962 = vmax.f32 %v1882, %v1922
      %v1963 = vmax.f32 %v1883, %v1923
      %v1964 = vmax.f32 %v1884, %v1924
      %v1965 = vmax.f32 %v1885, %v1925
      %v1966 = vmax.f32 %v1886, %v1926
      %v1967 = vmax.f32 %v1887, %v1927
      %v1968 = vmax.f32 %v1888, %v1928
      %v1969 = vmax.f32 %v1889, %v1929
      %v1970 = vmax.f32 %v1890, %v1930
      %v1971 = vmax.f32 %v1891, %v1931
      %v1972 = vmax.f32 %v1892, %v1932
      %v1973 = vmax.f32 %v1893, %v1933
      %v1974 = vmax.f32 %v1894, %v1934
      %v1975 = vmax.f32 %v1895, %v1935
      %v1976 = vmax.f32 %v1896, %v1936
      %v1977 = vmax.f32 %v1897, %v1937
      %v1978 = vmax.f32 %v1898, %v1938
      %v1979 = vmax.f32 %v1899, %v1939
      %v1980 = vmax.f32 %v1900, %v1940
      %v1981 = vmax.f32 %v1901, %v1941
      %v1982 = vmax.f32 %v1902, %v1942
      %v1983 = vmax.f32 %v1903, %v1943
      %v1984 = vmax.f32 %v1904, %v1944
      %v1985 = vmax.f32 %v1905, %v1945
      %v1986 = vmax.f32 %v1906, %v1946
      %v1987 = vmax.f32 %v1907, %v1947
      %v1988 = vmax.f32 %v1908, %v1948
      %v1989 = vmax.f32 %v1909, %v1949
      %v1990 = vmax.f32 %v1910, %v1950
      %v1991 = vmax.f32 %v1911, %v1951
      %v1992 = vmax.f32 %v1912, %v1952
      %v1993 = vmax.f32 %v1913, %v1953
      %v1994 = vmax.f32 %v1914, %v1954
      %v1995 = vmax.f32 %v1915, %v1955
      %v1996 = vmax.f32 %v1916, %v1956
      %v1997 = vmax.f32 %v1917, %v1957
      %v1998 = vmax.f32 %v1918, %v1958
      %v1999 = vld [vmem:[%s171 + $0x9] sm:$0xff]
      %v2000 = vld [vmem:[%s171 + $0x11] sm:$0xff]
      %v2001 = vld [vmem:[%s171 + $0x29] sm:$0xff]
      %v2002 = vld [vmem:[%s171 + $0x31] sm:$0xff]
      %v2003 = vld [vmem:[%s171 + $0x49] sm:$0xff]
      %v2004 = vld [vmem:[%s171 + $0x51] sm:$0xff]
      %v2005 = vld [vmem:[%s171 + $0x69] sm:$0xff]
      %v2006 = vld [vmem:[%s171 + $0x71] sm:$0xff]
      %v2007 = vld [vmem:[%s171 + $0x89] sm:$0xff]
      %v2008 = vld [vmem:[%s171 + $0x91] sm:$0xff]
      %v2009 = vld [vmem:[%s171 + $0xa9] sm:$0xff]
      %v2010 = vld [vmem:[%s171 + $0xb1] sm:$0xff]
      %v2011 = vld [vmem:[%s171 + $0xc9] sm:$0xff]
      %v2012 = vld [vmem:[%s171 + $0xd1] sm:$0xff]
      %v2013 = vld [vmem:[%s171 + $0xe9] sm:$0xff]
      %v2014 = vld [vmem:[%s171 + $0xf1] sm:$0xff]
      %v2015 = vld [vmem:[%s171 + $0x109] sm:$0xff]
      %v2016 = vld [vmem:[%s171 + $0x111] sm:$0xff]
      %v2017 = vld [vmem:[%s171 + $0x129] sm:$0xff]
      %v2018 = vld [vmem:[%s171 + $0x131] sm:$0xff]
      %v2019 = vld [vmem:[%s171 + $0x149] sm:$0xff]
      %v2020 = vld [vmem:[%s171 + $0x151] sm:$0xff]
      %v2021 = vld [vmem:[%s171 + $0x169] sm:$0xff]
      %v2022 = vld [vmem:[%s171 + $0x171] sm:$0xff]
      %v2023 = vld [vmem:[%s171 + $0x189] sm:$0xff]
      %v2024 = vld [vmem:[%s171 + $0x191] sm:$0xff]
      %v2025 = vld [vmem:[%s171 + $0x1a9] sm:$0xff]
      %v2026 = vld [vmem:[%s171 + $0x1b1] sm:$0xff]
      %v2027 = vld [vmem:[%s171 + $0x1c9] sm:$0xff]
      %v2028 = vld [vmem:[%s171 + $0x1d1] sm:$0xff]
      %v2029 = vld [vmem:[%s171 + $0x1e9] sm:$0xff]
      %v2030 = vld [vmem:[%s171 + $0x1f1] sm:$0xff]
      %v2031 = vld [vmem:[%s171 + $0x209] sm:$0xff]
      %v2032 = vld [vmem:[%s171 + $0x211] sm:$0xff]
      %v2033 = vld [vmem:[%s171 + $0x229] sm:$0xff]
      %v2034 = vld [vmem:[%s171 + $0x231] sm:$0xff]
      %v2035 = vld [vmem:[%s171 + $0x249] sm:$0xff]
      %v2036 = vld [vmem:[%s171 + $0x251] sm:$0xff]
      %v2037 = vld [vmem:[%s171 + $0x269] sm:$0xff]
      %v2038 = vld [vmem:[%s171 + $0x271] sm:$0xff]
      %v2039 = vmax.f32 %v1959, %v1999
      %v2040 = vmax.f32 %v1960, %v2000
      %v2041 = vmax.f32 %v1961, %v2001
      %v2042 = vmax.f32 %v1962, %v2002
      %v2043 = vmax.f32 %v1963, %v2003
      %v2044 = vmax.f32 %v1964, %v2004
      %v2045 = vmax.f32 %v1965, %v2005
      %v2046 = vmax.f32 %v1966, %v2006
      %v2047 = vmax.f32 %v1967, %v2007
      %v2048 = vmax.f32 %v1968, %v2008
      %v2049 = vmax.f32 %v1969, %v2009
      %v2050 = vmax.f32 %v1970, %v2010
      %v2051 = vmax.f32 %v1971, %v2011
      %v2052 = vmax.f32 %v1972, %v2012
      %v2053 = vmax.f32 %v1973, %v2013
      %v2054 = vmax.f32 %v1974, %v2014
      %v2055 = vmax.f32 %v1975, %v2015
      %v2056 = vmax.f32 %v1976, %v2016
      %v2057 = vmax.f32 %v1977, %v2017
      %v2058 = vmax.f32 %v1978, %v2018
      %v2059 = vmax.f32 %v1979, %v2019
      %v2060 = vmax.f32 %v1980, %v2020
      %v2061 = vmax.f32 %v1981, %v2021
      %v2062 = vmax.f32 %v1982, %v2022
      %v2063 = vmax.f32 %v1983, %v2023
      %v2064 = vmax.f32 %v1984, %v2024
      %v2065 = vmax.f32 %v1985, %v2025
      %v2066 = vmax.f32 %v1986, %v2026
      %v2067 = vmax.f32 %v1987, %v2027
      %v2068 = vmax.f32 %v1988, %v2028
      %v2069 = vmax.f32 %v1989, %v2029
      %v2070 = vmax.f32 %v1990, %v2030
      %v2071 = vmax.f32 %v1991, %v2031
      %v2072 = vmax.f32 %v1992, %v2032
      %v2073 = vmax.f32 %v1993, %v2033
      %v2074 = vmax.f32 %v1994, %v2034
      %v2075 = vmax.f32 %v1995, %v2035
      %v2076 = vmax.f32 %v1996, %v2036
      %v2077 = vmax.f32 %v1997, %v2037
      %v2078 = vmax.f32 %v1998, %v2038
      %v2079 = vld [vmem:[%s171 + $0xa] sm:$0xff]
      %v2080 = vld [vmem:[%s171 + $0x12] sm:$0xff]
      %v2081 = vld [vmem:[%s171 + $0x2a] sm:$0xff]
      %v2082 = vld [vmem:[%s171 + $0x32] sm:$0xff]
      %v2083 = vld [vmem:[%s171 + $0x4a] sm:$0xff]
      %v2084 = vld [vmem:[%s171 + $0x52] sm:$0xff]
      %v2085 = vld [vmem:[%s171 + $0x6a] sm:$0xff]
      %v2086 = vld [vmem:[%s171 + $0x72] sm:$0xff]
      %v2087 = vld [vmem:[%s171 + $0x8a] sm:$0xff]
      %v2088 = vld [vmem:[%s171 + $0x92] sm:$0xff]
      %v2089 = vld [vmem:[%s171 + $0xaa] sm:$0xff]
      %v2090 = vld [vmem:[%s171 + $0xb2] sm:$0xff]
      %v2091 = vld [vmem:[%s171 + $0xca] sm:$0xff]
      %v2092 = vld [vmem:[%s171 + $0xd2] sm:$0xff]
      %v2093 = vld [vmem:[%s171 + $0xea] sm:$0xff]
      %v2094 = vld [vmem:[%s171 + $0xf2] sm:$0xff]
      %v2095 = vld [vmem:[%s171 + $0x10a] sm:$0xff]
      %v2096 = vld [vmem:[%s171 + $0x112] sm:$0xff]
      %v2097 = vld [vmem:[%s171 + $0x12a] sm:$0xff]
      %v2098 = vld [vmem:[%s171 + $0x132] sm:$0xff]
      %v2099 = vld [vmem:[%s171 + $0x14a] sm:$0xff]
      %v2100 = vld [vmem:[%s171 + $0x152] sm:$0xff]
      %v2101 = vld [vmem:[%s171 + $0x16a] sm:$0xff]
      %v2102 = vld [vmem:[%s171 + $0x172] sm:$0xff]
      %v2103 = vld [vmem:[%s171 + $0x18a] sm:$0xff]
      %v2104 = vld [vmem:[%s171 + $0x192] sm:$0xff]
      %v2105 = vld [vmem:[%s171 + $0x1aa] sm:$0xff]
      %v2106 = vld [vmem:[%s171 + $0x1b2] sm:$0xff]
      %v2107 = vld [vmem:[%s171 + $0x1ca] sm:$0xff]
      %v2108 = vld [vmem:[%s171 + $0x1d2] sm:$0xff]
      %v2109 = vld [vmem:[%s171 + $0x1ea] sm:$0xff]
      %v2110 = vld [vmem:[%s171 + $0x1f2] sm:$0xff]
      %v2111 = vld [vmem:[%s171 + $0x20a] sm:$0xff]
      %v2112 = vld [vmem:[%s171 + $0x212] sm:$0xff]
      %v2113 = vld [vmem:[%s171 + $0x22a] sm:$0xff]
      %v2114 = vld [vmem:[%s171 + $0x232] sm:$0xff]
      %v2115 = vld [vmem:[%s171 + $0x24a] sm:$0xff]
      %v2116 = vld [vmem:[%s171 + $0x252] sm:$0xff]
      %v2117 = vld [vmem:[%s171 + $0x26a] sm:$0xff]
      %v2118 = vld [vmem:[%s171 + $0x272] sm:$0xff]
      %v2119 = vmax.f32 %v2039, %v2079
      %v2120 = vmax.f32 %v2040, %v2080
      %v2121 = vmax.f32 %v2041, %v2081
      %v2122 = vmax.f32 %v2042, %v2082
      %v2123 = vmax.f32 %v2043, %v2083
      %v2124 = vmax.f32 %v2044, %v2084
      %v2125 = vmax.f32 %v2045, %v2085
      %v2126 = vmax.f32 %v2046, %v2086
      %v2127 = vmax.f32 %v2047, %v2087
      %v2128 = vmax.f32 %v2048, %v2088
      %v2129 = vmax.f32 %v2049, %v2089
      %v2130 = vmax.f32 %v2050, %v2090
      %v2131 = vmax.f32 %v2051, %v2091
      %v2132 = vmax.f32 %v2052, %v2092
      %v2133 = vmax.f32 %v2053, %v2093
      %v2134 = vmax.f32 %v2054, %v2094
      %v2135 = vmax.f32 %v2055, %v2095
      %v2136 = vmax.f32 %v2056, %v2096
      %v2137 = vmax.f32 %v2057, %v2097
      %v2138 = vmax.f32 %v2058, %v2098
      %v2139 = vmax.f32 %v2059, %v2099
      %v2140 = vmax.f32 %v2060, %v2100
      %v2141 = vmax.f32 %v2061, %v2101
      %v2142 = vmax.f32 %v2062, %v2102
      %v2143 = vmax.f32 %v2063, %v2103
      %v2144 = vmax.f32 %v2064, %v2104
      %v2145 = vmax.f32 %v2065, %v2105
      %v2146 = vmax.f32 %v2066, %v2106
      %v2147 = vmax.f32 %v2067, %v2107
      %v2148 = vmax.f32 %v2068, %v2108
      %v2149 = vmax.f32 %v2069, %v2109
      %v2150 = vmax.f32 %v2070, %v2110
      %v2151 = vmax.f32 %v2071, %v2111
      %v2152 = vmax.f32 %v2072, %v2112
      %v2153 = vmax.f32 %v2073, %v2113
      %v2154 = vmax.f32 %v2074, %v2114
      %v2155 = vmax.f32 %v2075, %v2115
      %v2156 = vmax.f32 %v2076, %v2116
      %v2157 = vmax.f32 %v2077, %v2117
      %v2158 = vmax.f32 %v2078, %v2118
      %2159 = vst.msk [vmem:[#allocation3] sm:$0xff] %vm172, %v2119
      %2160 = vst.msk [vmem:[#allocation3 + $0x8] sm:$0xff] %vm172, %v2120
      %2161 = vst.msk [vmem:[#allocation3 + $0x10] sm:$0xff] %vm172, %v2121
      %2162 = vst.msk [vmem:[#allocation3 + $0x18] sm:$0xff] %vm172, %v2122
      %2163 = vst.msk [vmem:[#allocation3 + $0x20] sm:$0xff] %vm172, %v2123
      %2164 = vst.msk [vmem:[#allocation3 + $0x28] sm:$0xff] %vm172, %v2124
      %2165 = vst.msk [vmem:[#allocation3 + $0x30] sm:$0xff] %vm172, %v2125
      %2166 = vst.msk [vmem:[#allocation3 + $0x38] sm:$0xff] %vm172, %v2126
      %2167 = vst.msk [vmem:[#allocation3 + $0x40] sm:$0xff] %vm172, %v2127
      %2168 = vst.msk [vmem:[#allocation3 + $0x48] sm:$0xff] %vm172, %v2128
      %2169 = vst.msk [vmem:[#allocation3 + $0x50] sm:$0xff] %vm172, %v2129
      %2170 = vst.msk [vmem:[#allocation3 + $0x58] sm:$0xff] %vm172, %v2130
      %2171 = vst.msk [vmem:[#allocation3 + $0x60] sm:$0xff] %vm172, %v2131
      %2172 = vst.msk [vmem:[#allocation3 + $0x68] sm:$0xff] %vm172, %v2132
      %2173 = vst.msk [vmem:[#allocation3 + $0x70] sm:$0xff] %vm172, %v2133
      %2174 = vst.msk [vmem:[#allocation3 + $0x78] sm:$0xff] %vm172, %v2134
      %2175 = vst.msk [vmem:[#allocation3 + $0x80] sm:$0xff] %vm172, %v2135
      %2176 = vst.msk [vmem:[#allocation3 + $0x88] sm:$0xff] %vm172, %v2136
      %2177 = vst.msk [vmem:[#allocation3 + $0x90] sm:$0xff] %vm172, %v2137
      %2178 = vst.msk [vmem:[#allocation3 + $0x98] sm:$0xff] %vm172, %v2138
      %2179 = vst.msk [vmem:[#allocation3 + $0xa0] sm:$0xff] %vm172, %v2139
      %2180 = vst.msk [vmem:[#allocation3 + $0xa8] sm:$0xff] %vm172, %v2140
      %2181 = vst.msk [vmem:[#allocation3 + $0xb0] sm:$0xff] %vm172, %v2141
      %2182 = vst.msk [vmem:[#allocation3 + $0xb8] sm:$0xff] %vm172, %v2142
      %2183 = vst.msk [vmem:[#allocation3 + $0xc0] sm:$0xff] %vm172, %v2143
      %2184 = vst.msk [vmem:[#allocation3 + $0xc8] sm:$0xff] %vm172, %v2144
      %2185 = vst.msk [vmem:[#allocation3 + $0xd0] sm:$0xff] %vm172, %v2145
      %2186 = vst.msk [vmem:[#allocation3 + $0xd8] sm:$0xff] %vm172, %v2146
      %2187 = vst.msk [vmem:[#allocation3 + $0xe0] sm:$0xff] %vm172, %v2147
      %2188 = vst.msk [vmem:[#allocation3 + $0xe8] sm:$0xff] %vm172, %v2148
      %2189 = vst.msk [vmem:[#allocation3 + $0xf0] sm:$0xff] %vm172, %v2149
      %2190 = vst.msk [vmem:[#allocation3 + $0xf8] sm:$0xff] %vm172, %v2150
      %2191 = vst.msk [vmem:[#allocation3 + $0x100] sm:$0xff] %vm172, %v2151
      %2192 = vst.msk [vmem:[#allocation3 + $0x108] sm:$0xff] %vm172, %v2152
      %2193 = vst.msk [vmem:[#allocation3 + $0x110] sm:$0xff] %vm172, %v2153
      %2194 = vst.msk [vmem:[#allocation3 + $0x118] sm:$0xff] %vm172, %v2154
      %2195 = vst.msk [vmem:[#allocation3 + $0x120] sm:$0xff] %vm172, %v2155
      %2196 = vst.msk [vmem:[#allocation3 + $0x128] sm:$0xff] %vm172, %v2156
      %2197 = vst.msk [vmem:[#allocation3 + $0x130] sm:$0xff] %vm172, %v2157
      %2198 = vst.msk [vmem:[#allocation3 + $0x138] sm:$0xff] %vm172, %v2158
      %v2199 = vld [vmem:[#allocation3] sm:$0xff]
      %v2200 = vld [vmem:[#allocation3 + $0x8] sm:$0xff]
      %v2201 = vld [vmem:[#allocation3 + $0x10] sm:$0xff]
      %v2202 = vld [vmem:[#allocation3 + $0x18] sm:$0xff]
      %v2203 = vld [vmem:[#allocation3 + $0x20] sm:$0xff]
      %v2204 = vld [vmem:[#allocation3 + $0x28] sm:$0xff]
      %v2205 = vld [vmem:[#allocation3 + $0x30] sm:$0xff]
      %v2206 = vld [vmem:[#allocation3 + $0x38] sm:$0xff]
      %v2207 = vld [vmem:[#allocation3 + $0x40] sm:$0xff]
      %v2208 = vld [vmem:[#allocation3 + $0x48] sm:$0xff]
      %v2209 = vld [vmem:[#allocation3 + $0x50] sm:$0xff]
      %v2210 = vld [vmem:[#allocation3 + $0x58] sm:$0xff]
      %v2211 = vld [vmem:[#allocation3 + $0x60] sm:$0xff]
      %v2212 = vld [vmem:[#allocation3 + $0x68] sm:$0xff]
      %v2213 = vld [vmem:[#allocation3 + $0x70] sm:$0xff]
      %v2214 = vld [vmem:[#allocation3 + $0x78] sm:$0xff]
      %v2215 = vld [vmem:[#allocation3 + $0x80] sm:$0xff]
      %v2216 = vld [vmem:[#allocation3 + $0x88] sm:$0xff]
      %v2217 = vld [vmem:[#allocation3 + $0x90] sm:$0xff]
      %v2218 = vld [vmem:[#allocation3 + $0x98] sm:$0xff]
      %v2219 = vld [vmem:[#allocation3 + $0xa0] sm:$0xff]
      %v2220 = vld [vmem:[#allocation3 + $0xa8] sm:$0xff]
      %v2221 = vld [vmem:[#allocation3 + $0xb0] sm:$0xff]
      %v2222 = vld [vmem:[#allocation3 + $0xb8] sm:$0xff]
      %v2223 = vld [vmem:[#allocation3 + $0xc0] sm:$0xff]
      %v2224 = vld [vmem:[#allocation3 + $0xc8] sm:$0xff]
      %v2225 = vld [vmem:[#allocation3 + $0xd0] sm:$0xff]
      %v2226 = vld [vmem:[#allocation3 + $0xd8] sm:$0xff]
      %v2227 = vld [vmem:[#allocation3 + $0xe0] sm:$0xff]
      %v2228 = vld [vmem:[#allocation3 + $0xe8] sm:$0xff]
      %v2229 = vld [vmem:[#allocation3 + $0xf0] sm:$0xff]
      %v2230 = vld [vmem:[#allocation3 + $0xf8] sm:$0xff]
      %v2231 = vld [vmem:[%s1085] sm:$0xff]
      %v2232 = vld [vmem:[%s1085 + $0x8] sm:$0xff]
      %v2233 = vld [vmem:[%s1085 + $0x10] sm:$0xff]
      %v2234 = vld [vmem:[%s1085 + $0x18] sm:$0xff]
      %v2235 = vld [vmem:[%s1085 + $0x20] sm:$0xff]
      %v2236 = vld [vmem:[%s1085 + $0x28] sm:$0xff]
      %v2237 = vld [vmem:[%s1085 + $0x30] sm:$0xff]
      %v2238 = vld [vmem:[%s1085 + $0x38] sm:$0xff]
      %v2239 = vld [vmem:[%s1085 + $0x40] sm:$0xff]
      %v2240 = vld [vmem:[%s1085 + $0x48] sm:$0xff]
      %v2241 = vld [vmem:[%s1085 + $0x50] sm:$0xff]
      %v2242 = vld [vmem:[%s1085 + $0x58] sm:$0xff]
      %v2243 = vld [vmem:[%s1085 + $0x60] sm:$0xff]
      %v2244 = vld [vmem:[%s1085 + $0x68] sm:$0xff]
      %v2245 = vld [vmem:[%s1085 + $0x70] sm:$0xff]
      %v2246 = vld [vmem:[%s1085 + $0x78] sm:$0xff]
      %v2247 = vld [vmem:[%s1085 + $0x80] sm:$0xff]
      %v2248 = vld [vmem:[%s1085 + $0x88] sm:$0xff]
      %v2249 = vld [vmem:[%s1085 + $0x90] sm:$0xff]
      %v2250 = vld [vmem:[%s1085 + $0x98] sm:$0xff]
      %v2251 = vld [vmem:[%s1085 + $0xa0] sm:$0xff]
      %v2252 = vld [vmem:[%s1085 + $0xa8] sm:$0xff]
      %v2253 = vld [vmem:[%s1085 + $0xb0] sm:$0xff]
      %v2254 = vld [vmem:[%s1085 + $0xb8] sm:$0xff]
      %v2255 = vld [vmem:[%s1085 + $0xc0] sm:$0xff]
      %v2256 = vld [vmem:[%s1085 + $0xc8] sm:$0xff]
      %v2257 = vld [vmem:[%s1085 + $0xd0] sm:$0xff]
      %v2258 = vld [vmem:[%s1085 + $0xd8] sm:$0xff]
      %v2259 = vld [vmem:[%s1085 + $0xe0] sm:$0xff]
      %v2260 = vld [vmem:[%s1085 + $0xe8] sm:$0xff]
      %v2261 = vld [vmem:[%s1085 + $0xf0] sm:$0xff]
      %v2262 = vld [vmem:[%s1085 + $0xf8] sm:$0xff]
      %v2263 = vmax.f32 %v2199, %v2231
      %v2264 = vmax.f32 %v2200, %v2232
      %v2265 = vmax.f32 %v2201, %v2233
      %v2266 = vmax.f32 %v2202, %v2234
      %v2267 = vmax.f32 %v2203, %v2235
      %v2268 = vmax.f32 %v2204, %v2236
      %v2269 = vmax.f32 %v2205, %v2237
      %v2270 = vmax.f32 %v2206, %v2238
      %v2271 = vmax.f32 %v2207, %v2239
      %v2272 = vmax.f32 %v2208, %v2240
      %v2273 = vmax.f32 %v2209, %v2241
      %v2274 = vmax.f32 %v2210, %v2242
      %v2275 = vmax.f32 %v2211, %v2243
      %v2276 = vmax.f32 %v2212, %v2244
      %v2277 = vmax.f32 %v2213, %v2245
      %v2278 = vmax.f32 %v2214, %v2246
      %v2279 = vmax.f32 %v2215, %v2247
      %v2280 = vmax.f32 %v2216, %v2248
      %v2281 = vmax.f32 %v2217, %v2249
      %v2282 = vmax.f32 %v2218, %v2250
      %v2283 = vmax.f32 %v2219, %v2251
      %v2284 = vmax.f32 %v2220, %v2252
      %v2285 = vmax.f32 %v2221, %v2253
      %v2286 = vmax.f32 %v2222, %v2254
      %v2287 = vmax.f32 %v2223, %v2255
      %v2288 = vmax.f32 %v2224, %v2256
      %v2289 = vmax.f32 %v2225, %v2257
      %v2290 = vmax.f32 %v2226, %v2258
      %v2291 = vmax.f32 %v2227, %v2259
      %v2292 = vmax.f32 %v2228, %v2260
      %v2293 = vmax.f32 %v2229, %v2261
      %v2294 = vmax.f32 %v2230, %v2262
      %v2295 = vld [vmem:[%s1150] sm:$0xff]
      %v2296 = vld [vmem:[%s1150 + $0x8] sm:$0xff]
      %v2297 = vld [vmem:[%s1150 + $0x10] sm:$0xff]
      %v2298 = vld [vmem:[%s1150 + $0x18] sm:$0xff]
      %v2299 = vld [vmem:[%s1150 + $0x20] sm:$0xff]
      %v2300 = vld [vmem:[%s1150 + $0x28] sm:$0xff]
      %v2301 = vld [vmem:[%s1150 + $0x30] sm:$0xff]
      %v2302 = vld [vmem:[%s1150 + $0x38] sm:$0xff]
      %v2303 = vld [vmem:[%s1150 + $0x40] sm:$0xff]
      %v2304 = vld [vmem:[%s1150 + $0x48] sm:$0xff]
      %v2305 = vld [vmem:[%s1150 + $0x50] sm:$0xff]
      %v2306 = vld [vmem:[%s1150 + $0x58] sm:$0xff]
      %v2307 = vld [vmem:[%s1150 + $0x60] sm:$0xff]
      %v2308 = vld [vmem:[%s1150 + $0x68] sm:$0xff]
      %v2309 = vld [vmem:[%s1150 + $0x70] sm:$0xff]
      %v2310 = vld [vmem:[%s1150 + $0x78] sm:$0xff]
      %v2311 = vld [vmem:[%s1150 + $0x80] sm:$0xff]
      %v2312 = vld [vmem:[%s1150 + $0x88] sm:$0xff]
      %v2313 = vld [vmem:[%s1150 + $0x90] sm:$0xff]
      %v2314 = vld [vmem:[%s1150 + $0x98] sm:$0xff]
      %v2315 = vld [vmem:[%s1150 + $0xa0] sm:$0xff]
      %v2316 = vld [vmem:[%s1150 + $0xa8] sm:$0xff]
      %v2317 = vld [vmem:[%s1150 + $0xb0] sm:$0xff]
      %v2318 = vld [vmem:[%s1150 + $0xb8] sm:$0xff]
      %v2319 = vld [vmem:[%s1150 + $0xc0] sm:$0xff]
      %v2320 = vld [vmem:[%s1150 + $0xc8] sm:$0xff]
      %v2321 = vld [vmem:[%s1150 + $0xd0] sm:$0xff]
      %v2322 = vld [vmem:[%s1150 + $0xd8] sm:$0xff]
      %v2323 = vld [vmem:[%s1150 + $0xe0] sm:$0xff]
      %v2324 = vld [vmem:[%s1150 + $0xe8] sm:$0xff]
      %v2325 = vld [vmem:[%s1150 + $0xf0] sm:$0xff]
      %v2326 = vld [vmem:[%s1150 + $0xf8] sm:$0xff]
      %v2327 = vmax.f32 %v2263, %v2295
      %v2328 = vmax.f32 %v2264, %v2296
      %v2329 = vmax.f32 %v2265, %v2297
      %v2330 = vmax.f32 %v2266, %v2298
      %v2331 = vmax.f32 %v2267, %v2299
      %v2332 = vmax.f32 %v2268, %v2300
      %v2333 = vmax.f32 %v2269, %v2301
      %v2334 = vmax.f32 %v2270, %v2302
      %v2335 = vmax.f32 %v2271, %v2303
      %v2336 = vmax.f32 %v2272, %v2304
      %v2337 = vmax.f32 %v2273, %v2305
      %v2338 = vmax.f32 %v2274, %v2306
      %v2339 = vmax.f32 %v2275, %v2307
      %v2340 = vmax.f32 %v2276, %v2308
      %v2341 = vmax.f32 %v2277, %v2309
      %v2342 = vmax.f32 %v2278, %v2310
      %v2343 = vmax.f32 %v2279, %v2311
      %v2344 = vmax.f32 %v2280, %v2312
      %v2345 = vmax.f32 %v2281, %v2313
      %v2346 = vmax.f32 %v2282, %v2314
      %v2347 = vmax.f32 %v2283, %v2315
      %v2348 = vmax.f32 %v2284, %v2316
      %v2349 = vmax.f32 %v2285, %v2317
      %v2350 = vmax.f32 %v2286, %v2318
      %v2351 = vmax.f32 %v2287, %v2319
      %v2352 = vmax.f32 %v2288, %v2320
      %v2353 = vmax.f32 %v2289, %v2321
      %v2354 = vmax.f32 %v2290, %v2322
      %v2355 = vmax.f32 %v2291, %v2323
      %v2356 = vmax.f32 %v2292, %v2324
      %v2357 = vmax.f32 %v2293, %v2325
      %v2358 = vmax.f32 %v2294, %v2326
      %v2359 = vld [vmem:[%s1215] sm:$0xff]
      %v2360 = vld [vmem:[%s1215 + $0x8] sm:$0xff]
      %v2361 = vld [vmem:[%s1215 + $0x10] sm:$0xff]
      %v2362 = vld [vmem:[%s1215 + $0x18] sm:$0xff]
      %v2363 = vld [vmem:[%s1215 + $0x20] sm:$0xff]
      %v2364 = vld [vmem:[%s1215 + $0x28] sm:$0xff]
      %v2365 = vld [vmem:[%s1215 + $0x30] sm:$0xff]
      %v2366 = vld [vmem:[%s1215 + $0x38] sm:$0xff]
      %v2367 = vld [vmem:[%s1215 + $0x40] sm:$0xff]
      %v2368 = vld [vmem:[%s1215 + $0x48] sm:$0xff]
      %v2369 = vld [vmem:[%s1215 + $0x50] sm:$0xff]
      %v2370 = vld [vmem:[%s1215 + $0x58] sm:$0xff]
      %v2371 = vld [vmem:[%s1215 + $0x60] sm:$0xff]
      %v2372 = vld [vmem:[%s1215 + $0x68] sm:$0xff]
      %v2373 = vld [vmem:[%s1215 + $0x70] sm:$0xff]
      %v2374 = vld [vmem:[%s1215 + $0x78] sm:$0xff]
      %v2375 = vld [vmem:[%s1215 + $0x80] sm:$0xff]
      %v2376 = vld [vmem:[%s1215 + $0x88] sm:$0xff]
      %v2377 = vld [vmem:[%s1215 + $0x90] sm:$0xff]
      %v2378 = vld [vmem:[%s1215 + $0x98] sm:$0xff]
      %v2379 = vld [vmem:[%s1215 + $0xa0] sm:$0xff]
      %v2380 = vld [vmem:[%s1215 + $0xa8] sm:$0xff]
      %v2381 = vld [vmem:[%s1215 + $0xb0] sm:$0xff]
      %v2382 = vld [vmem:[%s1215 + $0xb8] sm:$0xff]
      %v2383 = vld [vmem:[%s1215 + $0xc0] sm:$0xff]
      %v2384 = vld [vmem:[%s1215 + $0xc8] sm:$0xff]
      %v2385 = vld [vmem:[%s1215 + $0xd0] sm:$0xff]
      %v2386 = vld [vmem:[%s1215 + $0xd8] sm:$0xff]
      %v2387 = vld [vmem:[%s1215 + $0xe0] sm:$0xff]
      %v2388 = vld [vmem:[%s1215 + $0xe8] sm:$0xff]
      %v2389 = vld [vmem:[%s1215 + $0xf0] sm:$0xff]
      %v2390 = vld [vmem:[%s1215 + $0xf8] sm:$0xff]
      %v2391 = vmax.f32 %v2327, %v2359
      %v2392 = vmax.f32 %v2328, %v2360
      %v2393 = vmax.f32 %v2329, %v2361
      %v2394 = vmax.f32 %v2330, %v2362
      %v2395 = vmax.f32 %v2331, %v2363
      %v2396 = vmax.f32 %v2332, %v2364
      %v2397 = vmax.f32 %v2333, %v2365
      %v2398 = vmax.f32 %v2334, %v2366
      %v2399 = vmax.f32 %v2335, %v2367
      %v2400 = vmax.f32 %v2336, %v2368
      %v2401 = vmax.f32 %v2337, %v2369
      %v2402 = vmax.f32 %v2338, %v2370
      %v2403 = vmax.f32 %v2339, %v2371
      %v2404 = vmax.f32 %v2340, %v2372
      %v2405 = vmax.f32 %v2341, %v2373
      %v2406 = vmax.f32 %v2342, %v2374
      %v2407 = vmax.f32 %v2343, %v2375
      %v2408 = vmax.f32 %v2344, %v2376
      %v2409 = vmax.f32 %v2345, %v2377
      %v2410 = vmax.f32 %v2346, %v2378
      %v2411 = vmax.f32 %v2347, %v2379
      %v2412 = vmax.f32 %v2348, %v2380
      %v2413 = vmax.f32 %v2349, %v2381
      %v2414 = vmax.f32 %v2350, %v2382
      %v2415 = vmax.f32 %v2351, %v2383
      %v2416 = vmax.f32 %v2352, %v2384
      %v2417 = vmax.f32 %v2353, %v2385
      %v2418 = vmax.f32 %v2354, %v2386
      %v2419 = vmax.f32 %v2355, %v2387
      %v2420 = vmax.f32 %v2356, %v2388
      %v2421 = vmax.f32 %v2357, %v2389
      %v2422 = vmax.f32 %v2358, %v2390
      %v2423 = vld [vmem:[%s1280] sm:$0xff]
      %v2424 = vld [vmem:[%s1280 + $0x8] sm:$0xff]
      %v2425 = vld [vmem:[%s1280 + $0x10] sm:$0xff]
      %v2426 = vld [vmem:[%s1280 + $0x18] sm:$0xff]
      %v2427 = vld [vmem:[%s1280 + $0x20] sm:$0xff]
      %v2428 = vld [vmem:[%s1280 + $0x28] sm:$0xff]
      %v2429 = vld [vmem:[%s1280 + $0x30] sm:$0xff]
      %v2430 = vld [vmem:[%s1280 + $0x38] sm:$0xff]
      %v2431 = vld [vmem:[%s1280 + $0x40] sm:$0xff]
      %v2432 = vld [vmem:[%s1280 + $0x48] sm:$0xff]
      %v2433 = vld [vmem:[%s1280 + $0x50] sm:$0xff]
      %v2434 = vld [vmem:[%s1280 + $0x58] sm:$0xff]
      %v2435 = vld [vmem:[%s1280 + $0x60] sm:$0xff]
      %v2436 = vld [vmem:[%s1280 + $0x68] sm:$0xff]
      %v2437 = vld [vmem:[%s1280 + $0x70] sm:$0xff]
      %v2438 = vld [vmem:[%s1280 + $0x78] sm:$0xff]
      %v2439 = vld [vmem:[%s1280 + $0x80] sm:$0xff]
      %v2440 = vld [vmem:[%s1280 + $0x88] sm:$0xff]
      %v2441 = vld [vmem:[%s1280 + $0x90] sm:$0xff]
      %v2442 = vld [vmem:[%s1280 + $0x98] sm:$0xff]
      %v2443 = vld [vmem:[%s1280 + $0xa0] sm:$0xff]
      %v2444 = vld [vmem:[%s1280 + $0xa8] sm:$0xff]
      %v2445 = vld [vmem:[%s1280 + $0xb0] sm:$0xff]
      %v2446 = vld [vmem:[%s1280 + $0xb8] sm:$0xff]
      %v2447 = vld [vmem:[%s1280 + $0xc0] sm:$0xff]
      %v2448 = vld [vmem:[%s1280 + $0xc8] sm:$0xff]
      %v2449 = vld [vmem:[%s1280 + $0xd0] sm:$0xff]
      %v2450 = vld [vmem:[%s1280 + $0xd8] sm:$0xff]
      %v2451 = vld [vmem:[%s1280 + $0xe0] sm:$0xff]
      %v2452 = vld [vmem:[%s1280 + $0xe8] sm:$0xff]
      %v2453 = vld [vmem:[%s1280 + $0xf0] sm:$0xff]
      %v2454 = vld [vmem:[%s1280 + $0xf8] sm:$0xff]
      %v2455 = vmax.f32 %v2391, %v2423
      %v2456 = vmax.f32 %v2392, %v2424
      %v2457 = vmax.f32 %v2393, %v2425
      %v2458 = vmax.f32 %v2394, %v2426
      %v2459 = vmax.f32 %v2395, %v2427
      %v2460 = vmax.f32 %v2396, %v2428
      %v2461 = vmax.f32 %v2397, %v2429
      %v2462 = vmax.f32 %v2398, %v2430
      %v2463 = vmax.f32 %v2399, %v2431
      %v2464 = vmax.f32 %v2400, %v2432
      %v2465 = vmax.f32 %v2401, %v2433
      %v2466 = vmax.f32 %v2402, %v2434
      %v2467 = vmax.f32 %v2403, %v2435
      %v2468 = vmax.f32 %v2404, %v2436
      %v2469 = vmax.f32 %v2405, %v2437
      %v2470 = vmax.f32 %v2406, %v2438
      %v2471 = vmax.f32 %v2407, %v2439
      %v2472 = vmax.f32 %v2408, %v2440
      %v2473 = vmax.f32 %v2409, %v2441
      %v2474 = vmax.f32 %v2410, %v2442
      %v2475 = vmax.f32 %v2411, %v2443
      %v2476 = vmax.f32 %v2412, %v2444
      %v2477 = vmax.f32 %v2413, %v2445
      %v2478 = vmax.f32 %v2414, %v2446
      %v2479 = vmax.f32 %v2415, %v2447
      %v2480 = vmax.f32 %v2416, %v2448
      %v2481 = vmax.f32 %v2417, %v2449
      %v2482 = vmax.f32 %v2418, %v2450
      %v2483 = vmax.f32 %v2419, %v2451
      %v2484 = vmax.f32 %v2420, %v2452
      %v2485 = vmax.f32 %v2421, %v2453
      %v2486 = vmax.f32 %v2422, %v2454
      %v2487 = vld [vmem:[#allocation4] sm:$0xff]
      %v2488 = vld [vmem:[#allocation4 + $0x8] sm:$0xff]
      %v2489 = vld [vmem:[#allocation4 + $0x10] sm:$0xff]
      %v2490 = vld [vmem:[#allocation4 + $0x18] sm:$0xff]
      %v2491 = vld [vmem:[#allocation4 + $0x20] sm:$0xff]
      %v2492 = vld [vmem:[#allocation4 + $0x28] sm:$0xff]
      %v2493 = vld [vmem:[#allocation4 + $0x30] sm:$0xff]
      %v2494 = vld [vmem:[#allocation4 + $0x38] sm:$0xff]
      %v2495 = vld [vmem:[#allocation4 + $0x40] sm:$0xff]
      %v2496 = vld [vmem:[#allocation4 + $0x48] sm:$0xff]
      %v2497 = vld [vmem:[#allocation4 + $0x50] sm:$0xff]
      %v2498 = vld [vmem:[#allocation4 + $0x58] sm:$0xff]
      %v2499 = vld [vmem:[#allocation4 + $0x60] sm:$0xff]
      %v2500 = vld [vmem:[#allocation4 + $0x68] sm:$0xff]
      %v2501 = vld [vmem:[#allocation4 + $0x70] sm:$0xff]
      %v2502 = vld [vmem:[#allocation4 + $0x78] sm:$0xff]
      %v2503 = vld [vmem:[#allocation4 + $0x80] sm:$0xff]
      %v2504 = vld [vmem:[#allocation4 + $0x88] sm:$0xff]
      %v2505 = vld [vmem:[#allocation4 + $0x90] sm:$0xff]
      %v2506 = vld [vmem:[#allocation4 + $0x98] sm:$0xff]
      %v2507 = vld [vmem:[#allocation4 + $0xa0] sm:$0xff]
      %v2508 = vld [vmem:[#allocation4 + $0xa8] sm:$0xff]
      %v2509 = vld [vmem:[#allocation4 + $0xb0] sm:$0xff]
      %v2510 = vld [vmem:[#allocation4 + $0xb8] sm:$0xff]
      %v2511 = vld [vmem:[#allocation4 + $0xc0] sm:$0xff]
      %v2512 = vld [vmem:[#allocation4 + $0xc8] sm:$0xff]
      %v2513 = vld [vmem:[#allocation4 + $0xd0] sm:$0xff]
      %v2514 = vld [vmem:[#allocation4 + $0xd8] sm:$0xff]
      %v2515 = vld [vmem:[#allocation4 + $0xe0] sm:$0xff]
      %v2516 = vld [vmem:[#allocation4 + $0xe8] sm:$0xff]
      %v2517 = vld [vmem:[#allocation4 + $0xf0] sm:$0xff]
      %v2518 = vld [vmem:[#allocation4 + $0xf8] sm:$0xff]
      %s2519 = scalar_lea.vmem %s1, 8
      %v2520 = vld [vmem:[%s2519] sm:$0xf]
      %v2522 = vsel %vm172, %v2455, 0
      %v2525 = vsel %vm172, %v2456, 0
      %v2528 = vsel %vm172, %v2457, 0
      %v2531 = vsel %vm172, %v2458, 0
      %v2534 = vsel %vm172, %v2459, 0
      %v2537 = vsel %vm172, %v2460, 0
      %v2540 = vsel %vm172, %v2461, 0
      %v2543 = vsel %vm172, %v2462, 0
      %v2546 = vsel %vm172, %v2463, 0
      %v2549 = vsel %vm172, %v2464, 0
      %v2552 = vsel %vm172, %v2465, 0
      %v2555 = vsel %vm172, %v2466, 0
      %v2558 = vsel %vm172, %v2467, 0
      %v2561 = vsel %vm172, %v2468, 0
      %v2564 = vsel %vm172, %v2469, 0
      %v2567 = vsel %vm172, %v2470, 0
      %v2570 = vsel %vm172, %v2471, 0
      %v2573 = vsel %vm172, %v2472, 0
      %v2576 = vsel %vm172, %v2473, 0
      %v2579 = vsel %vm172, %v2474, 0
      %v2582 = vsel %vm172, %v2475, 0
      %v2585 = vsel %vm172, %v2476, 0
      %v2588 = vsel %vm172, %v2477, 0
      %v2591 = vsel %vm172, %v2478, 0
      %v2594 = vsel %vm172, %v2479, 0
      %v2597 = vsel %vm172, %v2480, 0
      %v2600 = vsel %vm172, %v2481, 0
      %v2603 = vsel %vm172, %v2482, 0
      %v2606 = vsel %vm172, %v2483, 0
      %v2609 = vsel %vm172, %v2484, 0
      %v2612 = vsel %vm172, %v2485, 0
      %v2615 = vsel %vm172, %v2486, 0
      %v2618 = vsel %vm391, %v2520, 0
      %2620 = vmatprep.subr.mxu0 0.0
      %2621 = vmatpush1.msra.mxu0 %v2618
      %2622 = vmatprep.subr.mxu0 0.0
      %2623 = vmatpush1.msra.mxu0 0.0
      %2624 = vmatprep.subr.mxu0 0.0
      %2625 = vmatpush1.msra.mxu0 0.0
      %2626 = vmatprep.subr.mxu0 0.0
      %2627 = vmatpush1.msra.mxu0 0.0
      %2628 = vmatprep.subr.mxu0 0.0
      %2629 = vmatpush1.msra.mxu0 0.0
      %2630 = vmatprep.subr.mxu0 0.0
      %2631 = vmatpush1.msra.mxu0 0.0
      %2632 = vmatprep.subr.mxu0 0.0
      %2633 = vmatpush1.msra.mxu0 0.0
      %2634 = vmatprep.subr.mxu0 0.0
      %2635 = vmatpush1.msra.mxu0 0.0
      %2636 = vmatprep.subr.mxu0 0.0
      %2637 = vmatpush1.msra.mxu0 0.0
      %2638 = vmatprep.subr.mxu0 0.0
      %2639 = vmatpush1.msra.mxu0 0.0
      %2640 = vmatprep.subr.mxu0 0.0
      %2641 = vmatpush1.msra.mxu0 0.0
      %2642 = vmatprep.subr.mxu0 0.0
      %2643 = vmatpush1.msra.mxu0 0.0
      %2644 = vmatprep.subr.mxu0 0.0
      %2645 = vmatpush1.msra.mxu0 0.0
      %2646 = vmatprep.subr.mxu0 0.0
      %2647 = vmatpush1.msra.mxu0 0.0
      %2648 = vmatprep.subr.mxu0 0.0
      %2649 = vmatpush1.msra.mxu0 0.0
      %2650 = vmatprep.subr.mxu0 0.0
      %2651 = vmatpush1.msra.mxu0 0.0
      %2652 = vmatprep.subr.mxu0 0.0
      %2653 = vmatpush1.msra.mxu0 0.0
      %2654 = vmatprep.subr.mxu0 0.0
      %2655 = vmatpush1.msra.mxu0 0.0
      %2656 = vmatprep.subr.mxu0 0.0
      %2657 = vmatpush1.msra.mxu0 0.0
      %2658 = vmatprep.subr.mxu0 0.0
      %2659 = vmatpush1.msra.mxu0 0.0
      %2660 = vmatprep.subr.mxu0 0.0
      %2661 = vmatpush1.msra.mxu0 0.0
      %2662 = vmatprep.subr.mxu0 0.0
      %2663 = vmatpush1.msra.mxu0 0.0
      %2664 = vmatprep.subr.mxu0 0.0
      %2665 = vmatpush1.msra.mxu0 0.0
      %2666 = vmatprep.subr.mxu0 0.0
      %2667 = vmatpush1.msra.mxu0 0.0
      %2668 = vmatprep.subr.mxu0 0.0
      %2669 = vmatpush1.msra.mxu0 0.0
      %2670 = vmatprep.subr.mxu0 0.0
      %2671 = vmatpush1.msra.mxu0 0.0
      %2672 = vmatprep.subr.mxu0 0.0
      %2673 = vmatpush1.msra.mxu0 0.0
      %2674 = vmatprep.subr.mxu0 0.0
      %2675 = vmatpush1.msra.mxu0 0.0
      %2676 = vmatprep.subr.mxu0 0.0
      %2677 = vmatpush1.msra.mxu0 0.0
      %2678 = vmatprep.subr.mxu0 0.0
      %2679 = vmatpush1.msra.mxu0 0.0
      %2680 = vmatprep.subr.mxu0 0.0
      %2681 = vmatpush1.msra.mxu0 0.0
      %2682 = vmatprep.subr.mxu0 0.0
      %2683 = vmatpush1.msra.mxu0 0.0
      %2684 = vmatprep.mubr.f32.mxu0 0.0
      %2685 = vmatmul.mubr.f32.gmra.mrb[0].mxu0 %v2522
      %v2686 = vpop.f32.mrb[0].mxu0
      %v2687 = vadd.f32 0.0, %v2686
      %v2688 = vpop.f32.mrb[0].mxu0
      %2689 = vmatprep.mubr.f32.mxu0 0.0
      %2690 = vmatmul.mubr.f32.gmra.mrb[0].mxu0 %v2525
      %v2691 = vpop.f32.mrb[0].mxu0
      %v2692 = vadd.f32 0.0, %v2691
      %v2693 = vpop.f32.mrb[0].mxu0
      %2694 = vmatprep.mubr.f32.mxu0 0.0
      %2695 = vmatmul.mubr.f32.gmra.mrb[0].mxu0 %v2528
      %v2696 = vpop.f32.mrb[0].mxu0
      %v2697 = vadd.f32 0.0, %v2696
      %v2698 = vpop.f32.mrb[0].mxu0
      %2699 = vmatprep.mubr.f32.mxu0 0.0
      %2700 = vmatmul.mubr.f32.gmra.mrb[0].mxu0 %v2531
      %v2701 = vpop.f32.mrb[0].mxu0
      %v2702 = vadd.f32 0.0, %v2701
      %v2703 = vpop.f32.mrb[0].mxu0
      %2704 = vmatprep.mubr.f32.mxu0 0.0
      %2705 = vmatmul.mubr.f32.gmra.mrb[0].mxu0 %v2534
      %v2706 = vpop.f32.mrb[0].mxu0
      %v2707 = vadd.f32 0.0, %v2706
      %v2708 = vpop.f32.mrb[0].mxu0
      %2709 = vmatprep.mubr.f32.mxu0 0.0
      %2710 = vmatmul.mubr.f32.gmra.mrb[0].mxu0 %v2537
      %v2711 = vpop.f32.mrb[0].mxu0
      %v2712 = vadd.f32 0.0, %v2711
      %v2713 = vpop.f32.mrb[0].mxu0
      %2714 = vmatprep.mubr.f32.mxu0 0.0
      %2715 = vmatmul.mubr.f32.gmra.mrb[0].mxu0 %v2540
      %v2716 = vpop.f32.mrb[0].mxu0
      %v2717 = vadd.f32 0.0, %v2716
      %v2718 = vpop.f32.mrb[0].mxu0
      %2719 = vmatprep.mubr.f32.mxu0 0.0
      %2720 = vmatmul.mubr.f32.gmra.mrb[0].mxu0 %v2543
      %v2721 = vpop.f32.mrb[0].mxu0
      %v2722 = vadd.f32 0.0, %v2721
      %v2723 = vpop.f32.mrb[0].mxu0
      %2724 = vmatprep.mubr.f32.mxu0 0.0
      %2725 = vmatmul.mubr.f32.gmra.mrb[0].mxu0 %v2546
      %v2726 = vpop.f32.mrb[0].mxu0
      %v2727 = vadd.f32 0.0, %v2726
      %v2728 = vpop.f32.mrb[0].mxu0
      %2729 = vmatprep.mubr.f32.mxu0 0.0
      %2730 = vmatmul.mubr.f32.gmra.mrb[0].mxu0 %v2549
      %v2731 = vpop.f32.mrb[0].mxu0
      %v2732 = vadd.f32 0.0, %v2731
      %v2733 = vpop.f32.mrb[0].mxu0
      %2734 = vmatprep.mubr.f32.mxu0 0.0
      %2735 = vmatmul.mubr.f32.gmra.mrb[0].mxu0 %v2552
      %v2736 = vpop.f32.mrb[0].mxu0
      %v2737 = vadd.f32 0.0, %v2736
      %v2738 = vpop.f32.mrb[0].mxu0
      %2739 = vmatprep.mubr.f32.mxu0 0.0
      %2740 = vmatmul.mubr.f32.gmra.mrb[0].mxu0 %v2555
      %v2741 = vpop.f32.mrb[0].mxu0
      %v2742 = vadd.f32 0.0, %v2741
      %v2743 = vpop.f32.mrb[0].mxu0
      %2744 = vmatprep.mubr.f32.mxu0 0.0
      %2745 = vmatmul.mubr.f32.gmra.mrb[0].mxu0 %v2558
      %v2746 = vpop.f32.mrb[0].mxu0
      %v2747 = vadd.f32 0.0, %v2746
      %v2748 = vpop.f32.mrb[0].mxu0
      %2749 = vmatprep.mubr.f32.mxu0 0.0
      %2750 = vmatmul.mubr.f32.gmra.mrb[0].mxu0 %v2561
      %v2751 = vpop.f32.mrb[0].mxu0
      %v2752 = vadd.f32 0.0, %v2751
      %v2753 = vpop.f32.mrb[0].mxu0
      %2754 = vmatprep.mubr.f32.mxu0 0.0
      %2755 = vmatmul.mubr.f32.gmra.mrb[0].mxu0 %v2564
      %v2756 = vpop.f32.mrb[0].mxu0
      %v2757 = vadd.f32 0.0, %v2756
      %v2758 = vpop.f32.mrb[0].mxu0
      %2759 = vmatprep.mubr.f32.mxu0 0.0
      %2760 = vmatmul.mubr.f32.gmra.mrb[0].mxu0 %v2567
      %v2761 = vpop.f32.mrb[0].mxu0
      %v2762 = vadd.f32 0.0, %v2761
      %v2763 = vpop.f32.mrb[0].mxu0
      %2764 = vmatprep.mubr.f32.mxu0 0.0
      %2765 = vmatmul.mubr.f32.gmra.mrb[0].mxu0 %v2570
      %v2766 = vpop.f32.mrb[0].mxu0
      %v2767 = vadd.f32 0.0, %v2766
      %v2768 = vpop.f32.mrb[0].mxu0
      %2769 = vmatprep.mubr.f32.mxu0 0.0
      %2770 = vmatmul.mubr.f32.gmra.mrb[0].mxu0 %v2573
      %v2771 = vpop.f32.mrb[0].mxu0
      %v2772 = vadd.f32 0.0, %v2771
      %v2773 = vpop.f32.mrb[0].mxu0
      %2774 = vmatprep.mubr.f32.mxu0 0.0
      %2775 = vmatmul.mubr.f32.gmra.mrb[0].mxu0 %v2576
      %v2776 = vpop.f32.mrb[0].mxu0
      %v2777 = vadd.f32 0.0, %v2776
      %v2778 = vpop.f32.mrb[0].mxu0
      %2779 = vmatprep.mubr.f32.mxu0 0.0
      %2780 = vmatmul.mubr.f32.gmra.mrb[0].mxu0 %v2579
      %v2781 = vpop.f32.mrb[0].mxu0
      %v2782 = vadd.f32 0.0, %v2781
      %v2783 = vpop.f32.mrb[0].mxu0
      %2784 = vmatprep.mubr.f32.mxu0 0.0
      %2785 = vmatmul.mubr.f32.gmra.mrb[0].mxu0 %v2582
      %v2786 = vpop.f32.mrb[0].mxu0
      %v2787 = vadd.f32 0.0, %v2786
      %v2788 = vpop.f32.mrb[0].mxu0
      %2789 = vmatprep.mubr.f32.mxu0 0.0
      %2790 = vmatmul.mubr.f32.gmra.mrb[0].mxu0 %v2585
      %v2791 = vpop.f32.mrb[0].mxu0
      %v2792 = vadd.f32 0.0, %v2791
      %v2793 = vpop.f32.mrb[0].mxu0
      %2794 = vmatprep.mubr.f32.mxu0 0.0
      %2795 = vmatmul.mubr.f32.gmra.mrb[0].mxu0 %v2588
      %v2796 = vpop.f32.mrb[0].mxu0
      %v2797 = vadd.f32 0.0, %v2796
      %v2798 = vpop.f32.mrb[0].mxu0
      %2799 = vmatprep.mubr.f32.mxu0 0.0
      %2800 = vmatmul.mubr.f32.gmra.mrb[0].mxu0 %v2591
      %v2801 = vpop.f32.mrb[0].mxu0
      %v2802 = vadd.f32 0.0, %v2801
      %v2803 = vpop.f32.mrb[0].mxu0
      %2804 = vmatprep.mubr.f32.mxu0 0.0
      %2805 = vmatmul.mubr.f32.gmra.mrb[0].mxu0 %v2594
      %v2806 = vpop.f32.mrb[0].mxu0
      %v2807 = vadd.f32 0.0, %v2806
      %v2808 = vpop.f32.mrb[0].mxu0
      %2809 = vmatprep.mubr.f32.mxu0 0.0
      %2810 = vmatmul.mubr.f32.gmra.mrb[0].mxu0 %v2597
      %v2811 = vpop.f32.mrb[0].mxu0
      %v2812 = vadd.f32 0.0, %v2811
      %v2813 = vpop.f32.mrb[0].mxu0
      %2814 = vmatprep.mubr.f32.mxu0 0.0
      %2815 = vmatmul.mubr.f32.gmra.mrb[0].mxu0 %v2600
      %v2816 = vpop.f32.mrb[0].mxu0
      %v2817 = vadd.f32 0.0, %v2816
      %v2818 = vpop.f32.mrb[0].mxu0
      %2819 = vmatprep.mubr.f32.mxu0 0.0
      %2820 = vmatmul.mubr.f32.gmra.mrb[0].mxu0 %v2603
      %v2821 = vpop.f32.mrb[0].mxu0
      %v2822 = vadd.f32 0.0, %v2821
      %v2823 = vpop.f32.mrb[0].mxu0
      %2824 = vmatprep.mubr.f32.mxu0 0.0
      %2825 = vmatmul.mubr.f32.gmra.mrb[0].mxu0 %v2606
      %v2826 = vpop.f32.mrb[0].mxu0
      %v2827 = vadd.f32 0.0, %v2826
      %v2828 = vpop.f32.mrb[0].mxu0
      %2829 = vmatprep.mubr.f32.mxu0 0.0
      %2830 = vmatmul.mubr.f32.gmra.mrb[0].mxu0 %v2609
      %v2831 = vpop.f32.mrb[0].mxu0
      %v2832 = vadd.f32 0.0, %v2831
      %v2833 = vpop.f32.mrb[0].mxu0
      %2834 = vmatprep.mubr.f32.mxu0 0.0
      %2835 = vmatmul.mubr.f32.gmra.mrb[0].mxu0 %v2612
      %v2836 = vpop.f32.mrb[0].mxu0
      %v2837 = vadd.f32 0.0, %v2836
      %v2838 = vpop.f32.mrb[0].mxu0
      %2839 = vmatprep.mubr.f32.mxu0 0.0
      %2840 = vmatmul.mubr.f32.gmra.mrb[0].mxu0 %v2615
      %v2841 = vpop.f32.mrb[0].mxu0
      %v2842 = vadd.f32 0.0, %v2841
      %v2843 = vpop.f32.mrb[0].mxu0
      %2844 = vdwg.mxu0
      %v2845 = vadd.f32 %v2487, %v2687
      %v2846 = vadd.f32 %v2488, %v2692
      %v2847 = vadd.f32 %v2489, %v2697
      %v2848 = vadd.f32 %v2490, %v2702
      %v2849 = vadd.f32 %v2491, %v2707
      %v2850 = vadd.f32 %v2492, %v2712
      %v2851 = vadd.f32 %v2493, %v2717
      %v2852 = vadd.f32 %v2494, %v2722
      %v2853 = vadd.f32 %v2495, %v2727
      %v2854 = vadd.f32 %v2496, %v2732
      %v2855 = vadd.f32 %v2497, %v2737
      %v2856 = vadd.f32 %v2498, %v2742
      %v2857 = vadd.f32 %v2499, %v2747
      %v2858 = vadd.f32 %v2500, %v2752
      %v2859 = vadd.f32 %v2501, %v2757
      %v2860 = vadd.f32 %v2502, %v2762
      %v2861 = vadd.f32 %v2503, %v2767
      %v2862 = vadd.f32 %v2504, %v2772
      %v2863 = vadd.f32 %v2505, %v2777
      %v2864 = vadd.f32 %v2506, %v2782
      %v2865 = vadd.f32 %v2507, %v2787
      %v2866 = vadd.f32 %v2508, %v2792
      %v2867 = vadd.f32 %v2509, %v2797
      %v2868 = vadd.f32 %v2510, %v2802
      %v2869 = vadd.f32 %v2511, %v2807
      %v2870 = vadd.f32 %v2512, %v2812
      %v2871 = vadd.f32 %v2513, %v2817
      %v2872 = vadd.f32 %v2514, %v2822
      %v2873 = vadd.f32 %v2515, %v2827
      %v2874 = vadd.f32 %v2516, %v2832
      %v2875 = vadd.f32 %v2517, %v2837
      %v2876 = vadd.f32 %v2518, %v2842
      %2877 = vst.msk [vmem:[#allocation4] sm:$0xff] %vm620, %v2845
      %2878 = vst.msk [vmem:[#allocation4 + $0x8] sm:$0xff] %vm620, %v2846
      %2879 = vst.msk [vmem:[#allocation4 + $0x10] sm:$0xff] %vm620, %v2847
      %2880 = vst.msk [vmem:[#allocation4 + $0x18] sm:$0xff] %vm620, %v2848
      %2881 = vst.msk [vmem:[#allocation4 + $0x20] sm:$0xff] %vm620, %v2849
      %2882 = vst.msk [vmem:[#allocation4 + $0x28] sm:$0xff] %vm620, %v2850
      %2883 = vst.msk [vmem:[#allocation4 + $0x30] sm:$0xff] %vm620, %v2851
      %2884 = vst.msk [vmem:[#allocation4 + $0x38] sm:$0xff] %vm620, %v2852
      %2885 = vst.msk [vmem:[#allocation4 + $0x40] sm:$0xff] %vm620, %v2853
      %2886 = vst.msk [vmem:[#allocation4 + $0x48] sm:$0xff] %vm620, %v2854
      %2887 = vst.msk [vmem:[#allocation4 + $0x50] sm:$0xff] %vm620, %v2855
      %2888 = vst.msk [vmem:[#allocation4 + $0x58] sm:$0xff] %vm620, %v2856
      %2889 = vst.msk [vmem:[#allocation4 + $0x60] sm:$0xff] %vm620, %v2857
      %2890 = vst.msk [vmem:[#allocation4 + $0x68] sm:$0xff] %vm620, %v2858
      %2891 = vst.msk [vmem:[#allocation4 + $0x70] sm:$0xff] %vm620, %v2859
      %2892 = vst.msk [vmem:[#allocation4 + $0x78] sm:$0xff] %vm620, %v2860
      %2893 = vst.msk [vmem:[#allocation4 + $0x80] sm:$0xff] %vm620, %v2861
      %2894 = vst.msk [vmem:[#allocation4 + $0x88] sm:$0xff] %vm620, %v2862
      %2895 = vst.msk [vmem:[#allocation4 + $0x90] sm:$0xff] %vm620, %v2863
      %2896 = vst.msk [vmem:[#allocation4 + $0x98] sm:$0xff] %vm620, %v2864
      %2897 = vst.msk [vmem:[#allocation4 + $0xa0] sm:$0xff] %vm620, %v2865
      %2898 = vst.msk [vmem:[#allocation4 + $0xa8] sm:$0xff] %vm620, %v2866
      %2899 = vst.msk [vmem:[#allocation4 + $0xb0] sm:$0xff] %vm620, %v2867
      %2900 = vst.msk [vmem:[#allocation4 + $0xb8] sm:$0xff] %vm620, %v2868
      %2901 = vst.msk [vmem:[#allocation4 + $0xc0] sm:$0xff] %vm620, %v2869
      %2902 = vst.msk [vmem:[#allocation4 + $0xc8] sm:$0xff] %vm620, %v2870
      %2903 = vst.msk [vmem:[#allocation4 + $0xd0] sm:$0xff] %vm620, %v2871
      %2904 = vst.msk [vmem:[#allocation4 + $0xd8] sm:$0xff] %vm620, %v2872
      %2905 = vst.msk [vmem:[#allocation4 + $0xe0] sm:$0xff] %vm620, %v2873
      %2906 = vst.msk [vmem:[#allocation4 + $0xe8] sm:$0xff] %vm620, %v2874
      %2907 = vst.msk [vmem:[#allocation4 + $0xf0] sm:$0xff] %vm620, %v2875
      %2908 = vst.msk [vmem:[#allocation4 + $0xf8] sm:$0xff] %vm620, %v2876
      %2909 = vst.msk [vmem:[%s190 + $0x8] sm:$0xff] %vm172, %v2455
      %2910 = vst.msk [vmem:[%s190 + $0x10] sm:$0xff] %vm172, %v2456
      %2911 = vst.msk [vmem:[%s190 + $0x28] sm:$0xff] %vm172, %v2457
      %2912 = vst.msk [vmem:[%s190 + $0x30] sm:$0xff] %vm172, %v2458
      %2913 = vst.msk [vmem:[%s190 + $0x48] sm:$0xff] %vm172, %v2459
      %2914 = vst.msk [vmem:[%s190 + $0x50] sm:$0xff] %vm172, %v2460
      %2915 = vst.msk [vmem:[%s190 + $0x68] sm:$0xff] %vm172, %v2461
      %2916 = vst.msk [vmem:[%s190 + $0x70] sm:$0xff] %vm172, %v2462
      %2917 = vst.msk [vmem:[%s190 + $0x88] sm:$0xff] %vm172, %v2463
      %2918 = vst.msk [vmem:[%s190 + $0x90] sm:$0xff] %vm172, %v2464
      %2919 = vst.msk [vmem:[%s190 + $0xa8] sm:$0xff] %vm172, %v2465
      %2920 = vst.msk [vmem:[%s190 + $0xb0] sm:$0xff] %vm172, %v2466
      %2921 = vst.msk [vmem:[%s190 + $0xc8] sm:$0xff] %vm172, %v2467
      %2922 = vst.msk [vmem:[%s190 + $0xd0] sm:$0xff] %vm172, %v2468
      %2923 = vst.msk [vmem:[%s190 + $0xe8] sm:$0xff] %vm172, %v2469
      %2924 = vst.msk [vmem:[%s190 + $0xf0] sm:$0xff] %vm172, %v2470
      %2925 = vst.msk [vmem:[%s190 + $0x108] sm:$0xff] %vm172, %v2471
      %2926 = vst.msk [vmem:[%s190 + $0x110] sm:$0xff] %vm172, %v2472
      %2927 = vst.msk [vmem:[%s190 + $0x128] sm:$0xff] %vm172, %v2473
      %2928 = vst.msk [vmem:[%s190 + $0x130] sm:$0xff] %vm172, %v2474
      %2929 = vst.msk [vmem:[%s190 + $0x148] sm:$0xff] %vm172, %v2475
      %2930 = vst.msk [vmem:[%s190 + $0x150] sm:$0xff] %vm172, %v2476
      %2931 = vst.msk [vmem:[%s190 + $0x168] sm:$0xff] %vm172, %v2477
      %2932 = vst.msk [vmem:[%s190 + $0x170] sm:$0xff] %vm172, %v2478
      %2933 = vst.msk [vmem:[%s190 + $0x188] sm:$0xff] %vm172, %v2479
      %2934 = vst.msk [vmem:[%s190 + $0x190] sm:$0xff] %vm172, %v2480
      %2935 = vst.msk [vmem:[%s190 + $0x1a8] sm:$0xff] %vm172, %v2481
      %2936 = vst.msk [vmem:[%s190 + $0x1b0] sm:$0xff] %vm172, %v2482
      %2937 = vst.msk [vmem:[%s190 + $0x1c8] sm:$0xff] %vm172, %v2483
      %2938 = vst.msk [vmem:[%s190 + $0x1d0] sm:$0xff] %vm172, %v2484
      %2939 = vst.msk [vmem:[%s190 + $0x1e8] sm:$0xff] %vm172, %v2485
      %2940 = vst.msk [vmem:[%s190 + $0x1f0] sm:$0xff] %vm172, %v2486
      %v2941 = vld [vmem:[%s171 + $0x6] sm:$0xff]
      %v2942 = vld [vmem:[%s171 + $0xe] sm:$0xff]
      %v2943 = vld [vmem:[%s171 + $0x26] sm:$0xff]
      %v2944 = vld [vmem:[%s171 + $0x2e] sm:$0xff]
      %v2945 = vld [vmem:[%s171 + $0x46] sm:$0xff]
      %v2946 = vld [vmem:[%s171 + $0x4e] sm:$0xff]
      %v2947 = vld [vmem:[%s171 + $0x66] sm:$0xff]
      %v2948 = vld [vmem:[%s171 + $0x6e] sm:$0xff]
      %v2949 = vld [vmem:[%s171 + $0x86] sm:$0xff]
      %v2950 = vld [vmem:[%s171 + $0x8e] sm:$0xff]
      %v2951 = vld [vmem:[%s171 + $0xa6] sm:$0xff]
      %v2952 = vld [vmem:[%s171 + $0xae] sm:$0xff]
      %v2953 = vld [vmem:[%s171 + $0xc6] sm:$0xff]
      %v2954 = vld [vmem:[%s171 + $0xce] sm:$0xff]
      %v2955 = vld [vmem:[%s171 + $0xe6] sm:$0xff]
      %v2956 = vld [vmem:[%s171 + $0xee] sm:$0xff]
      %v2957 = vld [vmem:[%s171 + $0x106] sm:$0xff]
      %v2958 = vld [vmem:[%s171 + $0x10e] sm:$0xff]
      %v2959 = vld [vmem:[%s171 + $0x126] sm:$0xff]
      %v2960 = vld [vmem:[%s171 + $0x12e] sm:$0xff]
      %v2961 = vld [vmem:[%s171 + $0x146] sm:$0xff]
      %v2962 = vld [vmem:[%s171 + $0x14e] sm:$0xff]
      %v2963 = vld [vmem:[%s171 + $0x166] sm:$0xff]
      %v2964 = vld [vmem:[%s171 + $0x16e] sm:$0xff]
      %v2965 = vld [vmem:[%s171 + $0x186] sm:$0xff]
      %v2966 = vld [vmem:[%s171 + $0x18e] sm:$0xff]
      %v2967 = vld [vmem:[%s171 + $0x1a6] sm:$0xff]
      %v2968 = vld [vmem:[%s171 + $0x1ae] sm:$0xff]
      %v2969 = vld [vmem:[%s171 + $0x1c6] sm:$0xff]
      %v2970 = vld [vmem:[%s171 + $0x1ce] sm:$0xff]
      %v2971 = vld [vmem:[%s171 + $0x1e6] sm:$0xff]
      %v2972 = vld [vmem:[%s171 + $0x1ee] sm:$0xff]
      %v2973 = vld [vmem:[%s171 + $0x206] sm:$0xff]
      %v2974 = vld [vmem:[%s171 + $0x20e] sm:$0xff]
      %v2975 = vld [vmem:[%s171 + $0x226] sm:$0xff]
      %v2976 = vld [vmem:[%s171 + $0x22e] sm:$0xff]
      %v2977 = vld [vmem:[%s171 + $0x246] sm:$0xff]
      %v2978 = vld [vmem:[%s171 + $0x24e] sm:$0xff]
      %v2979 = vld [vmem:[%s171 + $0x266] sm:$0xff]
      %v2980 = vld [vmem:[%s171 + $0x26e] sm:$0xff]
      %v2981 = vld [vmem:[%s171 + $0x7] sm:$0xff]
      %v2982 = vld [vmem:[%s171 + $0xf] sm:$0xff]
      %v2983 = vld [vmem:[%s171 + $0x27] sm:$0xff]
      %v2984 = vld [vmem:[%s171 + $0x2f] sm:$0xff]
      %v2985 = vld [vmem:[%s171 + $0x47] sm:$0xff]
      %v2986 = vld [vmem:[%s171 + $0x4f] sm:$0xff]
      %v2987 = vld [vmem:[%s171 + $0x67] sm:$0xff]
      %v2988 = vld [vmem:[%s171 + $0x6f] sm:$0xff]
      %v2989 = vld [vmem:[%s171 + $0x87] sm:$0xff]
      %v2990 = vld [vmem:[%s171 + $0x8f] sm:$0xff]
      %v2991 = vld [vmem:[%s171 + $0xa7] sm:$0xff]
      %v2992 = vld [vmem:[%s171 + $0xaf] sm:$0xff]
      %v2993 = vld [vmem:[%s171 + $0xc7] sm:$0xff]
      %v2994 = vld [vmem:[%s171 + $0xcf] sm:$0xff]
      %v2995 = vld [vmem:[%s171 + $0xe7] sm:$0xff]
      %v2996 = vld [vmem:[%s171 + $0xef] sm:$0xff]
      %v2997 = vld [vmem:[%s171 + $0x107] sm:$0xff]
      %v2998 = vld [vmem:[%s171 + $0x10f] sm:$0xff]
      %v2999 = vld [vmem:[%s171 + $0x127] sm:$0xff]
      %v3000 = vld [vmem:[%s171 + $0x12f] sm:$0xff]
      %v3001 = vld [vmem:[%s171 + $0x147] sm:$0xff]
      %v3002 = vld [vmem:[%s171 + $0x14f] sm:$0xff]
      %v3003 = vld [vmem:[%s171 + $0x167] sm:$0xff]
      %v3004 = vld [vmem:[%s171 + $0x16f] sm:$0xff]
      %v3005 = vld [vmem:[%s171 + $0x187] sm:$0xff]
      %v3006 = vld [vmem:[%s171 + $0x18f] sm:$0xff]
      %v3007 = vld [vmem:[%s171 + $0x1a7] sm:$0xff]
      %v3008 = vld [vmem:[%s171 + $0x1af] sm:$0xff]
      %v3009 = vld [vmem:[%s171 + $0x1c7] sm:$0xff]
      %v3010 = vld [vmem:[%s171 + $0x1cf] sm:$0xff]
      %v3011 = vld [vmem:[%s171 + $0x1e7] sm:$0xff]
      %v3012 = vld [vmem:[%s171 + $0x1ef] sm:$0xff]
      %v3013 = vld [vmem:[%s171 + $0x207] sm:$0xff]
      %v3014 = vld [vmem:[%s171 + $0x20f] sm:$0xff]
      %v3015 = vld [vmem:[%s171 + $0x227] sm:$0xff]
      %v3016 = vld [vmem:[%s171 + $0x22f] sm:$0xff]
      %v3017 = vld [vmem:[%s171 + $0x247] sm:$0xff]
      %v3018 = vld [vmem:[%s171 + $0x24f] sm:$0xff]
      %v3019 = vld [vmem:[%s171 + $0x267] sm:$0xff]
      %v3020 = vld [vmem:[%s171 + $0x26f] sm:$0xff]
      %v3021 = vmax.f32 %v2941, %v2981
      %v3022 = vmax.f32 %v2942, %v2982
      %v3023 = vmax.f32 %v2943, %v2983
      %v3024 = vmax.f32 %v2944, %v2984
      %v3025 = vmax.f32 %v2945, %v2985
      %v3026 = vmax.f32 %v2946, %v2986
      %v3027 = vmax.f32 %v2947, %v2987
      %v3028 = vmax.f32 %v2948, %v2988
      %v3029 = vmax.f32 %v2949, %v2989
      %v3030 = vmax.f32 %v2950, %v2990
      %v3031 = vmax.f32 %v2951, %v2991
      %v3032 = vmax.f32 %v2952, %v2992
      %v3033 = vmax.f32 %v2953, %v2993
      %v3034 = vmax.f32 %v2954, %v2994
      %v3035 = vmax.f32 %v2955, %v2995
      %v3036 = vmax.f32 %v2956, %v2996
      %v3037 = vmax.f32 %v2957, %v2997
      %v3038 = vmax.f32 %v2958, %v2998
      %v3039 = vmax.f32 %v2959, %v2999
      %v3040 = vmax.f32 %v2960, %v3000
      %v3041 = vmax.f32 %v2961, %v3001
      %v3042 = vmax.f32 %v2962, %v3002
      %v3043 = vmax.f32 %v2963, %v3003
      %v3044 = vmax.f32 %v2964, %v3004
      %v3045 = vmax.f32 %v2965, %v3005
      %v3046 = vmax.f32 %v2966, %v3006
      %v3047 = vmax.f32 %v2967, %v3007
      %v3048 = vmax.f32 %v2968, %v3008
      %v3049 = vmax.f32 %v2969, %v3009
      %v3050 = vmax.f32 %v2970, %v3010
      %v3051 = vmax.f32 %v2971, %v3011
      %v3052 = vmax.f32 %v2972, %v3012
      %v3053 = vmax.f32 %v2973, %v3013
      %v3054 = vmax.f32 %v2974, %v3014
      %v3055 = vmax.f32 %v2975, %v3015
      %v3056 = vmax.f32 %v2976, %v3016
      %v3057 = vmax.f32 %v2977, %v3017
      %v3058 = vmax.f32 %v2978, %v3018
      %v3059 = vmax.f32 %v2979, %v3019
      %v3060 = vmax.f32 %v2980, %v3020
      %v3061 = vld [vmem:[%s171 + $0x8] sm:$0xff]
      %v3062 = vld [vmem:[%s171 + $0x10] sm:$0xff]
      %v3063 = vld [vmem:[%s171 + $0x28] sm:$0xff]
      %v3064 = vld [vmem:[%s171 + $0x30] sm:$0xff]
      %v3065 = vld [vmem:[%s171 + $0x48] sm:$0xff]
      %v3066 = vld [vmem:[%s171 + $0x50] sm:$0xff]
      %v3067 = vld [vmem:[%s171 + $0x68] sm:$0xff]
      %v3068 = vld [vmem:[%s171 + $0x70] sm:$0xff]
      %v3069 = vld [vmem:[%s171 + $0x88] sm:$0xff]
      %v3070 = vld [vmem:[%s171 + $0x90] sm:$0xff]
      %v3071 = vld [vmem:[%s171 + $0xa8] sm:$0xff]
      %v3072 = vld [vmem:[%s171 + $0xb0] sm:$0xff]
      %v3073 = vld [vmem:[%s171 + $0xc8] sm:$0xff]
      %v3074 = vld [vmem:[%s171 + $0xd0] sm:$0xff]
      %v3075 = vld [vmem:[%s171 + $0xe8] sm:$0xff]
      %v3076 = vld [vmem:[%s171 + $0xf0] sm:$0xff]
      %v3077 = vld [vmem:[%s171 + $0x108] sm:$0xff]
      %v3078 = vld [vmem:[%s171 + $0x110] sm:$0xff]
      %v3079 = vld [vmem:[%s171 + $0x128] sm:$0xff]
      %v3080 = vld [vmem:[%s171 + $0x130] sm:$0xff]
      %v3081 = vld [vmem:[%s171 + $0x148] sm:$0xff]
      %v3082 = vld [vmem:[%s171 + $0x150] sm:$0xff]
      %v3083 = vld [vmem:[%s171 + $0x168] sm:$0xff]
      %v3084 = vld [vmem:[%s171 + $0x170] sm:$0xff]
      %v3085 = vld [vmem:[%s171 + $0x188] sm:$0xff]
      %v3086 = vld [vmem:[%s171 + $0x190] sm:$0xff]
      %v3087 = vld [vmem:[%s171 + $0x1a8] sm:$0xff]
      %v3088 = vld [vmem:[%s171 + $0x1b0] sm:$0xff]
      %v3089 = vld [vmem:[%s171 + $0x1c8] sm:$0xff]
      %v3090 = vld [vmem:[%s171 + $0x1d0] sm:$0xff]
      %v3091 = vld [vmem:[%s171 + $0x1e8] sm:$0xff]
      %v3092 = vld [vmem:[%s171 + $0x1f0] sm:$0xff]
      %v3093 = vld [vmem:[%s171 + $0x208] sm:$0xff]
      %v3094 = vld [vmem:[%s171 + $0x210] sm:$0xff]
      %v3095 = vld [vmem:[%s171 + $0x228] sm:$0xff]
      %v3096 = vld [vmem:[%s171 + $0x230] sm:$0xff]
      %v3097 = vld [vmem:[%s171 + $0x248] sm:$0xff]
      %v3098 = vld [vmem:[%s171 + $0x250] sm:$0xff]
      %v3099 = vld [vmem:[%s171 + $0x268] sm:$0xff]
      %v3100 = vld [vmem:[%s171 + $0x270] sm:$0xff]
      %v3101 = vmax.f32 %v3021, %v3061
      %v3102 = vmax.f32 %v3022, %v3062
      %v3103 = vmax.f32 %v3023, %v3063
      %v3104 = vmax.f32 %v3024, %v3064
      %v3105 = vmax.f32 %v3025, %v3065
      %v3106 = vmax.f32 %v3026, %v3066
      %v3107 = vmax.f32 %v3027, %v3067
      %v3108 = vmax.f32 %v3028, %v3068
      %v3109 = vmax.f32 %v3029, %v3069
      %v3110 = vmax.f32 %v3030, %v3070
      %v3111 = vmax.f32 %v3031, %v3071
      %v3112 = vmax.f32 %v3032, %v3072
      %v3113 = vmax.f32 %v3033, %v3073
      %v3114 = vmax.f32 %v3034, %v3074
      %v3115 = vmax.f32 %v3035, %v3075
      %v3116 = vmax.f32 %v3036, %v3076
      %v3117 = vmax.f32 %v3037, %v3077
      %v3118 = vmax.f32 %v3038, %v3078
      %v3119 = vmax.f32 %v3039, %v3079
      %v3120 = vmax.f32 %v3040, %v3080
      %v3121 = vmax.f32 %v3041, %v3081
      %v3122 = vmax.f32 %v3042, %v3082
      %v3123 = vmax.f32 %v3043, %v3083
      %v3124 = vmax.f32 %v3044, %v3084
      %v3125 = vmax.f32 %v3045, %v3085
      %v3126 = vmax.f32 %v3046, %v3086
      %v3127 = vmax.f32 %v3047, %v3087
      %v3128 = vmax.f32 %v3048, %v3088
      %v3129 = vmax.f32 %v3049, %v3089
      %v3130 = vmax.f32 %v3050, %v3090
      %v3131 = vmax.f32 %v3051, %v3091
      %v3132 = vmax.f32 %v3052, %v3092
      %v3133 = vmax.f32 %v3053, %v3093
      %v3134 = vmax.f32 %v3054, %v3094
      %v3135 = vmax.f32 %v3055, %v3095
      %v3136 = vmax.f32 %v3056, %v3096
      %v3137 = vmax.f32 %v3057, %v3097
      %v3138 = vmax.f32 %v3058, %v3098
      %v3139 = vmax.f32 %v3059, %v3099
      %v3140 = vmax.f32 %v3060, %v3100
      %v3141 = vld [vmem:[%s171 + $0x9] sm:$0xff]
      %v3142 = vld [vmem:[%s171 + $0x11] sm:$0xff]
      %v3143 = vld [vmem:[%s171 + $0x29] sm:$0xff]
      %v3144 = vld [vmem:[%s171 + $0x31] sm:$0xff]
      %v3145 = vld [vmem:[%s171 + $0x49] sm:$0xff]
      %v3146 = vld [vmem:[%s171 + $0x51] sm:$0xff]
      %v3147 = vld [vmem:[%s171 + $0x69] sm:$0xff]
      %v3148 = vld [vmem:[%s171 + $0x71] sm:$0xff]
      %v3149 = vld [vmem:[%s171 + $0x89] sm:$0xff]
      %v3150 = vld [vmem:[%s171 + $0x91] sm:$0xff]
      %v3151 = vld [vmem:[%s171 + $0xa9] sm:$0xff]
      %v3152 = vld [vmem:[%s171 + $0xb1] sm:$0xff]
      %v3153 = vld [vmem:[%s171 + $0xc9] sm:$0xff]
      %v3154 = vld [vmem:[%s171 + $0xd1] sm:$0xff]
      %v3155 = vld [vmem:[%s171 + $0xe9] sm:$0xff]
      %v3156 = vld [vmem:[%s171 + $0xf1] sm:$0xff]
      %v3157 = vld [vmem:[%s171 + $0x109] sm:$0xff]
      %v3158 = vld [vmem:[%s171 + $0x111] sm:$0xff]
      %v3159 = vld [vmem:[%s171 + $0x129] sm:$0xff]
      %v3160 = vld [vmem:[%s171 + $0x131] sm:$0xff]
      %v3161 = vld [vmem:[%s171 + $0x149] sm:$0xff]
      %v3162 = vld [vmem:[%s171 + $0x151] sm:$0xff]
      %v3163 = vld [vmem:[%s171 + $0x169] sm:$0xff]
      %v3164 = vld [vmem:[%s171 + $0x171] sm:$0xff]
      %v3165 = vld [vmem:[%s171 + $0x189] sm:$0xff]
      %v3166 = vld [vmem:[%s171 + $0x191] sm:$0xff]
      %v3167 = vld [vmem:[%s171 + $0x1a9] sm:$0xff]
      %v3168 = vld [vmem:[%s171 + $0x1b1] sm:$0xff]
      %v3169 = vld [vmem:[%s171 + $0x1c9] sm:$0xff]
      %v3170 = vld [vmem:[%s171 + $0x1d1] sm:$0xff]
      %v3171 = vld [vmem:[%s171 + $0x1e9] sm:$0xff]
      %v3172 = vld [vmem:[%s171 + $0x1f1] sm:$0xff]
      %v3173 = vld [vmem:[%s171 + $0x209] sm:$0xff]
      %v3174 = vld [vmem:[%s171 + $0x211] sm:$0xff]
      %v3175 = vld [vmem:[%s171 + $0x229] sm:$0xff]
      %v3176 = vld [vmem:[%s171 + $0x231] sm:$0xff]
      %v3177 = vld [vmem:[%s171 + $0x249] sm:$0xff]
      %v3178 = vld [vmem:[%s171 + $0x251] sm:$0xff]
      %v3179 = vld [vmem:[%s171 + $0x269] sm:$0xff]
      %v3180 = vld [vmem:[%s171 + $0x271] sm:$0xff]
      %v3181 = vmax.f32 %v3101, %v3141
      %v3182 = vmax.f32 %v3102, %v3142
      %v3183 = vmax.f32 %v3103, %v3143
      %v3184 = vmax.f32 %v3104, %v3144
      %v3185 = vmax.f32 %v3105, %v3145
      %v3186 = vmax.f32 %v3106, %v3146
      %v3187 = vmax.f32 %v3107, %v3147
      %v3188 = vmax.f32 %v3108, %v3148
      %v3189 = vmax.f32 %v3109, %v3149
      %v3190 = vmax.f32 %v3110, %v3150
      %v3191 = vmax.f32 %v3111, %v3151
      %v3192 = vmax.f32 %v3112, %v3152
      %v3193 = vmax.f32 %v3113, %v3153
      %v3194 = vmax.f32 %v3114, %v3154
      %v3195 = vmax.f32 %v3115, %v3155
      %v3196 = vmax.f32 %v3116, %v3156
      %v3197 = vmax.f32 %v3117, %v3157
      %v3198 = vmax.f32 %v3118, %v3158
      %v3199 = vmax.f32 %v3119, %v3159
      %v3200 = vmax.f32 %v3120, %v3160
      %v3201 = vmax.f32 %v3121, %v3161
      %v3202 = vmax.f32 %v3122, %v3162
      %v3203 = vmax.f32 %v3123, %v3163
      %v3204 = vmax.f32 %v3124, %v3164
      %v3205 = vmax.f32 %v3125, %v3165
      %v3206 = vmax.f32 %v3126, %v3166
      %v3207 = vmax.f32 %v3127, %v3167
      %v3208 = vmax.f32 %v3128, %v3168
      %v3209 = vmax.f32 %v3129, %v3169
      %v3210 = vmax.f32 %v3130, %v3170
      %v3211 = vmax.f32 %v3131, %v3171
      %v3212 = vmax.f32 %v3132, %v3172
      %v3213 = vmax.f32 %v3133, %v3173
      %v3214 = vmax.f32 %v3134, %v3174
      %v3215 = vmax.f32 %v3135, %v3175
      %v3216 = vmax.f32 %v3136, %v3176
      %v3217 = vmax.f32 %v3137, %v3177
      %v3218 = vmax.f32 %v3138, %v3178
      %v3219 = vmax.f32 %v3139, %v3179
      %v3220 = vmax.f32 %v3140, %v3180
      %v3221 = vld [vmem:[%s171 + $0xa] sm:$0xff]
      %v3222 = vld [vmem:[%s171 + $0x12] sm:$0xff]
      %v3223 = vld [vmem:[%s171 + $0x2a] sm:$0xff]
      %v3224 = vld [vmem:[%s171 + $0x32] sm:$0xff]
      %v3225 = vld [vmem:[%s171 + $0x4a] sm:$0xff]
      %v3226 = vld [vmem:[%s171 + $0x52] sm:$0xff]
      %v3227 = vld [vmem:[%s171 + $0x6a] sm:$0xff]
      %v3228 = vld [vmem:[%s171 + $0x72] sm:$0xff]
      %v3229 = vld [vmem:[%s171 + $0x8a] sm:$0xff]
      %v3230 = vld [vmem:[%s171 + $0x92] sm:$0xff]
      %v3231 = vld [vmem:[%s171 + $0xaa] sm:$0xff]
      %v3232 = vld [vmem:[%s171 + $0xb2] sm:$0xff]
      %v3233 = vld [vmem:[%s171 + $0xca] sm:$0xff]
      %v3234 = vld [vmem:[%s171 + $0xd2] sm:$0xff]
      %v3235 = vld [vmem:[%s171 + $0xea] sm:$0xff]
      %v3236 = vld [vmem:[%s171 + $0xf2] sm:$0xff]
      %v3237 = vld [vmem:[%s171 + $0x10a] sm:$0xff]
      %v3238 = vld [vmem:[%s171 + $0x112] sm:$0xff]
      %v3239 = vld [vmem:[%s171 + $0x12a] sm:$0xff]
      %v3240 = vld [vmem:[%s171 + $0x132] sm:$0xff]
      %v3241 = vld [vmem:[%s171 + $0x14a] sm:$0xff]
      %v3242 = vld [vmem:[%s171 + $0x152] sm:$0xff]
      %v3243 = vld [vmem:[%s171 + $0x16a] sm:$0xff]
      %v3244 = vld [vmem:[%s171 + $0x172] sm:$0xff]
      %v3245 = vld [vmem:[%s171 + $0x18a] sm:$0xff]
      %v3246 = vld [vmem:[%s171 + $0x192] sm:$0xff]
      %v3247 = vld [vmem:[%s171 + $0x1aa] sm:$0xff]
      %v3248 = vld [vmem:[%s171 + $0x1b2] sm:$0xff]
      %v3249 = vld [vmem:[%s171 + $0x1ca] sm:$0xff]
      %v3250 = vld [vmem:[%s171 + $0x1d2] sm:$0xff]
      %v3251 = vld [vmem:[%s171 + $0x1ea] sm:$0xff]
      %v3252 = vld [vmem:[%s171 + $0x1f2] sm:$0xff]
      %v3253 = vld [vmem:[%s171 + $0x20a] sm:$0xff]
      %v3254 = vld [vmem:[%s171 + $0x212] sm:$0xff]
      %v3255 = vld [vmem:[%s171 + $0x22a] sm:$0xff]
      %v3256 = vld [vmem:[%s171 + $0x232] sm:$0xff]
      %v3257 = vld [vmem:[%s171 + $0x24a] sm:$0xff]
      %v3258 = vld [vmem:[%s171 + $0x252] sm:$0xff]
      %v3259 = vld [vmem:[%s171 + $0x26a] sm:$0xff]
      %v3260 = vld [vmem:[%s171 + $0x272] sm:$0xff]
      %v3261 = vmax.f32 %v3181, %v3221
      %v3262 = vmax.f32 %v3182, %v3222
      %v3263 = vmax.f32 %v3183, %v3223
      %v3264 = vmax.f32 %v3184, %v3224
      %v3265 = vmax.f32 %v3185, %v3225
      %v3266 = vmax.f32 %v3186, %v3226
      %v3267 = vmax.f32 %v3187, %v3227
      %v3268 = vmax.f32 %v3188, %v3228
      %v3269 = vmax.f32 %v3189, %v3229
      %v3270 = vmax.f32 %v3190, %v3230
      %v3271 = vmax.f32 %v3191, %v3231
      %v3272 = vmax.f32 %v3192, %v3232
      %v3273 = vmax.f32 %v3193, %v3233
      %v3274 = vmax.f32 %v3194, %v3234
      %v3275 = vmax.f32 %v3195, %v3235
      %v3276 = vmax.f32 %v3196, %v3236
      %v3277 = vmax.f32 %v3197, %v3237
      %v3278 = vmax.f32 %v3198, %v3238
      %v3279 = vmax.f32 %v3199, %v3239
      %v3280 = vmax.f32 %v3200, %v3240
      %v3281 = vmax.f32 %v3201, %v3241
      %v3282 = vmax.f32 %v3202, %v3242
      %v3283 = vmax.f32 %v3203, %v3243
      %v3284 = vmax.f32 %v3204, %v3244
      %v3285 = vmax.f32 %v3205, %v3245
      %v3286 = vmax.f32 %v3206, %v3246
      %v3287 = vmax.f32 %v3207, %v3247
      %v3288 = vmax.f32 %v3208, %v3248
      %v3289 = vmax.f32 %v3209, %v3249
      %v3290 = vmax.f32 %v3210, %v3250
      %v3291 = vmax.f32 %v3211, %v3251
      %v3292 = vmax.f32 %v3212, %v3252
      %v3293 = vmax.f32 %v3213, %v3253
      %v3294 = vmax.f32 %v3214, %v3254
      %v3295 = vmax.f32 %v3215, %v3255
      %v3296 = vmax.f32 %v3216, %v3256
      %v3297 = vmax.f32 %v3217, %v3257
      %v3298 = vmax.f32 %v3218, %v3258
      %v3299 = vmax.f32 %v3219, %v3259
      %v3300 = vmax.f32 %v3220, %v3260
      %3301 = vst.msk [vmem:[#allocation3] sm:$0xff] %vm172, %v3261
      %3302 = vst.msk [vmem:[#allocation3 + $0x8] sm:$0xff] %vm172, %v3262
      %3303 = vst.msk [vmem:[#allocation3 + $0x10] sm:$0xff] %vm172, %v3263
      %3304 = vst.msk [vmem:[#allocation3 + $0x18] sm:$0xff] %vm172, %v3264
      %3305 = vst.msk [vmem:[#allocation3 + $0x20] sm:$0xff] %vm172, %v3265
      %3306 = vst.msk [vmem:[#allocation3 + $0x28] sm:$0xff] %vm172, %v3266
      %3307 = vst.msk [vmem:[#allocation3 + $0x30] sm:$0xff] %vm172, %v3267
      %3308 = vst.msk [vmem:[#allocation3 + $0x38] sm:$0xff] %vm172, %v3268
      %3309 = vst.msk [vmem:[#allocation3 + $0x40] sm:$0xff] %vm172, %v3269
      %3310 = vst.msk [vmem:[#allocation3 + $0x48] sm:$0xff] %vm172, %v3270
      %3311 = vst.msk [vmem:[#allocation3 + $0x50] sm:$0xff] %vm172, %v3271
      %3312 = vst.msk [vmem:[#allocation3 + $0x58] sm:$0xff] %vm172, %v3272
      %3313 = vst.msk [vmem:[#allocation3 + $0x60] sm:$0xff] %vm172, %v3273
      %3314 = vst.msk [vmem:[#allocation3 + $0x68] sm:$0xff] %vm172, %v3274
      %3315 = vst.msk [vmem:[#allocation3 + $0x70] sm:$0xff] %vm172, %v3275
      %3316 = vst.msk [vmem:[#allocation3 + $0x78] sm:$0xff] %vm172, %v3276
      %3317 = vst.msk [vmem:[#allocation3 + $0x80] sm:$0xff] %vm172, %v3277
      %3318 = vst.msk [vmem:[#allocation3 + $0x88] sm:$0xff] %vm172, %v3278
      %3319 = vst.msk [vmem:[#allocation3 + $0x90] sm:$0xff] %vm172, %v3279
      %3320 = vst.msk [vmem:[#allocation3 + $0x98] sm:$0xff] %vm172, %v3280
      %3321 = vst.msk [vmem:[#allocation3 + $0xa0] sm:$0xff] %vm172, %v3281
      %3322 = vst.msk [vmem:[#allocation3 + $0xa8] sm:$0xff] %vm172, %v3282
      %3323 = vst.msk [vmem:[#allocation3 + $0xb0] sm:$0xff] %vm172, %v3283
      %3324 = vst.msk [vmem:[#allocation3 + $0xb8] sm:$0xff] %vm172, %v3284
      %3325 = vst.msk [vmem:[#allocation3 + $0xc0] sm:$0xff] %vm172, %v3285
      %3326 = vst.msk [vmem:[#allocation3 + $0xc8] sm:$0xff] %vm172, %v3286
      %3327 = vst.msk [vmem:[#allocation3 + $0xd0] sm:$0xff] %vm172, %v3287
      %3328 = vst.msk [vmem:[#allocation3 + $0xd8] sm:$0xff] %vm172, %v3288
      %3329 = vst.msk [vmem:[#allocation3 + $0xe0] sm:$0xff] %vm172, %v3289
      %3330 = vst.msk [vmem:[#allocation3 + $0xe8] sm:$0xff] %vm172, %v3290
      %3331 = vst.msk [vmem:[#allocation3 + $0xf0] sm:$0xff] %vm172, %v3291
      %3332 = vst.msk [vmem:[#allocation3 + $0xf8] sm:$0xff] %vm172, %v3292
      %3333 = vst.msk [vmem:[#allocation3 + $0x100] sm:$0xff] %vm172, %v3293
      %3334 = vst.msk [vmem:[#allocation3 + $0x108] sm:$0xff] %vm172, %v3294
      %3335 = vst.msk [vmem:[#allocation3 + $0x110] sm:$0xff] %vm172, %v3295
      %3336 = vst.msk [vmem:[#allocation3 + $0x118] sm:$0xff] %vm172, %v3296
      %3337 = vst.msk [vmem:[#allocation3 + $0x120] sm:$0xff] %vm172, %v3297
      %3338 = vst.msk [vmem:[#allocation3 + $0x128] sm:$0xff] %vm172, %v3298
      %3339 = vst.msk [vmem:[#allocation3 + $0x130] sm:$0xff] %vm172, %v3299
      %3340 = vst.msk [vmem:[#allocation3 + $0x138] sm:$0xff] %vm172, %v3300
      %v3341 = vld [vmem:[#allocation3] sm:$0xff]
      %v3342 = vld [vmem:[#allocation3 + $0x8] sm:$0xff]
      %v3343 = vld [vmem:[#allocation3 + $0x10] sm:$0xff]
      %v3344 = vld [vmem:[#allocation3 + $0x18] sm:$0xff]
      %v3345 = vld [vmem:[#allocation3 + $0x20] sm:$0xff]
      %v3346 = vld [vmem:[#allocation3 + $0x28] sm:$0xff]
      %v3347 = vld [vmem:[#allocation3 + $0x30] sm:$0xff]
      %v3348 = vld [vmem:[#allocation3 + $0x38] sm:$0xff]
      %v3349 = vld [vmem:[#allocation3 + $0x40] sm:$0xff]
      %v3350 = vld [vmem:[#allocation3 + $0x48] sm:$0xff]
      %v3351 = vld [vmem:[#allocation3 + $0x50] sm:$0xff]
      %v3352 = vld [vmem:[#allocation3 + $0x58] sm:$0xff]
      %v3353 = vld [vmem:[#allocation3 + $0x60] sm:$0xff]
      %v3354 = vld [vmem:[#allocation3 + $0x68] sm:$0xff]
      %v3355 = vld [vmem:[#allocation3 + $0x70] sm:$0xff]
      %v3356 = vld [vmem:[#allocation3 + $0x78] sm:$0xff]
      %v3357 = vld [vmem:[#allocation3 + $0x80] sm:$0xff]
      %v3358 = vld [vmem:[#allocation3 + $0x88] sm:$0xff]
      %v3359 = vld [vmem:[#allocation3 + $0x90] sm:$0xff]
      %v3360 = vld [vmem:[#allocation3 + $0x98] sm:$0xff]
      %v3361 = vld [vmem:[#allocation3 + $0xa0] sm:$0xff]
      %v3362 = vld [vmem:[#allocation3 + $0xa8] sm:$0xff]
      %v3363 = vld [vmem:[#allocation3 + $0xb0] sm:$0xff]
      %v3364 = vld [vmem:[#allocation3 + $0xb8] sm:$0xff]
      %v3365 = vld [vmem:[#allocation3 + $0xc0] sm:$0xff]
      %v3366 = vld [vmem:[#allocation3 + $0xc8] sm:$0xff]
      %v3367 = vld [vmem:[#allocation3 + $0xd0] sm:$0xff]
      %v3368 = vld [vmem:[#allocation3 + $0xd8] sm:$0xff]
      %v3369 = vld [vmem:[#allocation3 + $0xe0] sm:$0xff]
      %v3370 = vld [vmem:[#allocation3 + $0xe8] sm:$0xff]
      %v3371 = vld [vmem:[#allocation3 + $0xf0] sm:$0xff]
      %v3372 = vld [vmem:[#allocation3 + $0xf8] sm:$0xff]
      %v3373 = vld [vmem:[%s1085] sm:$0xff]
      %v3374 = vld [vmem:[%s1085 + $0x8] sm:$0xff]
      %v3375 = vld [vmem:[%s1085 + $0x10] sm:$0xff]
      %v3376 = vld [vmem:[%s1085 + $0x18] sm:$0xff]
      %v3377 = vld [vmem:[%s1085 + $0x20] sm:$0xff]
      %v3378 = vld [vmem:[%s1085 + $0x28] sm:$0xff]
      %v3379 = vld [vmem:[%s1085 + $0x30] sm:$0xff]
      %v3380 = vld [vmem:[%s1085 + $0x38] sm:$0xff]
      %v3381 = vld [vmem:[%s1085 + $0x40] sm:$0xff]
      %v3382 = vld [vmem:[%s1085 + $0x48] sm:$0xff]
      %v3383 = vld [vmem:[%s1085 + $0x50] sm:$0xff]
      %v3384 = vld [vmem:[%s1085 + $0x58] sm:$0xff]
      %v3385 = vld [vmem:[%s1085 + $0x60] sm:$0xff]
      %v3386 = vld [vmem:[%s1085 + $0x68] sm:$0xff]
      %v3387 = vld [vmem:[%s1085 + $0x70] sm:$0xff]
      %v3388 = vld [vmem:[%s1085 + $0x78] sm:$0xff]
      %v3389 = vld [vmem:[%s1085 + $0x80] sm:$0xff]
      %v3390 = vld [vmem:[%s1085 + $0x88] sm:$0xff]
      %v3391 = vld [vmem:[%s1085 + $0x90] sm:$0xff]
      %v3392 = vld [vmem:[%s1085 + $0x98] sm:$0xff]
      %v3393 = vld [vmem:[%s1085 + $0xa0] sm:$0xff]
      %v3394 = vld [vmem:[%s1085 + $0xa8] sm:$0xff]
      %v3395 = vld [vmem:[%s1085 + $0xb0] sm:$0xff]
      %v3396 = vld [vmem:[%s1085 + $0xb8] sm:$0xff]
      %v3397 = vld [vmem:[%s1085 + $0xc0] sm:$0xff]
      %v3398 = vld [vmem:[%s1085 + $0xc8] sm:$0xff]
      %v3399 = vld [vmem:[%s1085 + $0xd0] sm:$0xff]
      %v3400 = vld [vmem:[%s1085 + $0xd8] sm:$0xff]
      %v3401 = vld [vmem:[%s1085 + $0xe0] sm:$0xff]
      %v3402 = vld [vmem:[%s1085 + $0xe8] sm:$0xff]
      %v3403 = vld [vmem:[%s1085 + $0xf0] sm:$0xff]
      %v3404 = vld [vmem:[%s1085 + $0xf8] sm:$0xff]
      %v3405 = vmax.f32 %v3341, %v3373
      %v3406 = vmax.f32 %v3342, %v3374
      %v3407 = vmax.f32 %v3343, %v3375
      %v3408 = vmax.f32 %v3344, %v3376
      %v3409 = vmax.f32 %v3345, %v3377
      %v3410 = vmax.f32 %v3346, %v3378
      %v3411 = vmax.f32 %v3347, %v3379
      %v3412 = vmax.f32 %v3348, %v3380
      %v3413 = vmax.f32 %v3349, %v3381
      %v3414 = vmax.f32 %v3350, %v3382
      %v3415 = vmax.f32 %v3351, %v3383
      %v3416 = vmax.f32 %v3352, %v3384
      %v3417 = vmax.f32 %v3353, %v3385
      %v3418 = vmax.f32 %v3354, %v3386
      %v3419 = vmax.f32 %v3355, %v3387
      %v3420 = vmax.f32 %v3356, %v3388
      %v3421 = vmax.f32 %v3357, %v3389
      %v3422 = vmax.f32 %v3358, %v3390
      %v3423 = vmax.f32 %v3359, %v3391
      %v3424 = vmax.f32 %v3360, %v3392
      %v3425 = vmax.f32 %v3361, %v3393
      %v3426 = vmax.f32 %v3362, %v3394
      %v3427 = vmax.f32 %v3363, %v3395
      %v3428 = vmax.f32 %v3364, %v3396
      %v3429 = vmax.f32 %v3365, %v3397
      %v3430 = vmax.f32 %v3366, %v3398
      %v3431 = vmax.f32 %v3367, %v3399
      %v3432 = vmax.f32 %v3368, %v3400
      %v3433 = vmax.f32 %v3369, %v3401
      %v3434 = vmax.f32 %v3370, %v3402
      %v3435 = vmax.f32 %v3371, %v3403
      %v3436 = vmax.f32 %v3372, %v3404
      %v3437 = vld [vmem:[%s1150] sm:$0xff]
      %v3438 = vld [vmem:[%s1150 + $0x8] sm:$0xff]
      %v3439 = vld [vmem:[%s1150 + $0x10] sm:$0xff]
      %v3440 = vld [vmem:[%s1150 + $0x18] sm:$0xff]
      %v3441 = vld [vmem:[%s1150 + $0x20] sm:$0xff]
      %v3442 = vld [vmem:[%s1150 + $0x28] sm:$0xff]
      %v3443 = vld [vmem:[%s1150 + $0x30] sm:$0xff]
      %v3444 = vld [vmem:[%s1150 + $0x38] sm:$0xff]
      %v3445 = vld [vmem:[%s1150 + $0x40] sm:$0xff]
      %v3446 = vld [vmem:[%s1150 + $0x48] sm:$0xff]
      %v3447 = vld [vmem:[%s1150 + $0x50] sm:$0xff]
      %v3448 = vld [vmem:[%s1150 + $0x58] sm:$0xff]
      %v3449 = vld [vmem:[%s1150 + $0x60] sm:$0xff]
      %v3450 = vld [vmem:[%s1150 + $0x68] sm:$0xff]
      %v3451 = vld [vmem:[%s1150 + $0x70] sm:$0xff]
      %v3452 = vld [vmem:[%s1150 + $0x78] sm:$0xff]
      %v3453 = vld [vmem:[%s1150 + $0x80] sm:$0xff]
      %v3454 = vld [vmem:[%s1150 + $0x88] sm:$0xff]
      %v3455 = vld [vmem:[%s1150 + $0x90] sm:$0xff]
      %v3456 = vld [vmem:[%s1150 + $0x98] sm:$0xff]
      %v3457 = vld [vmem:[%s1150 + $0xa0] sm:$0xff]
      %v3458 = vld [vmem:[%s1150 + $0xa8] sm:$0xff]
      %v3459 = vld [vmem:[%s1150 + $0xb0] sm:$0xff]
      %v3460 = vld [vmem:[%s1150 + $0xb8] sm:$0xff]
      %v3461 = vld [vmem:[%s1150 + $0xc0] sm:$0xff]
      %v3462 = vld [vmem:[%s1150 + $0xc8] sm:$0xff]
      %v3463 = vld [vmem:[%s1150 + $0xd0] sm:$0xff]
      %v3464 = vld [vmem:[%s1150 + $0xd8] sm:$0xff]
      %v3465 = vld [vmem:[%s1150 + $0xe0] sm:$0xff]
      %v3466 = vld [vmem:[%s1150 + $0xe8] sm:$0xff]
      %v3467 = vld [vmem:[%s1150 + $0xf0] sm:$0xff]
      %v3468 = vld [vmem:[%s1150 + $0xf8] sm:$0xff]
      %v3469 = vmax.f32 %v3405, %v3437
      %v3470 = vmax.f32 %v3406, %v3438
      %v3471 = vmax.f32 %v3407, %v3439
      %v3472 = vmax.f32 %v3408, %v3440
      %v3473 = vmax.f32 %v3409, %v3441
      %v3474 = vmax.f32 %v3410, %v3442
      %v3475 = vmax.f32 %v3411, %v3443
      %v3476 = vmax.f32 %v3412, %v3444
      %v3477 = vmax.f32 %v3413, %v3445
      %v3478 = vmax.f32 %v3414, %v3446
      %v3479 = vmax.f32 %v3415, %v3447
      %v3480 = vmax.f32 %v3416, %v3448
      %v3481 = vmax.f32 %v3417, %v3449
      %v3482 = vmax.f32 %v3418, %v3450
      %v3483 = vmax.f32 %v3419, %v3451
      %v3484 = vmax.f32 %v3420, %v3452
      %v3485 = vmax.f32 %v3421, %v3453
      %v3486 = vmax.f32 %v3422, %v3454
      %v3487 = vmax.f32 %v3423, %v3455
      %v3488 = vmax.f32 %v3424, %v3456
      %v3489 = vmax.f32 %v3425, %v3457
      %v3490 = vmax.f32 %v3426, %v3458
      %v3491 = vmax.f32 %v3427, %v3459
      %v3492 = vmax.f32 %v3428, %v3460
      %v3493 = vmax.f32 %v3429, %v3461
      %v3494 = vmax.f32 %v3430, %v3462
      %v3495 = vmax.f32 %v3431, %v3463
      %v3496 = vmax.f32 %v3432, %v3464
      %v3497 = vmax.f32 %v3433, %v3465
      %v3498 = vmax.f32 %v3434, %v3466
      %v3499 = vmax.f32 %v3435, %v3467
      %v3500 = vmax.f32 %v3436, %v3468
      %v3501 = vld [vmem:[%s1215] sm:$0xff]
      %v3502 = vld [vmem:[%s1215 + $0x8] sm:$0xff]
      %v3503 = vld [vmem:[%s1215 + $0x10] sm:$0xff]
      %v3504 = vld [vmem:[%s1215 + $0x18] sm:$0xff]
      %v3505 = vld [vmem:[%s1215 + $0x20] sm:$0xff]
      %v3506 = vld [vmem:[%s1215 + $0x28] sm:$0xff]
      %v3507 = vld [vmem:[%s1215 + $0x30] sm:$0xff]
      %v3508 = vld [vmem:[%s1215 + $0x38] sm:$0xff]
      %v3509 = vld [vmem:[%s1215 + $0x40] sm:$0xff]
      %v3510 = vld [vmem:[%s1215 + $0x48] sm:$0xff]
      %v3511 = vld [vmem:[%s1215 + $0x50] sm:$0xff]
      %v3512 = vld [vmem:[%s1215 + $0x58] sm:$0xff]
      %v3513 = vld [vmem:[%s1215 + $0x60] sm:$0xff]
      %v3514 = vld [vmem:[%s1215 + $0x68] sm:$0xff]
      %v3515 = vld [vmem:[%s1215 + $0x70] sm:$0xff]
      %v3516 = vld [vmem:[%s1215 + $0x78] sm:$0xff]
      %v3517 = vld [vmem:[%s1215 + $0x80] sm:$0xff]
      %v3518 = vld [vmem:[%s1215 + $0x88] sm:$0xff]
      %v3519 = vld [vmem:[%s1215 + $0x90] sm:$0xff]
      %v3520 = vld [vmem:[%s1215 + $0x98] sm:$0xff]
      %v3521 = vld [vmem:[%s1215 + $0xa0] sm:$0xff]
      %v3522 = vld [vmem:[%s1215 + $0xa8] sm:$0xff]
      %v3523 = vld [vmem:[%s1215 + $0xb0] sm:$0xff]
      %v3524 = vld [vmem:[%s1215 + $0xb8] sm:$0xff]
      %v3525 = vld [vmem:[%s1215 + $0xc0] sm:$0xff]
      %v3526 = vld [vmem:[%s1215 + $0xc8] sm:$0xff]
      %v3527 = vld [vmem:[%s1215 + $0xd0] sm:$0xff]
      %v3528 = vld [vmem:[%s1215 + $0xd8] sm:$0xff]
      %v3529 = vld [vmem:[%s1215 + $0xe0] sm:$0xff]
      %v3530 = vld [vmem:[%s1215 + $0xe8] sm:$0xff]
      %v3531 = vld [vmem:[%s1215 + $0xf0] sm:$0xff]
      %v3532 = vld [vmem:[%s1215 + $0xf8] sm:$0xff]
      %v3533 = vmax.f32 %v3469, %v3501
      %v3534 = vmax.f32 %v3470, %v3502
      %v3535 = vmax.f32 %v3471, %v3503
      %v3536 = vmax.f32 %v3472, %v3504
      %v3537 = vmax.f32 %v3473, %v3505
      %v3538 = vmax.f32 %v3474, %v3506
      %v3539 = vmax.f32 %v3475, %v3507
      %v3540 = vmax.f32 %v3476, %v3508
      %v3541 = vmax.f32 %v3477, %v3509
      %v3542 = vmax.f32 %v3478, %v3510
      %v3543 = vmax.f32 %v3479, %v3511
      %v3544 = vmax.f32 %v3480, %v3512
      %v3545 = vmax.f32 %v3481, %v3513
      %v3546 = vmax.f32 %v3482, %v3514
      %v3547 = vmax.f32 %v3483, %v3515
      %v3548 = vmax.f32 %v3484, %v3516
      %v3549 = vmax.f32 %v3485, %v3517
      %v3550 = vmax.f32 %v3486, %v3518
      %v3551 = vmax.f32 %v3487, %v3519
      %v3552 = vmax.f32 %v3488, %v3520
      %v3553 = vmax.f32 %v3489, %v3521
      %v3554 = vmax.f32 %v3490, %v3522
      %v3555 = vmax.f32 %v3491, %v3523
      %v3556 = vmax.f32 %v3492, %v3524
      %v3557 = vmax.f32 %v3493, %v3525
      %v3558 = vmax.f32 %v3494, %v3526
      %v3559 = vmax.f32 %v3495, %v3527
      %v3560 = vmax.f32 %v3496, %v3528
      %v3561 = vmax.f32 %v3497, %v3529
      %v3562 = vmax.f32 %v3498, %v3530
      %v3563 = vmax.f32 %v3499, %v3531
      %v3564 = vmax.f32 %v3500, %v3532
      %v3565 = vld [vmem:[%s1280] sm:$0xff]
      %v3566 = vld [vmem:[%s1280 + $0x8] sm:$0xff]
      %v3567 = vld [vmem:[%s1280 + $0x10] sm:$0xff]
      %v3568 = vld [vmem:[%s1280 + $0x18] sm:$0xff]
      %v3569 = vld [vmem:[%s1280 + $0x20] sm:$0xff]
      %v3570 = vld [vmem:[%s1280 + $0x28] sm:$0xff]
      %v3571 = vld [vmem:[%s1280 + $0x30] sm:$0xff]
      %v3572 = vld [vmem:[%s1280 + $0x38] sm:$0xff]
      %v3573 = vld [vmem:[%s1280 + $0x40] sm:$0xff]
      %v3574 = vld [vmem:[%s1280 + $0x48] sm:$0xff]
      %v3575 = vld [vmem:[%s1280 + $0x50] sm:$0xff]
      %v3576 = vld [vmem:[%s1280 + $0x58] sm:$0xff]
      %v3577 = vld [vmem:[%s1280 + $0x60] sm:$0xff]
      %v3578 = vld [vmem:[%s1280 + $0x68] sm:$0xff]
      %v3579 = vld [vmem:[%s1280 + $0x70] sm:$0xff]
      %v3580 = vld [vmem:[%s1280 + $0x78] sm:$0xff]
      %v3581 = vld [vmem:[%s1280 + $0x80] sm:$0xff]
      %v3582 = vld [vmem:[%s1280 + $0x88] sm:$0xff]
      %v3583 = vld [vmem:[%s1280 + $0x90] sm:$0xff]
      %v3584 = vld [vmem:[%s1280 + $0x98] sm:$0xff]
      %v3585 = vld [vmem:[%s1280 + $0xa0] sm:$0xff]
      %v3586 = vld [vmem:[%s1280 + $0xa8] sm:$0xff]
      %v3587 = vld [vmem:[%s1280 + $0xb0] sm:$0xff]
      %v3588 = vld [vmem:[%s1280 + $0xb8] sm:$0xff]
      %v3589 = vld [vmem:[%s1280 + $0xc0] sm:$0xff]
      %v3590 = vld [vmem:[%s1280 + $0xc8] sm:$0xff]
      %v3591 = vld [vmem:[%s1280 + $0xd0] sm:$0xff]
      %v3592 = vld [vmem:[%s1280 + $0xd8] sm:$0xff]
      %v3593 = vld [vmem:[%s1280 + $0xe0] sm:$0xff]
      %v3594 = vld [vmem:[%s1280 + $0xe8] sm:$0xff]
      %v3595 = vld [vmem:[%s1280 + $0xf0] sm:$0xff]
      %v3596 = vld [vmem:[%s1280 + $0xf8] sm:$0xff]
      %v3597 = vmax.f32 %v3533, %v3565
      %v3598 = vmax.f32 %v3534, %v3566
      %v3599 = vmax.f32 %v3535, %v3567
      %v3600 = vmax.f32 %v3536, %v3568
      %v3601 = vmax.f32 %v3537, %v3569
      %v3602 = vmax.f32 %v3538, %v3570
      %v3603 = vmax.f32 %v3539, %v3571
      %v3604 = vmax.f32 %v3540, %v3572
      %v3605 = vmax.f32 %v3541, %v3573
      %v3606 = vmax.f32 %v3542, %v3574
      %v3607 = vmax.f32 %v3543, %v3575
      %v3608 = vmax.f32 %v3544, %v3576
      %v3609 = vmax.f32 %v3545, %v3577
      %v3610 = vmax.f32 %v3546, %v3578
      %v3611 = vmax.f32 %v3547, %v3579
      %v3612 = vmax.f32 %v3548, %v3580
      %v3613 = vmax.f32 %v3549, %v3581
      %v3614 = vmax.f32 %v3550, %v3582
      %v3615 = vmax.f32 %v3551, %v3583
      %v3616 = vmax.f32 %v3552, %v3584
      %v3617 = vmax.f32 %v3553, %v3585
      %v3618 = vmax.f32 %v3554, %v3586
      %v3619 = vmax.f32 %v3555, %v3587
      %v3620 = vmax.f32 %v3556, %v3588
      %v3621 = vmax.f32 %v3557, %v3589
      %v3622 = vmax.f32 %v3558, %v3590
      %v3623 = vmax.f32 %v3559, %v3591
      %v3624 = vmax.f32 %v3560, %v3592
      %v3625 = vmax.f32 %v3561, %v3593
      %v3626 = vmax.f32 %v3562, %v3594
      %v3627 = vmax.f32 %v3563, %v3595
      %v3628 = vmax.f32 %v3564, %v3596
      %v3629 = vld [vmem:[#allocation4] sm:$0xff]
      %v3630 = vld [vmem:[#allocation4 + $0x8] sm:$0xff]
      %v3631 = vld [vmem:[#allocation4 + $0x10] sm:$0xff]
      %v3632 = vld [vmem:[#allocation4 + $0x18] sm:$0xff]
      %v3633 = vld [vmem:[#allocation4 + $0x20] sm:$0xff]
      %v3634 = vld [vmem:[#allocation4 + $0x28] sm:$0xff]
      %v3635 = vld [vmem:[#allocation4 + $0x30] sm:$0xff]
      %v3636 = vld [vmem:[#allocation4 + $0x38] sm:$0xff]
      %v3637 = vld [vmem:[#allocation4 + $0x40] sm:$0xff]
      %v3638 = vld [vmem:[#allocation4 + $0x48] sm:$0xff]
      %v3639 = vld [vmem:[#allocation4 + $0x50] sm:$0xff]
      %v3640 = vld [vmem:[#allocation4 + $0x58] sm:$0xff]
      %v3641 = vld [vmem:[#allocation4 + $0x60] sm:$0xff]
      %v3642 = vld [vmem:[#allocation4 + $0x68] sm:$0xff]
      %v3643 = vld [vmem:[#allocation4 + $0x70] sm:$0xff]
      %v3644 = vld [vmem:[#allocation4 + $0x78] sm:$0xff]
      %v3645 = vld [vmem:[#allocation4 + $0x80] sm:$0xff]
      %v3646 = vld [vmem:[#allocation4 + $0x88] sm:$0xff]
      %v3647 = vld [vmem:[#allocation4 + $0x90] sm:$0xff]
      %v3648 = vld [vmem:[#allocation4 + $0x98] sm:$0xff]
      %v3649 = vld [vmem:[#allocation4 + $0xa0] sm:$0xff]
      %v3650 = vld [vmem:[#allocation4 + $0xa8] sm:$0xff]
      %v3651 = vld [vmem:[#allocation4 + $0xb0] sm:$0xff]
      %v3652 = vld [vmem:[#allocation4 + $0xb8] sm:$0xff]
      %v3653 = vld [vmem:[#allocation4 + $0xc0] sm:$0xff]
      %v3654 = vld [vmem:[#allocation4 + $0xc8] sm:$0xff]
      %v3655 = vld [vmem:[#allocation4 + $0xd0] sm:$0xff]
      %v3656 = vld [vmem:[#allocation4 + $0xd8] sm:$0xff]
      %v3657 = vld [vmem:[#allocation4 + $0xe0] sm:$0xff]
      %v3658 = vld [vmem:[#allocation4 + $0xe8] sm:$0xff]
      %v3659 = vld [vmem:[#allocation4 + $0xf0] sm:$0xff]
      %v3660 = vld [vmem:[#allocation4 + $0xf8] sm:$0xff]
      %s3661 = scalar_lea.vmem %s1, 12
      %v3662 = vld [vmem:[%s3661] sm:$0xf]
      %v3664 = vsel %vm172, %v3597, 0
      %v3667 = vsel %vm172, %v3598, 0
      %v3670 = vsel %vm172, %v3599, 0
      %v3673 = vsel %vm172, %v3600, 0
      %v3676 = vsel %vm172, %v3601, 0
      %v3679 = vsel %vm172, %v3602, 0
      %v3682 = vsel %vm172, %v3603, 0
      %v3685 = vsel %vm172, %v3604, 0
      %v3688 = vsel %vm172, %v3605, 0
      %v3691 = vsel %vm172, %v3606, 0
      %v3694 = vsel %vm172, %v3607, 0
      %v3697 = vsel %vm172, %v3608, 0
      %v3700 = vsel %vm172, %v3609, 0
      %v3703 = vsel %vm172, %v3610, 0
      %v3706 = vsel %vm172, %v3611, 0
      %v3709 = vsel %vm172, %v3612, 0
      %v3712 = vsel %vm172, %v3613, 0
      %v3715 = vsel %vm172, %v3614, 0
      %v3718 = vsel %vm172, %v3615, 0
      %v3721 = vsel %vm172, %v3616, 0
      %v3724 = vsel %vm172, %v3617, 0
      %v3727 = vsel %vm172, %v3618, 0
      %v3730 = vsel %vm172, %v3619, 0
      %v3733 = vsel %vm172, %v3620, 0
      %v3736 = vsel %vm172, %v3621, 0
      %v3739 = vsel %vm172, %v3622, 0
      %v3742 = vsel %vm172, %v3623, 0
      %v3745 = vsel %vm172, %v3624, 0
      %v3748 = vsel %vm172, %v3625, 0
      %v3751 = vsel %vm172, %v3626, 0
      %v3754 = vsel %vm172, %v3627, 0
      %v3757 = vsel %vm172, %v3628, 0
      %v3760 = vsel %vm391, %v3662, 0
      %3762 = vmatprep.subr.mxu0 0.0
      %3763 = vmatpush1.msra.mxu0 %v3760
      %3764 = vmatprep.subr.mxu0 0.0
      %3765 = vmatpush1.msra.mxu0 0.0
      %3766 = vmatprep.subr.mxu0 0.0
      %3767 = vmatpush1.msra.mxu0 0.0
      %3768 = vmatprep.subr.mxu0 0.0
      %3769 = vmatpush1.msra.mxu0 0.0
      %3770 = vmatprep.subr.mxu0 0.0
      %3771 = vmatpush1.msra.mxu0 0.0
      %3772 = vmatprep.subr.mxu0 0.0
      %3773 = vmatpush1.msra.mxu0 0.0
      %3774 = vmatprep.subr.mxu0 0.0
      %3775 = vmatpush1.msra.mxu0 0.0
      %3776 = vmatprep.subr.mxu0 0.0
      %3777 = vmatpush1.msra.mxu0 0.0
      %3778 = vmatprep.subr.mxu0 0.0
      %3779 = vmatpush1.msra.mxu0 0.0
      %3780 = vmatprep.subr.mxu0 0.0
      %3781 = vmatpush1.msra.mxu0 0.0
      %3782 = vmatprep.subr.mxu0 0.0
      %3783 = vmatpush1.msra.mxu0 0.0
      %3784 = vmatprep.subr.mxu0 0.0
      %3785 = vmatpush1.msra.mxu0 0.0
      %3786 = vmatprep.subr.mxu0 0.0
      %3787 = vmatpush1.msra.mxu0 0.0
      %3788 = vmatprep.subr.mxu0 0.0
      %3789 = vmatpush1.msra.mxu0 0.0
      %3790 = vmatprep.subr.mxu0 0.0
      %3791 = vmatpush1.msra.mxu0 0.0
      %3792 = vmatprep.subr.mxu0 0.0
      %3793 = vmatpush1.msra.mxu0 0.0
      %3794 = vmatprep.subr.mxu0 0.0
      %3795 = vmatpush1.msra.mxu0 0.0
      %3796 = vmatprep.subr.mxu0 0.0
      %3797 = vmatpush1.msra.mxu0 0.0
      %3798 = vmatprep.subr.mxu0 0.0
      %3799 = vmatpush1.msra.mxu0 0.0
      %3800 = vmatprep.subr.mxu0 0.0
      %3801 = vmatpush1.msra.mxu0 0.0
      %3802 = vmatprep.subr.mxu0 0.0
      %3803 = vmatpush1.msra.mxu0 0.0
      %3804 = vmatprep.subr.mxu0 0.0
      %3805 = vmatpush1.msra.mxu0 0.0
      %3806 = vmatprep.subr.mxu0 0.0
      %3807 = vmatpush1.msra.mxu0 0.0
      %3808 = vmatprep.subr.mxu0 0.0
      %3809 = vmatpush1.msra.mxu0 0.0
      %3810 = vmatprep.subr.mxu0 0.0
      %3811 = vmatpush1.msra.mxu0 0.0
      %3812 = vmatprep.subr.mxu0 0.0
      %3813 = vmatpush1.msra.mxu0 0.0
      %3814 = vmatprep.subr.mxu0 0.0
      %3815 = vmatpush1.msra.mxu0 0.0
      %3816 = vmatprep.subr.mxu0 0.0
      %3817 = vmatpush1.msra.mxu0 0.0
      %3818 = vmatprep.subr.mxu0 0.0
      %3819 = vmatpush1.msra.mxu0 0.0
      %3820 = vmatprep.subr.mxu0 0.0
      %3821 = vmatpush1.msra.mxu0 0.0
      %3822 = vmatprep.subr.mxu0 0.0
      %3823 = vmatpush1.msra.mxu0 0.0
      %3824 = vmatprep.subr.mxu0 0.0
      %3825 = vmatpush1.msra.mxu0 0.0
      %3826 = vmatprep.mubr.f32.mxu0 0.0
      %3827 = vmatmul.mubr.f32.gmra.mrb[0].mxu0 %v3664
      %v3828 = vpop.f32.mrb[0].mxu0
      %v3829 = vadd.f32 0.0, %v3828
      %v3830 = vpop.f32.mrb[0].mxu0
      %3831 = vmatprep.mubr.f32.mxu0 0.0
      %3832 = vmatmul.mubr.f32.gmra.mrb[0].mxu0 %v3667
      %v3833 = vpop.f32.mrb[0].mxu0
      %v3834 = vadd.f32 0.0, %v3833
      %v3835 = vpop.f32.mrb[0].mxu0
      %3836 = vmatprep.mubr.f32.mxu0 0.0
      %3837 = vmatmul.mubr.f32.gmra.mrb[0].mxu0 %v3670
      %v3838 = vpop.f32.mrb[0].mxu0
      %v3839 = vadd.f32 0.0, %v3838
      %v3840 = vpop.f32.mrb[0].mxu0
      %3841 = vmatprep.mubr.f32.mxu0 0.0
      %3842 = vmatmul.mubr.f32.gmra.mrb[0].mxu0 %v3673
      %v3843 = vpop.f32.mrb[0].mxu0
      %v3844 = vadd.f32 0.0, %v3843
      %v3845 = vpop.f32.mrb[0].mxu0
      %3846 = vmatprep.mubr.f32.mxu0 0.0
      %3847 = vmatmul.mubr.f32.gmra.mrb[0].mxu0 %v3676
      %v3848 = vpop.f32.mrb[0].mxu0
      %v3849 = vadd.f32 0.0, %v3848
      %v3850 = vpop.f32.mrb[0].mxu0
      %3851 = vmatprep.mubr.f32.mxu0 0.0
      %3852 = vmatmul.mubr.f32.gmra.mrb[0].mxu0 %v3679
      %v3853 = vpop.f32.mrb[0].mxu0
      %v3854 = vadd.f32 0.0, %v3853
      %v3855 = vpop.f32.mrb[0].mxu0
      %3856 = vmatprep.mubr.f32.mxu0 0.0
      %3857 = vmatmul.mubr.f32.gmra.mrb[0].mxu0 %v3682
      %v3858 = vpop.f32.mrb[0].mxu0
      %v3859 = vadd.f32 0.0, %v3858
      %v3860 = vpop.f32.mrb[0].mxu0
      %3861 = vmatprep.mubr.f32.mxu0 0.0
      %3862 = vmatmul.mubr.f32.gmra.mrb[0].mxu0 %v3685
      %v3863 = vpop.f32.mrb[0].mxu0
      %v3864 = vadd.f32 0.0, %v3863
      %v3865 = vpop.f32.mrb[0].mxu0
      %3866 = vmatprep.mubr.f32.mxu0 0.0
      %3867 = vmatmul.mubr.f32.gmra.mrb[0].mxu0 %v3688
      %v3868 = vpop.f32.mrb[0].mxu0
      %v3869 = vadd.f32 0.0, %v3868
      %v3870 = vpop.f32.mrb[0].mxu0
      %3871 = vmatprep.mubr.f32.mxu0 0.0
      %3872 = vmatmul.mubr.f32.gmra.mrb[0].mxu0 %v3691
      %v3873 = vpop.f32.mrb[0].mxu0
      %v3874 = vadd.f32 0.0, %v3873
      %v3875 = vpop.f32.mrb[0].mxu0
      %3876 = vmatprep.mubr.f32.mxu0 0.0
      %3877 = vmatmul.mubr.f32.gmra.mrb[0].mxu0 %v3694
      %v3878 = vpop.f32.mrb[0].mxu0
      %v3879 = vadd.f32 0.0, %v3878
      %v3880 = vpop.f32.mrb[0].mxu0
      %3881 = vmatprep.mubr.f32.mxu0 0.0
      %3882 = vmatmul.mubr.f32.gmra.mrb[0].mxu0 %v3697
      %v3883 = vpop.f32.mrb[0].mxu0
      %v3884 = vadd.f32 0.0, %v3883
      %v3885 = vpop.f32.mrb[0].mxu0
      %3886 = vmatprep.mubr.f32.mxu0 0.0
      %3887 = vmatmul.mubr.f32.gmra.mrb[0].mxu0 %v3700
      %v3888 = vpop.f32.mrb[0].mxu0
      %v3889 = vadd.f32 0.0, %v3888
      %v3890 = vpop.f32.mrb[0].mxu0
      %3891 = vmatprep.mubr.f32.mxu0 0.0
      %3892 = vmatmul.mubr.f32.gmra.mrb[0].mxu0 %v3703
      %v3893 = vpop.f32.mrb[0].mxu0
      %v3894 = vadd.f32 0.0, %v3893
      %v3895 = vpop.f32.mrb[0].mxu0
      %3896 = vmatprep.mubr.f32.mxu0 0.0
      %3897 = vmatmul.mubr.f32.gmra.mrb[0].mxu0 %v3706
      %v3898 = vpop.f32.mrb[0].mxu0
      %v3899 = vadd.f32 0.0, %v3898
      %v3900 = vpop.f32.mrb[0].mxu0
      %3901 = vmatprep.mubr.f32.mxu0 0.0
      %3902 = vmatmul.mubr.f32.gmra.mrb[0].mxu0 %v3709
      %v3903 = vpop.f32.mrb[0].mxu0
      %v3904 = vadd.f32 0.0, %v3903
      %v3905 = vpop.f32.mrb[0].mxu0
      %3906 = vmatprep.mubr.f32.mxu0 0.0
      %3907 = vmatmul.mubr.f32.gmra.mrb[0].mxu0 %v3712
      %v3908 = vpop.f32.mrb[0].mxu0
      %v3909 = vadd.f32 0.0, %v3908
      %v3910 = vpop.f32.mrb[0].mxu0
      %3911 = vmatprep.mubr.f32.mxu0 0.0
      %3912 = vmatmul.mubr.f32.gmra.mrb[0].mxu0 %v3715
      %v3913 = vpop.f32.mrb[0].mxu0
      %v3914 = vadd.f32 0.0, %v3913
      %v3915 = vpop.f32.mrb[0].mxu0
      %3916 = vmatprep.mubr.f32.mxu0 0.0
      %3917 = vmatmul.mubr.f32.gmra.mrb[0].mxu0 %v3718
      %v3918 = vpop.f32.mrb[0].mxu0
      %v3919 = vadd.f32 0.0, %v3918
      %v3920 = vpop.f32.mrb[0].mxu0
      %3921 = vmatprep.mubr.f32.mxu0 0.0
      %3922 = vmatmul.mubr.f32.gmra.mrb[0].mxu0 %v3721
      %v3923 = vpop.f32.mrb[0].mxu0
      %v3924 = vadd.f32 0.0, %v3923
      %v3925 = vpop.f32.mrb[0].mxu0
      %3926 = vmatprep.mubr.f32.mxu0 0.0
      %3927 = vmatmul.mubr.f32.gmra.mrb[0].mxu0 %v3724
      %v3928 = vpop.f32.mrb[0].mxu0
      %v3929 = vadd.f32 0.0, %v3928
      %v3930 = vpop.f32.mrb[0].mxu0
      %3931 = vmatprep.mubr.f32.mxu0 0.0
      %3932 = vmatmul.mubr.f32.gmra.mrb[0].mxu0 %v3727
      %v3933 = vpop.f32.mrb[0].mxu0
      %v3934 = vadd.f32 0.0, %v3933
      %v3935 = vpop.f32.mrb[0].mxu0
      %3936 = vmatprep.mubr.f32.mxu0 0.0
      %3937 = vmatmul.mubr.f32.gmra.mrb[0].mxu0 %v3730
      %v3938 = vpop.f32.mrb[0].mxu0
      %v3939 = vadd.f32 0.0, %v3938
      %v3940 = vpop.f32.mrb[0].mxu0
      %3941 = vmatprep.mubr.f32.mxu0 0.0
      %3942 = vmatmul.mubr.f32.gmra.mrb[0].mxu0 %v3733
      %v3943 = vpop.f32.mrb[0].mxu0
      %v3944 = vadd.f32 0.0, %v3943
      %v3945 = vpop.f32.mrb[0].mxu0
      %3946 = vmatprep.mubr.f32.mxu0 0.0
      %3947 = vmatmul.mubr.f32.gmra.mrb[0].mxu0 %v3736
      %v3948 = vpop.f32.mrb[0].mxu0
      %v3949 = vadd.f32 0.0, %v3948
      %v3950 = vpop.f32.mrb[0].mxu0
      %3951 = vmatprep.mubr.f32.mxu0 0.0
      %3952 = vmatmul.mubr.f32.gmra.mrb[0].mxu0 %v3739
      %v3953 = vpop.f32.mrb[0].mxu0
      %v3954 = vadd.f32 0.0, %v3953
      %v3955 = vpop.f32.mrb[0].mxu0
      %3956 = vmatprep.mubr.f32.mxu0 0.0
      %3957 = vmatmul.mubr.f32.gmra.mrb[0].mxu0 %v3742
      %v3958 = vpop.f32.mrb[0].mxu0
      %v3959 = vadd.f32 0.0, %v3958
      %v3960 = vpop.f32.mrb[0].mxu0
      %3961 = vmatprep.mubr.f32.mxu0 0.0
      %3962 = vmatmul.mubr.f32.gmra.mrb[0].mxu0 %v3745
      %v3963 = vpop.f32.mrb[0].mxu0
      %v3964 = vadd.f32 0.0, %v3963
      %v3965 = vpop.f32.mrb[0].mxu0
      %3966 = vmatprep.mubr.f32.mxu0 0.0
      %3967 = vmatmul.mubr.f32.gmra.mrb[0].mxu0 %v3748
      %v3968 = vpop.f32.mrb[0].mxu0
      %v3969 = vadd.f32 0.0, %v3968
      %v3970 = vpop.f32.mrb[0].mxu0
      %3971 = vmatprep.mubr.f32.mxu0 0.0
      %3972 = vmatmul.mubr.f32.gmra.mrb[0].mxu0 %v3751
      %v3973 = vpop.f32.mrb[0].mxu0
      %v3974 = vadd.f32 0.0, %v3973
      %v3975 = vpop.f32.mrb[0].mxu0
      %3976 = vmatprep.mubr.f32.mxu0 0.0
      %3977 = vmatmul.mubr.f32.gmra.mrb[0].mxu0 %v3754
      %v3978 = vpop.f32.mrb[0].mxu0
      %v3979 = vadd.f32 0.0, %v3978
      %v3980 = vpop.f32.mrb[0].mxu0
      %3981 = vmatprep.mubr.f32.mxu0 0.0
      %3982 = vmatmul.mubr.f32.gmra.mrb[0].mxu0 %v3757
      %v3983 = vpop.f32.mrb[0].mxu0
      %v3984 = vadd.f32 0.0, %v3983
      %v3985 = vpop.f32.mrb[0].mxu0
      %3986 = vdwg.mxu0
      %v3987 = vadd.f32 %v3629, %v3829
      %v3988 = vadd.f32 %v3630, %v3834
      %v3989 = vadd.f32 %v3631, %v3839
      %v3990 = vadd.f32 %v3632, %v3844
      %v3991 = vadd.f32 %v3633, %v3849
      %v3992 = vadd.f32 %v3634, %v3854
      %v3993 = vadd.f32 %v3635, %v3859
      %v3994 = vadd.f32 %v3636, %v3864
      %v3995 = vadd.f32 %v3637, %v3869
      %v3996 = vadd.f32 %v3638, %v3874
      %v3997 = vadd.f32 %v3639, %v3879
      %v3998 = vadd.f32 %v3640, %v3884
      %v3999 = vadd.f32 %v3641, %v3889
      %v4000 = vadd.f32 %v3642, %v3894
      %v4001 = vadd.f32 %v3643, %v3899
      %v4002 = vadd.f32 %v3644, %v3904
      %v4003 = vadd.f32 %v3645, %v3909
      %v4004 = vadd.f32 %v3646, %v3914
      %v4005 = vadd.f32 %v3647, %v3919
      %v4006 = vadd.f32 %v3648, %v3924
      %v4007 = vadd.f32 %v3649, %v3929
      %v4008 = vadd.f32 %v3650, %v3934
      %v4009 = vadd.f32 %v3651, %v3939
      %v4010 = vadd.f32 %v3652, %v3944
      %v4011 = vadd.f32 %v3653, %v3949
      %v4012 = vadd.f32 %v3654, %v3954
      %v4013 = vadd.f32 %v3655, %v3959
      %v4014 = vadd.f32 %v3656, %v3964
      %v4015 = vadd.f32 %v3657, %v3969
      %v4016 = vadd.f32 %v3658, %v3974
      %v4017 = vadd.f32 %v3659, %v3979
      %v4018 = vadd.f32 %v3660, %v3984
      %4019 = vst.msk [vmem:[#allocation4] sm:$0xff] %vm620, %v3987
      %4020 = vst.msk [vmem:[#allocation4 + $0x8] sm:$0xff] %vm620, %v3988
      %4021 = vst.msk [vmem:[#allocation4 + $0x10] sm:$0xff] %vm620, %v3989
      %4022 = vst.msk [vmem:[#allocation4 + $0x18] sm:$0xff] %vm620, %v3990
      %4023 = vst.msk [vmem:[#allocation4 + $0x20] sm:$0xff] %vm620, %v3991
      %4024 = vst.msk [vmem:[#allocation4 + $0x28] sm:$0xff] %vm620, %v3992
      %4025 = vst.msk [vmem:[#allocation4 + $0x30] sm:$0xff] %vm620, %v3993
      %4026 = vst.msk [vmem:[#allocation4 + $0x38] sm:$0xff] %vm620, %v3994
      %4027 = vst.msk [vmem:[#allocation4 + $0x40] sm:$0xff] %vm620, %v3995
      %4028 = vst.msk [vmem:[#allocation4 + $0x48] sm:$0xff] %vm620, %v3996
      %4029 = vst.msk [vmem:[#allocation4 + $0x50] sm:$0xff] %vm620, %v3997
      %4030 = vst.msk [vmem:[#allocation4 + $0x58] sm:$0xff] %vm620, %v3998
      %4031 = vst.msk [vmem:[#allocation4 + $0x60] sm:$0xff] %vm620, %v3999
      %4032 = vst.msk [vmem:[#allocation4 + $0x68] sm:$0xff] %vm620, %v4000
      %4033 = vst.msk [vmem:[#allocation4 + $0x70] sm:$0xff] %vm620, %v4001
      %4034 = vst.msk [vmem:[#allocation4 + $0x78] sm:$0xff] %vm620, %v4002
      %4035 = vst.msk [vmem:[#allocation4 + $0x80] sm:$0xff] %vm620, %v4003
      %4036 = vst.msk [vmem:[#allocation4 + $0x88] sm:$0xff] %vm620, %v4004
      %4037 = vst.msk [vmem:[#allocation4 + $0x90] sm:$0xff] %vm620, %v4005
      %4038 = vst.msk [vmem:[#allocation4 + $0x98] sm:$0xff] %vm620, %v4006
      %4039 = vst.msk [vmem:[#allocation4 + $0xa0] sm:$0xff] %vm620, %v4007
      %4040 = vst.msk [vmem:[#allocation4 + $0xa8] sm:$0xff] %vm620, %v4008
      %4041 = vst.msk [vmem:[#allocation4 + $0xb0] sm:$0xff] %vm620, %v4009
      %4042 = vst.msk [vmem:[#allocation4 + $0xb8] sm:$0xff] %vm620, %v4010
      %4043 = vst.msk [vmem:[#allocation4 + $0xc0] sm:$0xff] %vm620, %v4011
      %4044 = vst.msk [vmem:[#allocation4 + $0xc8] sm:$0xff] %vm620, %v4012
      %4045 = vst.msk [vmem:[#allocation4 + $0xd0] sm:$0xff] %vm620, %v4013
      %4046 = vst.msk [vmem:[#allocation4 + $0xd8] sm:$0xff] %vm620, %v4014
      %4047 = vst.msk [vmem:[#allocation4 + $0xe0] sm:$0xff] %vm620, %v4015
      %4048 = vst.msk [vmem:[#allocation4 + $0xe8] sm:$0xff] %vm620, %v4016
      %4049 = vst.msk [vmem:[#allocation4 + $0xf0] sm:$0xff] %vm620, %v4017
      %4050 = vst.msk [vmem:[#allocation4 + $0xf8] sm:$0xff] %vm620, %v4018
      %v4051 = vld [vmem:[#allocation4] sm:$0xff]
      %v4052 = vld [vmem:[#allocation4 + $0x8] sm:$0xff]
      %v4053 = vld [vmem:[#allocation4 + $0x10] sm:$0xff]
      %v4054 = vld [vmem:[#allocation4 + $0x18] sm:$0xff]
      %v4055 = vld [vmem:[#allocation4 + $0x20] sm:$0xff]
      %v4056 = vld [vmem:[#allocation4 + $0x28] sm:$0xff]
      %v4057 = vld [vmem:[#allocation4 + $0x30] sm:$0xff]
      %v4058 = vld [vmem:[#allocation4 + $0x38] sm:$0xff]
      %v4059 = vld [vmem:[#allocation4 + $0x40] sm:$0xff]
      %v4060 = vld [vmem:[#allocation4 + $0x48] sm:$0xff]
      %v4061 = vld [vmem:[#allocation4 + $0x50] sm:$0xff]
      %v4062 = vld [vmem:[#allocation4 + $0x58] sm:$0xff]
      %v4063 = vld [vmem:[#allocation4 + $0x60] sm:$0xff]
      %v4064 = vld [vmem:[#allocation4 + $0x68] sm:$0xff]
      %v4065 = vld [vmem:[#allocation4 + $0x70] sm:$0xff]
      %v4066 = vld [vmem:[#allocation4 + $0x78] sm:$0xff]
      %v4067 = vld [vmem:[#allocation4 + $0x80] sm:$0xff]
      %v4068 = vld [vmem:[#allocation4 + $0x88] sm:$0xff]
      %v4069 = vld [vmem:[#allocation4 + $0x90] sm:$0xff]
      %v4070 = vld [vmem:[#allocation4 + $0x98] sm:$0xff]
      %v4071 = vld [vmem:[#allocation4 + $0xa0] sm:$0xff]
      %v4072 = vld [vmem:[#allocation4 + $0xa8] sm:$0xff]
      %v4073 = vld [vmem:[#allocation4 + $0xb0] sm:$0xff]
      %v4074 = vld [vmem:[#allocation4 + $0xb8] sm:$0xff]
      %v4075 = vld [vmem:[#allocation4 + $0xc0] sm:$0xff]
      %v4076 = vld [vmem:[#allocation4 + $0xc8] sm:$0xff]
      %v4077 = vld [vmem:[#allocation4 + $0xd0] sm:$0xff]
      %v4078 = vld [vmem:[#allocation4 + $0xd8] sm:$0xff]
      %v4079 = vld [vmem:[#allocation4 + $0xe0] sm:$0xff]
      %v4080 = vld [vmem:[#allocation4 + $0xe8] sm:$0xff]
      %v4081 = vld [vmem:[#allocation4 + $0xf0] sm:$0xff]
      %v4082 = vld [vmem:[#allocation4 + $0xf8] sm:$0xff]
      %v4083 = vxor.u32 %v4051, 2147483648
      %v4084 = vxor.u32 %v4052, 2147483648
      %v4085 = vxor.u32 %v4053, 2147483648
      %v4086 = vxor.u32 %v4054, 2147483648
      %v4087 = vxor.u32 %v4055, 2147483648
      %v4088 = vxor.u32 %v4056, 2147483648
      %v4089 = vxor.u32 %v4057, 2147483648
      %v4090 = vxor.u32 %v4058, 2147483648
      %v4091 = vxor.u32 %v4059, 2147483648
      %v4092 = vxor.u32 %v4060, 2147483648
      %v4093 = vxor.u32 %v4061, 2147483648
      %v4094 = vxor.u32 %v4062, 2147483648
      %v4095 = vxor.u32 %v4063, 2147483648
      %v4096 = vxor.u32 %v4064, 2147483648
      %v4097 = vxor.u32 %v4065, 2147483648
      %v4098 = vxor.u32 %v4066, 2147483648
      %v4099 = vxor.u32 %v4067, 2147483648
      %v4100 = vxor.u32 %v4068, 2147483648
      %v4101 = vxor.u32 %v4069, 2147483648
      %v4102 = vxor.u32 %v4070, 2147483648
      %v4103 = vxor.u32 %v4071, 2147483648
      %v4104 = vxor.u32 %v4072, 2147483648
      %v4105 = vxor.u32 %v4073, 2147483648
      %v4106 = vxor.u32 %v4074, 2147483648
      %v4107 = vxor.u32 %v4075, 2147483648
      %v4108 = vxor.u32 %v4076, 2147483648
      %v4109 = vxor.u32 %v4077, 2147483648
      %v4110 = vxor.u32 %v4078, 2147483648
      %v4111 = vxor.u32 %v4079, 2147483648
      %v4112 = vxor.u32 %v4080, 2147483648
      %v4113 = vxor.u32 %v4081, 2147483648
      %v4114 = vxor.u32 %v4082, 2147483648
      %v4115 = vmul.f32 %v4083, 1.442695
      %v4116 = vpow.pop %v4115
      %v4117 = vmul.f32 %v4084, 1.442695
      %v4118 = vpow.pop %v4117
      %v4119 = vmul.f32 %v4085, 1.442695
      %v4120 = vpow.pop %v4119
      %v4121 = vmul.f32 %v4086, 1.442695
      %v4122 = vpow.pop %v4121
      %v4123 = vmul.f32 %v4087, 1.442695
      %v4124 = vpow.pop %v4123
      %v4125 = vmul.f32 %v4088, 1.442695
      %v4126 = vpow.pop %v4125
      %v4127 = vmul.f32 %v4089, 1.442695
      %v4128 = vpow.pop %v4127
      %v4129 = vmul.f32 %v4090, 1.442695
      %v4130 = vpow.pop %v4129
      %v4131 = vmul.f32 %v4091, 1.442695
      %v4132 = vpow.pop %v4131
      %v4133 = vmul.f32 %v4092, 1.442695
      %v4134 = vpow.pop %v4133
      %v4135 = vmul.f32 %v4093, 1.442695
      %v4136 = vpow.pop %v4135
      %v4137 = vmul.f32 %v4094, 1.442695
      %v4138 = vpow.pop %v4137
      %v4139 = vmul.f32 %v4095, 1.442695
      %v4140 = vpow.pop %v4139
      %v4141 = vmul.f32 %v4096, 1.442695
      %v4142 = vpow.pop %v4141
      %v4143 = vmul.f32 %v4097, 1.442695
      %v4144 = vpow.pop %v4143
      %v4145 = vmul.f32 %v4098, 1.442695
      %v4146 = vpow.pop %v4145
      %v4147 = vmul.f32 %v4099, 1.442695
      %v4148 = vpow.pop %v4147
      %v4149 = vmul.f32 %v4100, 1.442695
      %v4150 = vpow.pop %v4149
      %v4151 = vmul.f32 %v4101, 1.442695
      %v4152 = vpow.pop %v4151
      %v4153 = vmul.f32 %v4102, 1.442695
      %v4154 = vpow.pop %v4153
      %v4155 = vmul.f32 %v4103, 1.442695
      %v4156 = vpow.pop %v4155
      %v4157 = vmul.f32 %v4104, 1.442695
      %v4158 = vpow.pop %v4157
      %v4159 = vmul.f32 %v4105, 1.442695
      %v4160 = vpow.pop %v4159
      %v4161 = vmul.f32 %v4106, 1.442695
      %v4162 = vpow.pop %v4161
      %v4163 = vmul.f32 %v4107, 1.442695
      %v4164 = vpow.pop %v4163
      %v4165 = vmul.f32 %v4108, 1.442695
      %v4166 = vpow.pop %v4165
      %v4167 = vmul.f32 %v4109, 1.442695
      %v4168 = vpow.pop %v4167
      %v4169 = vmul.f32 %v4110, 1.442695
      %v4170 = vpow.pop %v4169
      %v4171 = vmul.f32 %v4111, 1.442695
      %v4172 = vpow.pop %v4171
      %v4173 = vmul.f32 %v4112, 1.442695
      %v4174 = vpow.pop %v4173
      %v4175 = vmul.f32 %v4113, 1.442695
      %v4176 = vpow.pop %v4175
      %v4177 = vmul.f32 %v4114, 1.442695
      %v4178 = vpow.pop %v4177
      %v4179 = vadd.f32 %v4116, 1.0
      %v4180 = vadd.f32 %v4118, 1.0
      %v4181 = vadd.f32 %v4120, 1.0
      %v4182 = vadd.f32 %v4122, 1.0
      %v4183 = vadd.f32 %v4124, 1.0
      %v4184 = vadd.f32 %v4126, 1.0
      %v4185 = vadd.f32 %v4128, 1.0
      %v4186 = vadd.f32 %v4130, 1.0
      %v4187 = vadd.f32 %v4132, 1.0
      %v4188 = vadd.f32 %v4134, 1.0
      %v4189 = vadd.f32 %v4136, 1.0
      %v4190 = vadd.f32 %v4138, 1.0
      %v4191 = vadd.f32 %v4140, 1.0
      %v4192 = vadd.f32 %v4142, 1.0
      %v4193 = vadd.f32 %v4144, 1.0
      %v4194 = vadd.f32 %v4146, 1.0
      %v4195 = vadd.f32 %v4148, 1.0
      %v4196 = vadd.f32 %v4150, 1.0
      %v4197 = vadd.f32 %v4152, 1.0
      %v4198 = vadd.f32 %v4154, 1.0
      %v4199 = vadd.f32 %v4156, 1.0
      %v4200 = vadd.f32 %v4158, 1.0
      %v4201 = vadd.f32 %v4160, 1.0
      %v4202 = vadd.f32 %v4162, 1.0
      %v4203 = vadd.f32 %v4164, 1.0
      %v4204 = vadd.f32 %v4166, 1.0
      %v4205 = vadd.f32 %v4168, 1.0
      %v4206 = vadd.f32 %v4170, 1.0
      %v4207 = vadd.f32 %v4172, 1.0
      %v4208 = vadd.f32 %v4174, 1.0
      %v4209 = vadd.f32 %v4176, 1.0
      %v4210 = vadd.f32 %v4178, 1.0
      %v4211 = vrcp.pop %v4179
      %v4212 = vmul.f32 1.0, %v4211
      %v4213 = vrcp.pop %v4180
      %v4214 = vmul.f32 1.0, %v4213
      %v4215 = vrcp.pop %v4181
      %v4216 = vmul.f32 1.0, %v4215
      %v4217 = vrcp.pop %v4182
      %v4218 = vmul.f32 1.0, %v4217
      %v4219 = vrcp.pop %v4183
      %v4220 = vmul.f32 1.0, %v4219
      %v4221 = vrcp.pop %v4184
      %v4222 = vmul.f32 1.0, %v4221
      %v4223 = vrcp.pop %v4185
      %v4224 = vmul.f32 1.0, %v4223
      %v4225 = vrcp.pop %v4186
      %v4226 = vmul.f32 1.0, %v4225
      %v4227 = vrcp.pop %v4187
      %v4228 = vmul.f32 1.0, %v4227
      %v4229 = vrcp.pop %v4188
      %v4230 = vmul.f32 1.0, %v4229
      %v4231 = vrcp.pop %v4189
      %v4232 = vmul.f32 1.0, %v4231
      %v4233 = vrcp.pop %v4190
      %v4234 = vmul.f32 1.0, %v4233
      %v4235 = vrcp.pop %v4191
      %v4236 = vmul.f32 1.0, %v4235
      %v4237 = vrcp.pop %v4192
      %v4238 = vmul.f32 1.0, %v4237
      %v4239 = vrcp.pop %v4193
      %v4240 = vmul.f32 1.0, %v4239
      %v4241 = vrcp.pop %v4194
      %v4242 = vmul.f32 1.0, %v4241
      %v4243 = vrcp.pop %v4195
      %v4244 = vmul.f32 1.0, %v4243
      %v4245 = vrcp.pop %v4196
      %v4246 = vmul.f32 1.0, %v4245
      %v4247 = vrcp.pop %v4197
      %v4248 = vmul.f32 1.0, %v4247
      %v4249 = vrcp.pop %v4198
      %v4250 = vmul.f32 1.0, %v4249
      %v4251 = vrcp.pop %v4199
      %v4252 = vmul.f32 1.0, %v4251
      %v4253 = vrcp.pop %v4200
      %v4254 = vmul.f32 1.0, %v4253
      %v4255 = vrcp.pop %v4201
      %v4256 = vmul.f32 1.0, %v4255
      %v4257 = vrcp.pop %v4202
      %v4258 = vmul.f32 1.0, %v4257
      %v4259 = vrcp.pop %v4203
      %v4260 = vmul.f32 1.0, %v4259
      %v4261 = vrcp.pop %v4204
      %v4262 = vmul.f32 1.0, %v4261
      %v4263 = vrcp.pop %v4205
      %v4264 = vmul.f32 1.0, %v4263
      %v4265 = vrcp.pop %v4206
      %v4266 = vmul.f32 1.0, %v4265
      %v4267 = vrcp.pop %v4207
      %v4268 = vmul.f32 1.0, %v4267
      %v4269 = vrcp.pop %v4208
      %v4270 = vmul.f32 1.0, %v4269
      %v4271 = vrcp.pop %v4209
      %v4272 = vmul.f32 1.0, %v4271
      %v4273 = vrcp.pop %v4210
      %v4274 = vmul.f32 1.0, %v4273
      %v4275 = vmul.f32 %v4051, %v4212
      %v4276 = vmul.f32 %v4052, %v4214
      %v4277 = vmul.f32 %v4053, %v4216
      %v4278 = vmul.f32 %v4054, %v4218
      %v4279 = vmul.f32 %v4055, %v4220
      %v4280 = vmul.f32 %v4056, %v4222
      %v4281 = vmul.f32 %v4057, %v4224
      %v4282 = vmul.f32 %v4058, %v4226
      %v4283 = vmul.f32 %v4059, %v4228
      %v4284 = vmul.f32 %v4060, %v4230
      %v4285 = vmul.f32 %v4061, %v4232
      %v4286 = vmul.f32 %v4062, %v4234
      %v4287 = vmul.f32 %v4063, %v4236
      %v4288 = vmul.f32 %v4064, %v4238
      %v4289 = vmul.f32 %v4065, %v4240
      %v4290 = vmul.f32 %v4066, %v4242
      %v4291 = vmul.f32 %v4067, %v4244
      %v4292 = vmul.f32 %v4068, %v4246
      %v4293 = vmul.f32 %v4069, %v4248
      %v4294 = vmul.f32 %v4070, %v4250
      %v4295 = vmul.f32 %v4071, %v4252
      %v4296 = vmul.f32 %v4072, %v4254
      %v4297 = vmul.f32 %v4073, %v4256
      %v4298 = vmul.f32 %v4074, %v4258
      %v4299 = vmul.f32 %v4075, %v4260
      %v4300 = vmul.f32 %v4076, %v4262
      %v4301 = vmul.f32 %v4077, %v4264
      %v4302 = vmul.f32 %v4078, %v4266
      %v4303 = vmul.f32 %v4079, %v4268
      %v4304 = vmul.f32 %v4080, %v4270
      %v4305 = vmul.f32 %v4081, %v4272
      %v4306 = vmul.f32 %v4082, %v4274
      %4307 = vst.msk [vmem:[%s170] sm:$0xff] %vm620, %v4275
      %4308 = vst.msk [vmem:[%s170 + $0x8] sm:$0xff] %vm620, %v4276
      %4309 = vst.msk [vmem:[%s170 + $0x10] sm:$0xff] %vm620, %v4277
      %4310 = vst.msk [vmem:[%s170 + $0x18] sm:$0xff] %vm620, %v4278
      %4311 = vst.msk [vmem:[%s170 + $0x20] sm:$0xff] %vm620, %v4279
      %4312 = vst.msk [vmem:[%s170 + $0x28] sm:$0xff] %vm620, %v4280
      %4313 = vst.msk [vmem:[%s170 + $0x30] sm:$0xff] %vm620, %v4281
      %4314 = vst.msk [vmem:[%s170 + $0x38] sm:$0xff] %vm620, %v4282
      %4315 = vst.msk [vmem:[%s170 + $0x40] sm:$0xff] %vm620, %v4283
      %4316 = vst.msk [vmem:[%s170 + $0x48] sm:$0xff] %vm620, %v4284
      %4317 = vst.msk [vmem:[%s170 + $0x50] sm:$0xff] %vm620, %v4285
      %4318 = vst.msk [vmem:[%s170 + $0x58] sm:$0xff] %vm620, %v4286
      %4319 = vst.msk [vmem:[%s170 + $0x60] sm:$0xff] %vm620, %v4287
      %4320 = vst.msk [vmem:[%s170 + $0x68] sm:$0xff] %vm620, %v4288
      %4321 = vst.msk [vmem:[%s170 + $0x70] sm:$0xff] %vm620, %v4289
      %4322 = vst.msk [vmem:[%s170 + $0x78] sm:$0xff] %vm620, %v4290
      %4323 = vst.msk [vmem:[%s170 + $0x80] sm:$0xff] %vm620, %v4291
      %4324 = vst.msk [vmem:[%s170 + $0x88] sm:$0xff] %vm620, %v4292
      %4325 = vst.msk [vmem:[%s170 + $0x90] sm:$0xff] %vm620, %v4293
      %4326 = vst.msk [vmem:[%s170 + $0x98] sm:$0xff] %vm620, %v4294
      %4327 = vst.msk [vmem:[%s170 + $0xa0] sm:$0xff] %vm620, %v4295
      %4328 = vst.msk [vmem:[%s170 + $0xa8] sm:$0xff] %vm620, %v4296
      %4329 = vst.msk [vmem:[%s170 + $0xb0] sm:$0xff] %vm620, %v4297
      %4330 = vst.msk [vmem:[%s170 + $0xb8] sm:$0xff] %vm620, %v4298
      %4331 = vst.msk [vmem:[%s170 + $0xc0] sm:$0xff] %vm620, %v4299
      %4332 = vst.msk [vmem:[%s170 + $0xc8] sm:$0xff] %vm620, %v4300
      %4333 = vst.msk [vmem:[%s170 + $0xd0] sm:$0xff] %vm620, %v4301
      %4334 = vst.msk [vmem:[%s170 + $0xd8] sm:$0xff] %vm620, %v4302
      %4335 = vst.msk [vmem:[%s170 + $0xe0] sm:$0xff] %vm620, %v4303
      %4336 = vst.msk [vmem:[%s170 + $0xe8] sm:$0xff] %vm620, %v4304
      %4337 = vst.msk [vmem:[%s170 + $0xf0] sm:$0xff] %vm620, %v4305
      %4338 = vst.msk [vmem:[%s170 + $0xf8] sm:$0xff] %vm620, %v4306
      %p4339 = scmp.lt.s32.totalorder %s14, 1
      %s4340 = scalar_select %p4339, %s14, 1
      %s4341 = smul.addr %s4340, 32
      %s4342 = smul.addr %s4341, 8
      %s4343 = scalar_lea.vmem %s3, %s4342
      // Predicated region
      $region33: #{tpu_custom_call.1} parent=31 // pred_check
        %p4344 = pneg %p100
      $region34: #{tpu_custom_call.1} parent=31 // pred_check_branch
        %4346 = sbr.rel (%p4344) target = $region36
      $region35: #{tpu_custom_call.1} parent=31 // pred_region
        _
      $region36: #{tpu_custom_call.1} parent=31 // pred_fallthru
        _
    $region32: #{tpu_custom_call.1} parent=5 // pred_fallthru
      _
    %p4347 = scmp.le.s32.totalorder 2, %s9
    // Predicated region
    $region37: #{tpu_custom_call.1} parent=5 // pred_check
      %p4348 = pneg %p4347
    $region38: #{tpu_custom_call.1} parent=5 // pred_check_branch
      %4350 = sbr.rel (%p4348) target = $region40
    $region39: #{tpu_custom_call.1} parent=5 // pred_region
      %s4351 = ssub.s32 %s9, 2
      // Predicated region
      $region41: #{tpu_custom_call.1} parent=39 // pred_check
        %p4352 = pneg %p106
      $region42: #{tpu_custom_call.1} parent=39 // pred_check_branch
        %4354 = sbr.rel (%p4352) target = $region44
      $region43: #{tpu_custom_call.1} parent=39 // pred_region
        %p4355 = scmp.lt.s32.totalorder %s15, 1
        %s4356 = scalar_select %p4355, %s15, 1
        %s4357 = smul.addr %s4356, 32
        %s4358 = smul.addr %s4357, 8
        %s4359 = scalar_lea.vmem %s3, %s4358
      $region44: #{tpu_custom_call.1} parent=39 // pred_fallthru
        _
    $region40: #{tpu_custom_call.1} parent=5 // pred_fallthru
      _
  $region6: #{tpu_custom_call.1} parent=0 // loop_footer
    %s13 = sadd.s32 1, %s9
  $region7: #{tpu_custom_call.1} parent=0 // loop_footer_branch
    %8 = sbr.rel target = $region3
  $region8: #{tpu_custom_call.1} parent=0 // loop_exit
    _

</llo_original>
